<compile_context>
chip_gen: v6e
topology: v6e:2x2x1
jax: 0.10.0
libtpu: 0.0.40
codegen_flags: <defaults>
</compile_context>

<pallas_src>
import functools
import math

import jax
import jax.numpy as jnp
from jax.experimental import pallas as pl
from jax.experimental.pallas import tpu as pltpu


def _round_up(x, m):
    return (x + m - 1) // m * m


# ---------------------------------------------------------------------------
# Tiled linear:  out = relu?(x @ W + b)
# ---------------------------------------------------------------------------
def _linear_kernel(x_ref, w_ref, b_ref, o_ref, acc_ref, *, relu, n_k):
    @pl.when(pl.program_id(1) == 0)
    def _init():
        acc_ref[...] = jnp.zeros_like(acc_ref)

    acc_ref[...] += jnp.dot(x_ref[...].astype(jnp.bfloat16),
                            w_ref[...].astype(jnp.bfloat16),
                            preferred_element_type=jnp.float32)

    @pl.when(pl.program_id(1) == n_k - 1)
    def _finalize():
        r = acc_ref[...] + b_ref[...].astype(jnp.float32)
        if relu:
            r = jnp.maximum(r, 0.0)
        o_ref[...] = r.astype(o_ref.dtype)


def pallas_linear(x, w, b, relu=False, tm=256, tk=512):
    """x:[M,K] @ w:[K,Dout] + b:[1,Dout], row-tiled + K-tiled with f32 acc."""
    M, K = x.shape
    Dout = w.shape[1]
    tm = M if M <= tm else tm                       # ragged last M block is OK (rows independent)
    tk = K if (K <= tk or K % tk != 0) else tk      # only tile K when it divides evenly
    n_m, n_k = pl.cdiv(M, tm), pl.cdiv(K, tk)
    kern = functools.partial(_linear_kernel, relu=relu, n_k=n_k)
    return pl.pallas_call(
        kern,
        out_shape=jax.ShapeDtypeStruct((M, Dout), jnp.float32),
        grid=(n_m, n_k),
        in_specs=[
            pl.BlockSpec((tm, tk), lambda i, k: (i, k)),
            pl.BlockSpec((tk, Dout), lambda i, k: (k, 0)),
            pl.BlockSpec((1, Dout), lambda i, k: (0, 0)),
        ],
        out_specs=pl.BlockSpec((tm, Dout), lambda i, k: (i, 0)),
        scratch_shapes=[pltpu.VMEM((tm, Dout), jnp.float32)],
        compiler_params=pltpu.CompilerParams(
            dimension_semantics=("parallel", "arbitrary")),
    )(x, w, b)


# ---------------------------------------------------------------------------
# Row-tiled fused residual-add + LayerNorm (eps=1e-12, f32 math)
# ---------------------------------------------------------------------------
def _add_ln_kernel(x_ref, r_ref, g_ref, b_ref, o_ref):
    x = x_ref[...].astype(jnp.float32) + r_ref[...].astype(jnp.float32)
    mean = jnp.mean(x, axis=-1, keepdims=True)
    xc = x - mean
    var = jnp.mean(xc * xc, axis=-1, keepdims=True)
    inv = jax.lax.rsqrt(var + 1e-12)
    o_ref[...] = (xc * inv * g_ref[...] + b_ref[...]).astype(o_ref.dtype)


def pallas_add_layernorm(x, res, gamma, beta, tm=256):
    M, D = x.shape
    tm = M if M <= tm else tm
    return pl.pallas_call(
        _add_ln_kernel,
        out_shape=jax.ShapeDtypeStruct((M, D), jnp.float32),
        grid=(pl.cdiv(M, tm),),
        in_specs=[
            pl.BlockSpec((tm, D), lambda i: (i, 0)),
            pl.BlockSpec((tm, D), lambda i: (i, 0)),
            pl.BlockSpec((1, D), lambda i: (0, 0)),
            pl.BlockSpec((1, D), lambda i: (0, 0)),
        ],
        out_specs=pl.BlockSpec((tm, D), lambda i: (i, 0)),
        compiler_params=pltpu.CompilerParams(dimension_semantics=("parallel",)),
    )(x, res, gamma, beta)


# ---------------------------------------------------------------------------
# Two-stream relative attention core.
# grid = (stream, batch).  All heads of one (stream, batch) are processed per
# grid step; the Wo projection + bias is fused into the epilogue so the output
# block (1,1,S,D) is lane-dense and written exactly once.
#
# bd term: pos is pre-padded to [P, D] with real rows at indices 1..2S-1
# (row 1+l <-> relative position l-(S-1)).  bd_full = (q+w) @ pos^T -> [S, P],
# then a per-row lane rotation (shift = P-S, stride = 1 along rows) aligns
# column j with relative position j-i:  bd[i, j] = bd_full[i, j + S - i].
# ---------------------------------------------------------------------------
def _two_stream_attn_kernel(q_ref, k_ref, v_ref, pos_ref, u_ref, w_ref,
                            mask_ref, wo_ref, bo_ref, o_ref, *, n_heads):
    _, _, S, D = q_ref.shape
    P = pos_ref.shape[1]
    dh = D // n_heads
    scale = 1.0 / math.sqrt(dh)

    q = q_ref[0, 0]            # [S, D]  f32
    k = k_ref[0, 0]            # [S, D]
    v = v_ref[0, 0]            # [S, D]
    pos = pos_ref[0]           # [P, D]
    U = u_ref[0]               # [H, dh]
    W = w_ref[0]               # [H, dh]
    m = mask_ref[0]            # [1, S]  (1 = valid key)
    Wo = wo_ref[0]             # [D, D]

    out = jnp.broadcast_to(bo_ref[0].astype(jnp.float32), (S, D))   # start from bias

    contract_last = (((1,), (1,)), ((), ()))
    for hi in range(n_heads):                       # static unroll over heads
        lo = hi * dh
        q_h = q[:, lo:lo + dh]                      # [S, dh]
        k_h = k[:, lo:lo + dh].astype(jnp.bfloat16)
        v_h = v[:, lo:lo + dh].astype(jnp.bfloat16)
        p_h = pos[:, lo:lo + dh].astype(jnp.bfloat16)   # [P, dh]
        u_h = U[hi:hi + 1, :]                       # [1, dh]
        w_h = W[hi:hi + 1, :]

        qu = (q_h + u_h).astype(jnp.bfloat16)
        qw = (q_h + w_h).astype(jnp.bfloat16)

        # content term  (MXU)
        ac = jax.lax.dot_general(qu, k_h, contract_last,
                                 preferred_element_type=jnp.float32)       # [S, S]
        # position term (MXU) + relative shift (XLU strided rotate)
        bd_full = jax.lax.dot_general(qw, p_h, contract_last,
                                      preferred_element_type=jnp.float32)  # [S, P]
        bd = pltpu.roll(bd_full, P - S, axis=1, stride=1, stride_axis=0)[:, :S]

        scores = (ac + bd) * scale
        scores = jnp.where(m > 0.5, scores, -1e30)
        mx = jnp.max(scores, axis=-1, keepdims=True)
        e = jnp.exp(scores - mx)
        denom = jnp.sum(e, axis=-1, keepdims=True)
        attn = (e * pl.reciprocal(denom, approx=True)).astype(jnp.bfloat16)

        ctx = jnp.dot(attn, v_h, preferred_element_type=jnp.float32)       # [S, dh]
        wo_h = Wo[lo:lo + dh, :].astype(jnp.bfloat16)                      # [dh, D]
        out = out + jnp.dot(ctx.astype(jnp.bfloat16), wo_h,
                            preferred_element_type=jnp.float32)            # [S, D]

    o_ref[0, 0] = out.astype(o_ref.dtype)


def pallas_two_stream_attention(q_all, k_all, v_all, pos_all, u_all, w_all,
                                mask3, wo_all, bo_all, n_heads):
    """q/k/v_all:[2,B,S,D] pos_all:[2,P,D] u/w_all:[2,H,dh] mask3:[B,1,S]
       wo_all:[2,D,D] bo_all:[2,1,D]  ->  [2,B,S,D]."""
    _, B, S, D = q_all.shape
    P = pos_all.shape[1]
    H = n_heads
    dh = D // H
    kern = functools.partial(_two_stream_attn_kernel, n_heads=n_heads)
    # TODO(synk): for long sequences the key axis should be tiled with an
    # online-softmax accumulator; here S is kept resident in VMEM.
    return pl.pallas_call(
        kern,
        out_shape=jax.ShapeDtypeStruct((2, B, S, D), jnp.float32),
        grid=(2, B),
        in_specs=[
            pl.BlockSpec((1, 1, S, D), lambda s, b: (s, b, 0, 0)),   # q
            pl.BlockSpec((1, 1, S, D), lambda s, b: (s, b, 0, 0)),   # k
            pl.BlockSpec((1, 1, S, D), lambda s, b: (s, b, 0, 0)),   # v
            pl.BlockSpec((1, P, D), lambda s, b: (s, 0, 0)),         # padded pos proj
            pl.BlockSpec((1, H, dh), lambda s, b: (s, 0, 0)),        # u bias
            pl.BlockSpec((1, H, dh), lambda s, b: (s, 0, 0)),        # w bias
            pl.BlockSpec((1, 1, S), lambda s, b: (b, 0, 0)),         # key mask
            pl.BlockSpec((1, D, D), lambda s, b: (s, 0, 0)),         # Wo
            pl.BlockSpec((1, 1, D), lambda s, b: (s, 0, 0)),         # bo
        ],
        out_specs=pl.BlockSpec((1, 1, S, D), lambda s, b: (s, b, 0, 0)),
        compiler_params=pltpu.CompilerParams(
            dimension_semantics=("parallel", "parallel")),
    )(q_all, k_all, v_all, pos_all, u_all, w_all, mask3, wo_all, bo_all)


# ---------------------------------------------------------------------------
# Module-level wrappers
# ---------------------------------------------------------------------------
def two_stream_attention(h, l, mask, pos_embed, p_hh, p_hl, n_heads):
    """Runs both attention streams (hh: q=h,kv=h / hl: q=h,kv=l) fused."""
    B, S, D = h.shape
    dh = D // n_heads
    P = _round_up(2 * S, 128)

    h2d = h.reshape(B * S, D)
    l2d = l.reshape(B * S, D)
    zero_b = jnp.zeros((1, 2 * D), jnp.float32)

    # Fused (wide-N) projections: q for both streams / k|v per stream / pos for both.
    q_both = pallas_linear(h2d, jnp.concatenate([p_hh["Wq"], p_hl["Wq"]], 1), zero_b)
    kv_hh = pallas_linear(h2d, jnp.concatenate([p_hh["Wk"], p_hh["Wv"]], 1), zero_b)
    kv_hl = pallas_linear(l2d, jnp.concatenate([p_hl["Wk"], p_hl["Wv"]], 1), zero_b)
    pos_b = pallas_linear(pos_embed, jnp.concatenate([p_hh["Wp"], p_hl["Wp"]], 1), zero_b)

    q_all = jnp.stack([q_both[:, :D], q_both[:, D:]], 0).reshape(2, B, S, D)
    k_all = jnp.stack([kv_hh[:, :D], kv_hl[:, :D]], 0).reshape(2, B, S, D)
    v_all = jnp.stack([kv_hh[:, D:], kv_hl[:, D:]], 0).reshape(2, B, S, D)

    # Pad projected pos table to P rows; real rows live at indices 1 .. 2S-1.
    pos_all = jnp.zeros((2, P, D), jnp.float32)
    pos_all = pos_all.at[0, 1:2 * S, :].set(pos_b[:, :D])
    pos_all = pos_all.at[1, 1:2 * S, :].set(pos_b[:, D:])

    u_all = jnp.stack([p_hh["u"], p_hl["u"]], 0)        # [2, H, dh]
    w_all = jnp.stack([p_hh["w"], p_hl["w"]], 0)
    wo_all = jnp.stack([p_hh["Wo"], p_hl["Wo"]], 0)     # [2, D, D]
    bo_all = jnp.stack([p_hh["bo"], p_hl["bo"]], 0)     # [2, 1, D]
    mask3 = mask.reshape(B, 1, S).astype(jnp.float32)

    out = pallas_two_stream_attention(q_all, k_all, v_all, pos_all, u_all, w_all,
                                      mask3, wo_all, bo_all, n_heads)
    return out[0], out[1]


def two_stream_rel_transformer_layer(h, l, mask, pos_embed, params,
                                     n_heads, after_norm=True):
    B, S, D = h.shape
    flat = lambda t: t.reshape(B * S, D)
    unflat = lambda t: t.reshape(B, S, D)

    if not after_norm:
        h = unflat(pallas_add_layernorm(flat(h), jnp.zeros((B * S, D), jnp.float32),
                                        params["ln1_g"], params["ln1_b"]))
    residual_h = h
    attn_hh, attn_hl = two_stream_attention(h, l, mask, pos_embed,
                                            params["attn_hh"], params["attn_hl"],
                                            n_heads)
    if after_norm:
        hh = unflat(pallas_add_layernorm(flat(attn_hh), flat(residual_h),
                                         params["ln1_g"], params["ln1_b"]))
    else:
        hh = unflat(pallas_add_layernorm(flat(attn_hh), flat(residual_h),
                                         params["ln2_g"], params["ln2_b"]))
    residual_hh = hh
    fp = params["h_ffn"]
    h1 = pallas_linear(flat(hh), fp["W1"], fp["b1"], relu=True)   # dropout = identity (eval)
    ff = pallas_linear(h1, fp["W2"], fp["b2"])
    if after_norm:
        hh = unflat(pallas_add_layernorm(ff, flat(residual_hh),
                                         params["ln2_g"], params["ln2_b"]))
    else:
        hh = residual_hh + unflat(ff)
    hl = attn_hl
    # NOTE: l_ffn exists in __init__ but is never used in forward (as in PyTorch).
    return hh, hl


# ---------------------------------------------------------------------------
# Deterministic parameter init
# ---------------------------------------------------------------------------
def init_attn_params(key, D, H):
    dh = D // H
    ks = jax.random.split(key, 7)
    s = 0.02
    return dict(
        Wq=jax.random.normal(ks[0], (D, D), jnp.float32) * s,
        Wk=jax.random.normal(ks[1], (D, D), jnp.float32) * s,
        Wv=jax.random.normal(ks[2], (D, D), jnp.float32) * s,
        Wp=jax.random.normal(ks[3], (D, D), jnp.float32) * s,
        Wo=jax.random.normal(ks[4], (D, D), jnp.float32) * s,
        bo=jnp.zeros((1, D), jnp.float32),
        u=jax.random.normal(ks[5], (H, dh), jnp.float32) * s,
        w=jax.random.normal(ks[6], (H, dh), jnp.float32) * s,
    )


def init_params(key, D, H, FF):
    ks = jax.random.split(key, 5)
    s = 0.02
    return dict(
        ln1_g=jnp.ones((1, D), jnp.float32),
        ln1_b=jnp.zeros((1, D), jnp.float32),
        ln2_g=jnp.ones((1, D), jnp.float32),
        ln2_b=jnp.zeros((1, D), jnp.float32),
        attn_hh=init_attn_params(ks[0], D, H),
        attn_hl=init_attn_params(ks[1], D, H),
        h_ffn=dict(
            W1=jax.random.normal(ks[2], (D, FF), jnp.float32) * s,
            b1=jnp.zeros((1, FF), jnp.float32),
            W2=jax.random.normal(ks[3], (FF, D), jnp.float32) * s,
            b2=jnp.zeros((1, D), jnp.float32),
        ),
        # l_ffn would mirror h_ffn but is unused in forward.
    )


# ---------------------------------------------------------------------------
# Pure-JAX f32 reference (for correctness check)
# ---------------------------------------------------------------------------
def _ref_ln(x, g, b, eps=1e-12):
    mean = x.mean(-1, keepdims=True)
    var = ((x - mean) ** 2).mean(-1, keepdims=True)
    return (x - mean) / jnp.sqrt(var + eps) * g + b


def _ref_attn(xq, xkv, mask, pos, p, H):
    B, S, D = xq.shape
    dh = D // H
    q = (xq.reshape(-1, D) @ p["Wq"]).reshape(B, S, H, dh).transpose(0, 2, 1, 3)
    k = (xkv.reshape(-1, D) @ p["Wk"]).reshape(B, S, H, dh).transpose(0, 2, 1, 3)
    v = (xkv.reshape(-1, D) @ p["Wv"]).reshape(B, S, H, dh).transpose(0, 2, 1, 3)
    ph = (pos @ p["Wp"]).reshape(-1, H, dh).transpose(1, 0, 2)
    rel_idx = (jnp.arange(S)[None, :] - jnp.arange(S)[:, None]) + (S - 1)
    p_rel = ph[:, rel_idx, :]                                    # [H,S,S,dh]
    ac = jnp.einsum("bhid,bhjd->bhij", q + p["u"][None, :, None, :], k)
    bd = jnp.einsum("bhid,hijd->bhij", q + p["w"][None, :, None, :], p_rel)
    scores = (ac + bd) / math.sqrt(dh)
    scores = jnp.where(mask[:, None, None, :] > 0.5, scores, -1e30)
    attn = jax.nn.softmax(scores, axis=-1)
    out = jnp.einsum("bhij,bhjd->bhid", attn, v)
    out = out.transpose(0, 2, 1, 3).reshape(B * S, D) @ p["Wo"] + p["bo"]
    return out.reshape(B, S, D)


def _ref_layer(h, l, mask, pos, params, H, after_norm=True):
    if not after_norm:
        h = _ref_ln(h, params["ln1_g"], params["ln1_b"])
    res_h = h
    a_hh = _ref_attn(h, h, mask, pos, params["attn_hh"], H)
    a_hl = _ref_attn(h, l, mask, pos, params["attn_hl"], H)
    hh = a_hh + res_h
    if after_norm:
        hh = _ref_ln(hh, params["ln1_g"], params["ln1_b"])
    else:
        hh = _ref_ln(hh, params["ln2_g"], params["ln2_b"])
    res_hh = hh
    fp = params["h_ffn"]
    ff = jnp.maximum(hh.reshape(-1, hh.shape[-1]) @ fp["W1"] + fp["b1"], 0.0)
    ff = (ff @ fp["W2"] + fp["b2"]).reshape(hh.shape)
    hh = res_hh + ff
    if after_norm:
        hh = _ref_ln(hh, params["ln2_g"], params["ln2_b"])
    return hh, a_hl


# ---------------------------------------------------------------------------
if __name__ == "__main__":
    B, S, D, H, FF = 2, 8, 32, 4, 64
    key = jax.random.PRNGKey(0)
    k_h, k_l, k_p, k_param = jax.random.split(key, 4)

    h = jax.random.normal(k_h, (B, S, D), jnp.float32)
    l = jax.random.normal(k_l, (B, S, D), jnp.float32)
    pos_embed = jax.random.normal(k_p, (2 * S - 1, D), jnp.float32)
    mask = jnp.ones((B, S), jnp.float32).at[1, -2:].set(0.0)  # pad last 2 keys of batch 1

    params = init_params(k_param, D, H, FF)

    layer = jax.jit(functools.partial(two_stream_rel_transformer_layer,
                                      n_heads=H, after_norm=True))
    hh, hl = layer(h, l, mask, pos_embed, params)
    jax.block_until_ready((hh, hl))

    hh_ref, hl_ref = _ref_layer(h, l, mask, pos_embed, params, H, after_norm=True)
    assert hh.shape == (B, S, D) and hl.shape == (B, S, D)
    # bf16 MXU inputs + approx reciprocal vs f32 reference -> ~1e-3 level error.
    assert jnp.allclose(hh, hh_ref, atol=1e-2, rtol=1e-2), \
        float(jnp.max(jnp.abs(hh - hh_ref)))
    assert jnp.allclose(hl, hl_ref, atol=1e-2, rtol=1e-2), \
        float(jnp.max(jnp.abs(hl - hl_ref)))

    print("KERNEL_OK")
</pallas_src>

<mosaic_0001>
module attributes {stable_mosaic.version = 11 : i64} {
  func.func @_linear_kernel(%arg0: i32, %arg1: i32, %arg2: memref<16x32xf32, #tpu.memory_space<vmem>>, %arg3: memref<32x64xf32, #tpu.memory_space<vmem>>, %arg4: memref<1x64xf32, #tpu.memory_space<vmem>>, %arg5: memref<16x64xf32, #tpu.memory_space<vmem>>, %arg6: memref<16x64xf32, #tpu.memory_space<vmem>>) attributes {dimension_semantics = [#tpu.dimension_semantics<parallel>, #tpu.dimension_semantics<arbitrary>], iteration_bounds = array<i64: 1, 1>, scalar_prefetch = 0 : i64, scratch_operands = 1 : i64, tpu.core_type = #tpu.core_type<tc>, window_params = [{transform_indices = @transform_0, window_bounds = array<i64: 16, 32>}, {transform_indices = @transform_1, window_bounds = array<i64: 32, 64>}, {pipeline_mode = #tpu.pipeline_mode<synchronous>, transform_indices = @transform_2, window_bounds = array<i64: 1, 64>}, {transform_indices = @transform_3, window_bounds = array<i64: 16, 64>}]} {
    %c0_i32 = arith.constant 0 : i32
    %0 = arith.cmpi eq, %arg1, %c0_i32 : i32
    %1 = arith.extui %0 : i1 to i32
    %c0_i32_0 = arith.constant 0 : i32
    %2 = arith.cmpi ne, %1, %c0_i32_0 : i32
    scf.if %2 {
      %cst_10 = arith.constant 0.000000e+00 : f32
      %14 = vector.broadcast %cst_10 : f32 to vector<16x64xf32>
      %c0_11 = arith.constant 0 : index
      %c0_12 = arith.constant 0 : index
      %15 = vector.load %arg6[%c0_11, %c0_12] : memref<16x64xf32, #tpu.memory_space<vmem>>, vector<16x64xf32>
      tpu.vector_store %arg6[%c0_11, %c0_12], %14 {strides = array<i32>} : memref<16x64xf32, #tpu.memory_space<vmem>>, vector<16x64xf32>,
    } else {
    }
    %c0 = arith.constant 0 : index
    %c0_1 = arith.constant 0 : index
    %3 = vector.load %arg6[%c0, %c0_1] : memref<16x64xf32, #tpu.memory_space<vmem>>, vector<16x64xf32>
    %c0_2 = arith.constant 0 : index
    %c0_3 = arith.constant 0 : index
    %4 = vector.load %arg2[%c0_2, %c0_3] : memref<16x32xf32, #tpu.memory_space<vmem>>, vector<16x32xf32>
    %5 = arith.truncf %4 : vector<16x32xf32> to vector<16x32xbf16>
    %c0_4 = arith.constant 0 : index
    %c0_5 = arith.constant 0 : index
    %6 = vector.load %arg3[%c0_4, %c0_5] : memref<32x64xf32, #tpu.memory_space<vmem>>, vector<32x64xf32>
    %7 = arith.truncf %6 : vector<32x64xf32> to vector<32x64xbf16>
    %cst = arith.constant dense<0.000000e+00> : vector<16x64xf32>
    %8 = tpu.matmul %5, %7, %cst {dimension_numbers = #tpu.dot_dimension_numbers<[1], [0], [0], [1], [0, 0, 1, 1], [], []>} : vector<16x32xbf16>, vector<32x64xbf16>, vector<16x64xf32> -> vector<16x64xf32>
    %9 = arith.addf %3, %8 : vector<16x64xf32>
    %c0_6 = arith.constant 0 : index
    %c0_7 = arith.constant 0 : index
    %10 = vector.load %arg6[%c0_6, %c0_7] : memref<16x64xf32, #tpu.memory_space<vmem>>, vector<16x64xf32>
    tpu.vector_store %arg6[%c0_6, %c0_7], %9 {strides = array<i32>} : memref<16x64xf32, #tpu.memory_space<vmem>>, vector<16x64xf32>,
    %c0_i32_8 = arith.constant 0 : i32
    %11 = arith.cmpi eq, %arg1, %c0_i32_8 : i32
    %12 = arith.extui %11 : i1 to i32
    %c0_i32_9 = arith.constant 0 : i32
    %13 = arith.cmpi ne, %12, %c0_i32_9 : i32
    scf.if %13 {
      %c0_10 = arith.constant 0 : index
      %c0_11 = arith.constant 0 : index
      %14 = vector.load %arg6[%c0_10, %c0_11] : memref<16x64xf32, #tpu.memory_space<vmem>>, vector<16x64xf32>
      %c0_12 = arith.constant 0 : index
      %c0_13 = arith.constant 0 : index
      %15 = vector.load %arg4[%c0_12, %c0_13] : memref<1x64xf32, #tpu.memory_space<vmem>>, vector<1x64xf32>
      %16 = vector.broadcast %15 : vector<1x64xf32> to vector<16x64xf32>
      %17 = arith.addf %14, %16 : vector<16x64xf32>
      %c0_14 = arith.constant 0 : index
      %c0_15 = arith.constant 0 : index
      %18 = vector.load %arg5[%c0_14, %c0_15] : memref<16x64xf32, #tpu.memory_space<vmem>>, vector<16x64xf32>
      tpu.vector_store %arg5[%c0_14, %c0_15], %17 {strides = array<i32>} : memref<16x64xf32, #tpu.memory_space<vmem>>, vector<16x64xf32>,
    } else {
    }
    return
  }
  func.func @transform_0(%arg0: i32, %arg1: i32) -> (i32, i32) {
    %c0_i32 = arith.constant 0 : i32
    return %arg0, %arg1 : i32, i32
  }
  func.func @transform_1(%arg0: i32, %arg1: i32) -> (i32, i32) {
    %c0_i32 = arith.constant 0 : i32
    %c0_i32_0 = arith.constant 0 : i32
    return %arg1, %c0_i32 : i32, i32
  }
  func.func @transform_2(%arg0: i32, %arg1: i32) -> (i32, i32) {
    %c0_i32 = arith.constant 0 : i32
    %c0_i32_0 = arith.constant 0 : i32
    %c0_i32_1 = arith.constant 0 : i32
    return %c0_i32, %c0_i32_0 : i32, i32
  }
  func.func @transform_3(%arg0: i32, %arg1: i32) -> (i32, i32) {
    %c0_i32 = arith.constant 0 : i32
    %c0_i32_0 = arith.constant 0 : i32
    return %arg0, %c0_i32 : i32, i32
  }
}

module attributes {stable_mosaic.version = 11 : i64} {
  func.func @_linear_kernel(%arg0: i32, %arg1: i32, %arg2: memref<15x32xf32, #tpu.memory_space<vmem>>, %arg3: memref<32x64xf32, #tpu.memory_space<vmem>>, %arg4: memref<1x64xf32, #tpu.memory_space<vmem>>, %arg5: memref<15x64xf32, #tpu.memory_space<vmem>>, %arg6: memref<15x64xf32, #tpu.memory_space<vmem>>) attributes {dimension_semantics = [#tpu.dimension_semantics<parallel>, #tpu.dimension_semantics<arbitrary>], iteration_bounds = array<i64: 1, 1>, scalar_prefetch = 0 : i64, scratch_operands = 1 : i64, tpu.core_type = #tpu.core_type<tc>, window_params = [{transform_indices = @transform_0, window_bounds = array<i64: 15, 32>}, {transform_indices = @transform_1, window_bounds = array<i64: 32, 64>}, {pipeline_mode = #tpu.pipeline_mode<synchronous>, transform_indices = @transform_2, window_bounds = array<i64: 1, 64>}, {transform_indices = @transform_3, window_bounds = array<i64: 15, 64>}]} {
    %c0_i32 = arith.constant 0 : i32
    %0 = arith.cmpi eq, %arg1, %c0_i32 : i32
    %1 = arith.extui %0 : i1 to i32
    %c0_i32_0 = arith.constant 0 : i32
    %2 = arith.cmpi ne, %1, %c0_i32_0 : i32
    scf.if %2 {
      %cst_10 = arith.constant 0.000000e+00 : f32
      %14 = vector.broadcast %cst_10 : f32 to vector<15x64xf32>
      %c0_11 = arith.constant 0 : index
      %c0_12 = arith.constant 0 : index
      %15 = vector.load %arg6[%c0_11, %c0_12] : memref<15x64xf32, #tpu.memory_space<vmem>>, vector<15x64xf32>
      tpu.vector_store %arg6[%c0_11, %c0_12], %14 {strides = array<i32>} : memref<15x64xf32, #tpu.memory_space<vmem>>, vector<15x64xf32>,
    } else {
    }
    %c0 = arith.constant 0 : index
    %c0_1 = arith.constant 0 : index
    %3 = vector.load %arg6[%c0, %c0_1] : memref<15x64xf32, #tpu.memory_space<vmem>>, vector<15x64xf32>
    %c0_2 = arith.constant 0 : index
    %c0_3 = arith.constant 0 : index
    %4 = vector.load %arg2[%c0_2, %c0_3] : memref<15x32xf32, #tpu.memory_space<vmem>>, vector<15x32xf32>
    %5 = arith.truncf %4 : vector<15x32xf32> to vector<15x32xbf16>
    %c0_4 = arith.constant 0 : index
    %c0_5 = arith.constant 0 : index
    %6 = vector.load %arg3[%c0_4, %c0_5] : memref<32x64xf32, #tpu.memory_space<vmem>>, vector<32x64xf32>
    %7 = arith.truncf %6 : vector<32x64xf32> to vector<32x64xbf16>
    %cst = arith.constant dense<0.000000e+00> : vector<15x64xf32>
    %8 = tpu.matmul %5, %7, %cst {dimension_numbers = #tpu.dot_dimension_numbers<[1], [0], [0], [1], [0, 0, 1, 1], [], []>} : vector<15x32xbf16>, vector<32x64xbf16>, vector<15x64xf32> -> vector<15x64xf32>
    %9 = arith.addf %3, %8 : vector<15x64xf32>
    %c0_6 = arith.constant 0 : index
    %c0_7 = arith.constant 0 : index
    %10 = vector.load %arg6[%c0_6, %c0_7] : memref<15x64xf32, #tpu.memory_space<vmem>>, vector<15x64xf32>
    tpu.vector_store %arg6[%c0_6, %c0_7], %9 {strides = array<i32>} : memref<15x64xf32, #tpu.memory_space<vmem>>, vector<15x64xf32>,
    %c0_i32_8 = arith.constant 0 : i32
    %11 = arith.cmpi eq, %arg1, %c0_i32_8 : i32
    %12 = arith.extui %11 : i1 to i32
    %c0_i32_9 = arith.constant 0 : i32
    %13 = arith.cmpi ne, %12, %c0_i32_9 : i32
    scf.if %13 {
      %c0_10 = arith.constant 0 : index
      %c0_11 = arith.constant 0 : index
      %14 = vector.load %arg6[%c0_10, %c0_11] : memref<15x64xf32, #tpu.memory_space<vmem>>, vector<15x64xf32>
      %c0_12 = arith.constant 0 : index
      %c0_13 = arith.constant 0 : index
      %15 = vector.load %arg4[%c0_12, %c0_13] : memref<1x64xf32, #tpu.memory_space<vmem>>, vector<1x64xf32>
      %16 = vector.broadcast %15 : vector<1x64xf32> to vector<15x64xf32>
      %17 = arith.addf %14, %16 : vector<15x64xf32>
      %c0_14 = arith.constant 0 : index
      %c0_15 = arith.constant 0 : index
      %18 = vector.load %arg5[%c0_14, %c0_15] : memref<15x64xf32, #tpu.memory_space<vmem>>, vector<15x64xf32>
      tpu.vector_store %arg5[%c0_14, %c0_15], %17 {strides = array<i32>} : memref<15x64xf32, #tpu.memory_space<vmem>>, vector<15x64xf32>,
    } else {
    }
    return
  }
  func.func @transform_0(%arg0: i32, %arg1: i32) -> (i32, i32) {
    %c0_i32 = arith.constant 0 : i32
    return %arg0, %arg1 : i32, i32
  }
  func.func @transform_1(%arg0: i32, %arg1: i32) -> (i32, i32) {
    %c0_i32 = arith.constant 0 : i32
    %c0_i32_0 = arith.constant 0 : i32
    return %arg1, %c0_i32 : i32, i32
  }
  func.func @transform_2(%arg0: i32, %arg1: i32) -> (i32, i32) {
    %c0_i32 = arith.constant 0 : i32
    %c0_i32_0 = arith.constant 0 : i32
    %c0_i32_1 = arith.constant 0 : i32
    return %c0_i32, %c0_i32_0 : i32, i32
  }
  func.func @transform_3(%arg0: i32, %arg1: i32) -> (i32, i32) {
    %c0_i32 = arith.constant 0 : i32
    %c0_i32_0 = arith.constant 0 : i32
    return %arg0, %c0_i32 : i32, i32
  }
}

module attributes {stable_mosaic.version = 11 : i64} {
  func.func @_two_stream_attn_kernel(%arg0: i32, %arg1: i32, %arg2: memref<1x1x8x32xf32, #tpu.memory_space<vmem>>, %arg3: memref<1x1x8x32xf32, #tpu.memory_space<vmem>>, %arg4: memref<1x1x8x32xf32, #tpu.memory_space<vmem>>, %arg5: memref<1x128x32xf32, #tpu.memory_space<vmem>>, %arg6: memref<1x4x8xf32, #tpu.memory_space<vmem>>, %arg7: memref<1x4x8xf32, #tpu.memory_space<vmem>>, %arg8: memref<1x1x8xf32, #tpu.memory_space<vmem>>, %arg9: memref<1x32x32xf32, #tpu.memory_space<vmem>>, %arg10: memref<1x1x32xf32, #tpu.memory_space<vmem>>, %arg11: memref<1x1x8x32xf32, #tpu.memory_space<vmem>>) attributes {dimension_semantics = [#tpu.dimension_semantics<parallel>, #tpu.dimension_semantics<parallel>], iteration_bounds = array<i64: 2, 2>, scalar_prefetch = 0 : i64, scratch_operands = 0 : i64, tpu.core_type = #tpu.core_type<tc>, window_params = [{transform_indices = @transform_0, window_bounds = array<i64: 1, 1, 8, 32>}, {transform_indices = @transform_1, window_bounds = array<i64: 1, 1, 8, 32>}, {transform_indices = @transform_2, window_bounds = array<i64: 1, 1, 8, 32>}, {transform_indices = @transform_3, window_bounds = array<i64: 1, 128, 32>}, {transform_indices = @transform_4, window_bounds = array<i64: 1, 4, 8>}, {transform_indices = @transform_5, window_bounds = array<i64: 1, 4, 8>}, {transform_indices = @transform_6, window_bounds = array<i64: 1, 1, 8>}, {transform_indices = @transform_7, window_bounds = array<i64: 1, 32, 32>}, {transform_indices = @transform_8, window_bounds = array<i64: 1, 1, 32>}, {transform_indices = @transform_9, window_bounds = array<i64: 1, 1, 8, 32>}]} {
    %c0 = arith.constant 0 : index
    %c0_0 = arith.constant 0 : index
    %c0_1 = arith.constant 0 : index
    %c0_2 = arith.constant 0 : index
    %0 = vector.load %arg2[%c0, %c0_0, %c0_1, %c0_2] : memref<1x1x8x32xf32, #tpu.memory_space<vmem>>, vector<1x1x8x32xf32>
    %1 = vector.shape_cast %0 : vector<1x1x8x32xf32> to vector<8x32xf32>
    %c0_3 = arith.constant 0 : index
    %c0_4 = arith.constant 0 : index
    %c0_5 = arith.constant 0 : index
    %c0_6 = arith.constant 0 : index
    %2 = vector.load %arg3[%c0_3, %c0_4, %c0_5, %c0_6] : memref<1x1x8x32xf32, #tpu.memory_space<vmem>>, vector<1x1x8x32xf32>
    %3 = vector.shape_cast %2 : vector<1x1x8x32xf32> to vector<8x32xf32>
    %c0_7 = arith.constant 0 : index
    %c0_8 = arith.constant 0 : index
    %c0_9 = arith.constant 0 : index
    %c0_10 = arith.constant 0 : index
    %4 = vector.load %arg4[%c0_7, %c0_8, %c0_9, %c0_10] : memref<1x1x8x32xf32, #tpu.memory_space<vmem>>, vector<1x1x8x32xf32>
    %5 = vector.shape_cast %4 : vector<1x1x8x32xf32> to vector<8x32xf32>
    %c0_11 = arith.constant 0 : index
    %c0_12 = arith.constant 0 : index
    %c0_13 = arith.constant 0 : index
    %6 = vector.load %arg5[%c0_11, %c0_12, %c0_13] : memref<1x128x32xf32, #tpu.memory_space<vmem>>, vector<1x128x32xf32>
    %7 = vector.shape_cast %6 : vector<1x128x32xf32> to vector<128x32xf32>
    %c0_14 = arith.constant 0 : index
    %c0_15 = arith.constant 0 : index
    %c0_16 = arith.constant 0 : index
    %8 = vector.load %arg6[%c0_14, %c0_15, %c0_16] : memref<1x4x8xf32, #tpu.memory_space<vmem>>, vector<1x4x8xf32>
    %9 = vector.shape_cast %8 : vector<1x4x8xf32> to vector<4x8xf32>
    %c0_17 = arith.constant 0 : index
    %c0_18 = arith.constant 0 : index
    %c0_19 = arith.constant 0 : index
    %10 = vector.load %arg7[%c0_17, %c0_18, %c0_19] : memref<1x4x8xf32, #tpu.memory_space<vmem>>, vector<1x4x8xf32>
    %11 = vector.shape_cast %10 : vector<1x4x8xf32> to vector<4x8xf32>
    %c0_20 = arith.constant 0 : index
    %c0_21 = arith.constant 0 : index
    %c0_22 = arith.constant 0 : index
    %12 = vector.load %arg8[%c0_20, %c0_21, %c0_22] : memref<1x1x8xf32, #tpu.memory_space<vmem>>, vector<1x1x8xf32>
    %13 = vector.shape_cast %12 : vector<1x1x8xf32> to vector<1x8xf32>
    %c0_23 = arith.constant 0 : index
    %c0_24 = arith.constant 0 : index
    %c0_25 = arith.constant 0 : index
    %14 = vector.load %arg9[%c0_23, %c0_24, %c0_25] : memref<1x32x32xf32, #tpu.memory_space<vmem>>, vector<1x32x32xf32>
    %15 = vector.shape_cast %14 : vector<1x32x32xf32> to vector<32x32xf32>
    %c0_26 = arith.constant 0 : index
    %c0_27 = arith.constant 0 : index
    %c0_28 = arith.constant 0 : index
    %16 = vector.load %arg10[%c0_26, %c0_27, %c0_28] : memref<1x1x32xf32, #tpu.memory_space<vmem>>, vector<1x1x32xf32>
    %17 = vector.shape_cast %16 : vector<1x1x32xf32> to vector<1x32xf32>
    %18 = vector.shape_cast %17 : vector<1x32xf32> to vector<1x32xf32>
    %19 = vector.broadcast %18 : vector<1x32xf32> to vector<8x32xf32>
    %20 = vector.extract_strided_slice %1 {offsets = [0, 0], sizes = [8, 8], strides = [1, 1]} : vector<8x32xf32> to vector<8x8xf32>
    %21 = vector.extract_strided_slice %3 {offsets = [0, 0], sizes = [8, 8], strides = [1, 1]} : vector<8x32xf32> to vector<8x8xf32>
    %22 = arith.truncf %21 : vector<8x8xf32> to vector<8x8xbf16>
    %23 = vector.extract_strided_slice %5 {offsets = [0, 0], sizes = [8, 8], strides = [1, 1]} : vector<8x32xf32> to vector<8x8xf32>
    %24 = arith.truncf %23 : vector<8x8xf32> to vector<8x8xbf16>
    %25 = vector.extract_strided_slice %7 {offsets = [0, 0], sizes = [128, 8], strides = [1, 1]} : vector<128x32xf32> to vector<128x8xf32>
    %26 = arith.truncf %25 : vector<128x8xf32> to vector<128x8xbf16>
    %27 = vector.extract_strided_slice %9 {offsets = [0, 0], sizes = [1, 8], strides = [1, 1]} : vector<4x8xf32> to vector<1x8xf32>
    %28 = vector.extract_strided_slice %11 {offsets = [0, 0], sizes = [1, 8], strides = [1, 1]} : vector<4x8xf32> to vector<1x8xf32>
    %29 = vector.broadcast %27 : vector<1x8xf32> to vector<8x8xf32>
    %30 = arith.addf %20, %29 : vector<8x8xf32>
    %31 = arith.truncf %30 : vector<8x8xf32> to vector<8x8xbf16>
    %32 = vector.broadcast %28 : vector<1x8xf32> to vector<8x8xf32>
    %33 = arith.addf %20, %32 : vector<8x8xf32>
    %34 = arith.truncf %33 : vector<8x8xf32> to vector<8x8xbf16>
    %cst = arith.constant dense<0.000000e+00> : vector<8x8xf32>
    %35 = tpu.matmul %31, %22, %cst {dimension_numbers = #tpu.dot_dimension_numbers<[1], [1], [0], [0], [0, 0, 1, 0], [], []>} : vector<8x8xbf16>, vector<8x8xbf16>, vector<8x8xf32> -> vector<8x8xf32>
    %cst_29 = arith.constant dense<0.000000e+00> : vector<8x128xf32>
    %36 = tpu.matmul %34, %26, %cst_29 {dimension_numbers = #tpu.dot_dimension_numbers<[1], [1], [0], [0], [0, 0, 1, 0], [], []>} : vector<8x8xbf16>, vector<128x8xbf16>, vector<8x128xf32> -> vector<8x128xf32>
    %c120_i32 = arith.constant 120 : i32
    %37 = tpu.dynamic_rotate %36 by %c120_i32 dim 1 {stride = 1 : si32, stride_dimension = 0 : si32} : vector<8x128xf32>, i32 -> vector<8x128xf32>
    %38 = vector.extract_strided_slice %37 {offsets = [0, 0], sizes = [8, 8], strides = [1, 1]} : vector<8x128xf32> to vector<8x8xf32>
    %39 = arith.addf %35, %38 : vector<8x8xf32>
    %cst_30 = arith.constant 0.353553385 : f32
    %40 = vector.broadcast %cst_30 : f32 to vector<8x8xf32>
    %41 = arith.mulf %39, %40 : vector<8x8xf32>
    %cst_31 = arith.constant 5.000000e-01 : f32
    %42 = vector.broadcast %cst_31 : f32 to vector<1x8xf32>
    %43 = arith.cmpf ogt, %13, %42 : vector<1x8xf32>
    %cst_32 = arith.constant -1.000000e+30 : f32
    %44 = vector.shape_cast %43 : vector<1x8xi1> to vector<1x8xi1>
    %45 = vector.broadcast %44 : vector<1x8xi1> to vector<8x8xi1>
    %46 = vector.broadcast %cst_32 : f32 to vector<8x8xf32>
    %47 = arith.select %45, %41, %46 : vector<8x8xi1>, vector<8x8xf32>
    %cst_33 = arith.constant dense<0xFF800000> : vector<8xf32>
    %48 = vector.multi_reduction <maximumf>, %47, %cst_33 [1] : vector<8x8xf32> to vector<8xf32>
    %49 = vector.shape_cast %48 : vector<8xf32> to vector<8x1xf32>
    %50 = vector.broadcast %49 : vector<8x1xf32> to vector<8x8xf32>
    %51 = arith.subf %47, %50 : vector<8x8xf32>
    %52 = math.exp %51 : vector<8x8xf32>
    %cst_34 = arith.constant dense<0.000000e+00> : vector<8xf32>
    %53 = vector.multi_reduction <add>, %52, %cst_34 [1] : vector<8x8xf32> to vector<8xf32>
    %54 = vector.shape_cast %53 : vector<8xf32> to vector<8x1xf32>
    %55 = tpu.reciprocal %54 {approx = true} : vector<8x1xf32> -> vector<8x1xf32>
    %56 = vector.broadcast %55 : vector<8x1xf32> to vector<8x8xf32>
    %57 = arith.mulf %52, %56 : vector<8x8xf32>
    %58 = arith.truncf %57 : vector<8x8xf32> to vector<8x8xbf16>
    %cst_35 = arith.constant dense<0.000000e+00> : vector<8x8xf32>
    %59 = tpu.matmul %58, %24, %cst_35 {dimension_numbers = #tpu.dot_dimension_numbers<[1], [0], [0], [1], [0, 0, 1, 1], [], []>} : vector<8x8xbf16>, vector<8x8xbf16>, vector<8x8xf32> -> vector<8x8xf32>
    %60 = vector.extract_strided_slice %15 {offsets = [0, 0], sizes = [8, 32], strides = [1, 1]} : vector<32x32xf32> to vector<8x32xf32>
    %61 = arith.truncf %60 : vector<8x32xf32> to vector<8x32xbf16>
    %62 = arith.truncf %59 : vector<8x8xf32> to vector<8x8xbf16>
    %cst_36 = arith.constant dense<0.000000e+00> : vector<8x32xf32>
    %63 = tpu.matmul %62, %61, %cst_36 {dimension_numbers = #tpu.dot_dimension_numbers<[1], [0], [0], [1], [0, 0, 1, 1], [], []>} : vector<8x8xbf16>, vector<8x32xbf16>, vector<8x32xf32> -> vector<8x32xf32>
    %64 = arith.addf %19, %63 : vector<8x32xf32>
    %65 = vector.extract_strided_slice %1 {offsets = [0, 8], sizes = [8, 8], strides = [1, 1]} : vector<8x32xf32> to vector<8x8xf32>
    %66 = vector.extract_strided_slice %3 {offsets = [0, 8], sizes = [8, 8], strides = [1, 1]} : vector<8x32xf32> to vector<8x8xf32>
    %67 = arith.truncf %66 : vector<8x8xf32> to vector<8x8xbf16>
    %68 = vector.extract_strided_slice %5 {offsets = [0, 8], sizes = [8, 8], strides = [1, 1]} : vector<8x32xf32> to vector<8x8xf32>
    %69 = arith.truncf %68 : vector<8x8xf32> to vector<8x8xbf16>
    %70 = vector.extract_strided_slice %7 {offsets = [0, 8], sizes = [128, 8], strides = [1, 1]} : vector<128x32xf32> to vector<128x8xf32>
    %71 = arith.truncf %70 : vector<128x8xf32> to vector<128x8xbf16>
    %72 = vector.extract_strided_slice %9 {offsets = [1, 0], sizes = [1, 8], strides = [1, 1]} : vector<4x8xf32> to vector<1x8xf32>
    %73 = vector.extract_strided_slice %11 {offsets = [1, 0], sizes = [1, 8], strides = [1, 1]} : vector<4x8xf32> to vector<1x8xf32>
    %74 = vector.broadcast %72 : vector<1x8xf32> to vector<8x8xf32>
    %75 = arith.addf %65, %74 : vector<8x8xf32>
    %76 = arith.truncf %75 : vector<8x8xf32> to vector<8x8xbf16>
    %77 = vector.broadcast %73 : vector<1x8xf32> to vector<8x8xf32>
    %78 = arith.addf %65, %77 : vector<8x8xf32>
    %79 = arith.truncf %78 : vector<8x8xf32> to vector<8x8xbf16>
    %cst_37 = arith.constant dense<0.000000e+00> : vector<8x8xf32>
    %80 = tpu.matmul %76, %67, %cst_37 {dimension_numbers = #tpu.dot_dimension_numbers<[1], [1], [0], [0], [0, 0, 1, 0], [], []>} : vector<8x8xbf16>, vector<8x8xbf16>, vector<8x8xf32> -> vector<8x8xf32>
    %cst_38 = arith.constant dense<0.000000e+00> : vector<8x128xf32>
    %81 = tpu.matmul %79, %71, %cst_38 {dimension_numbers = #tpu.dot_dimension_numbers<[1], [1], [0], [0], [0, 0, 1, 0], [], []>} : vector<8x8xbf16>, vector<128x8xbf16>, vector<8x128xf32> -> vector<8x128xf32>
    %c120_i32_39 = arith.constant 120 : i32
    %82 = tpu.dynamic_rotate %81 by %c120_i32_39 dim 1 {stride = 1 : si32, stride_dimension = 0 : si32} : vector<8x128xf32>, i32 -> vector<8x128xf32>
    %83 = vector.extract_strided_slice %82 {offsets = [0, 0], sizes = [8, 8], strides = [1, 1]} : vector<8x128xf32> to vector<8x8xf32>
    %84 = arith.addf %80, %83 : vector<8x8xf32>
    %cst_40 = arith.constant 0.353553385 : f32
    %85 = vector.broadcast %cst_40 : f32 to vector<8x8xf32>
    %86 = arith.mulf %84, %85 : vector<8x8xf32>
    %cst_41 = arith.constant 5.000000e-01 : f32
    %87 = vector.broadcast %cst_41 : f32 to vector<1x8xf32>
    %88 = arith.cmpf ogt, %13, %87 : vector<1x8xf32>
    %cst_42 = arith.constant -1.000000e+30 : f32
    %89 = vector.shape_cast %88 : vector<1x8xi1> to vector<1x8xi1>
    %90 = vector.broadcast %89 : vector<1x8xi1> to vector<8x8xi1>
    %91 = vector.broadcast %cst_42 : f32 to vector<8x8xf32>
    %92 = arith.select %90, %86, %91 : vector<8x8xi1>, vector<8x8xf32>
    %cst_43 = arith.constant dense<0xFF800000> : vector<8xf32>
    %93 = vector.multi_reduction <maximumf>, %92, %cst_43 [1] : vector<8x8xf32> to vector<8xf32>
    %94 = vector.shape_cast %93 : vector<8xf32> to vector<8x1xf32>
    %95 = vector.broadcast %94 : vector<8x1xf32> to vector<8x8xf32>
    %96 = arith.subf %92, %95 : vector<8x8xf32>
    %97 = math.exp %96 : vector<8x8xf32>
    %cst_44 = arith.constant dense<0.000000e+00> : vector<8xf32>
    %98 = vector.multi_reduction <add>, %97, %cst_44 [1] : vector<8x8xf32> to vector<8xf32>
    %99 = vector.shape_cast %98 : vector<8xf32> to vector<8x1xf32>
    %100 = tpu.reciprocal %99 {approx = true} : vector<8x1xf32> -> vector<8x1xf32>
    %101 = vector.broadcast %100 : vector<8x1xf32> to vector<8x8xf32>
    %102 = arith.mulf %97, %101 : vector<8x8xf32>
    %103 = arith.truncf %102 : vector<8x8xf32> to vector<8x8xbf16>
    %cst_45 = arith.constant dense<0.000000e+00> : vector<8x8xf32>
    %104 = tpu.matmul %103, %69, %cst_45 {dimension_numbers = #tpu.dot_dimension_numbers<[1], [0], [0], [1], [0, 0, 1, 1], [], []>} : vector<8x8xbf16>, vector<8x8xbf16>, vector<8x8xf32> -> vector<8x8xf32>
    %105 = vector.extract_strided_slice %15 {offsets = [8, 0], sizes = [8, 32], strides = [1, 1]} : vector<32x32xf32> to vector<8x32xf32>
    %106 = arith.truncf %105 : vector<8x32xf32> to vector<8x32xbf16>
    %107 = arith.truncf %104 : vector<8x8xf32> to vector<8x8xbf16>
    %cst_46 = arith.constant dense<0.000000e+00> : vector<8x32xf32>
    %108 = tpu.matmul %107, %106, %cst_46 {dimension_numbers = #tpu.dot_dimension_numbers<[1], [0], [0], [1], [0, 0, 1, 1], [], []>} : vector<8x8xbf16>, vector<8x32xbf16>, vector<8x32xf32> -> vector<8x32xf32>
    %109 = arith.addf %64, %108 : vector<8x32xf32>
    %110 = vector.extract_strided_slice %1 {offsets = [0, 16], sizes = [8, 8], strides = [1, 1]} : vector<8x32xf32> to vector<8x8xf32>
    %111 = vector.extract_strided_slice %3 {offsets = [0, 16], sizes = [8, 8], strides = [1, 1]} : vector<8x32xf32> to vector<8x8xf32>
    %112 = arith.truncf %111 : vector<8x8xf32> to vector<8x8xbf16>
    %113 = vector.extract_strided_slice %5 {offsets = [0, 16], sizes = [8, 8], strides = [1, 1]} : vector<8x32xf32> to vector<8x8xf32>
    %114 = arith.truncf %113 : vector<8x8xf32> to vector<8x8xbf16>
    %115 = vector.extract_strided_slice %7 {offsets = [0, 16], sizes = [128, 8], strides = [1, 1]} : vector<128x32xf32> to vector<128x8xf32>
    %116 = arith.truncf %115 : vector<128x8xf32> to vector<128x8xbf16>
    %117 = vector.extract_strided_slice %9 {offsets = [2, 0], sizes = [1, 8], strides = [1, 1]} : vector<4x8xf32> to vector<1x8xf32>
    %118 = vector.extract_strided_slice %11 {offsets = [2, 0], sizes = [1, 8], strides = [1, 1]} : vector<4x8xf32> to vector<1x8xf32>
    %119 = vector.broadcast %117 : vector<1x8xf32> to vector<8x8xf32>
    %120 = arith.addf %110, %119 : vector<8x8xf32>
    %121 = arith.truncf %120 : vector<8x8xf32> to vector<8x8xbf16>
    %122 = vector.broadcast %118 : vector<1x8xf32> to vector<8x8xf32>
    %123 = arith.addf %110, %122 : vector<8x8xf32>
    %124 = arith.truncf %123 : vector<8x8xf32> to vector<8x8xbf16>
    %cst_47 = arith.constant dense<0.000000e+00> : vector<8x8xf32>
    %125 = tpu.matmul %121, %112, %cst_47 {dimension_numbers = #tpu.dot_dimension_numbers<[1], [1], [0], [0], [0, 0, 1, 0], [], []>} : vector<8x8xbf16>, vector<8x8xbf16>, vector<8x8xf32> -> vector<8x8xf32>
    %cst_48 = arith.constant dense<0.000000e+00> : vector<8x128xf32>
    %126 = tpu.matmul %124, %116, %cst_48 {dimension_numbers = #tpu.dot_dimension_numbers<[1], [1], [0], [0], [0, 0, 1, 0], [], []>} : vector<8x8xbf16>, vector<128x8xbf16>, vector<8x128xf32> -> vector<8x128xf32>
    %c120_i32_49 = arith.constant 120 : i32
    %127 = tpu.dynamic_rotate %126 by %c120_i32_49 dim 1 {stride = 1 : si32, stride_dimension = 0 : si32} : vector<8x128xf32>, i32 -> vector<8x128xf32>
    %128 = vector.extract_strided_slice %127 {offsets = [0, 0], sizes = [8, 8], strides = [1, 1]} : vector<8x128xf32> to vector<8x8xf32>
    %129 = arith.addf %125, %128 : vector<8x8xf32>
    %cst_50 = arith.constant 0.353553385 : f32
    %130 = vector.broadcast %cst_50 : f32 to vector<8x8xf32>
    %131 = arith.mulf %129, %130 : vector<8x8xf32>
    %cst_51 = arith.constant 5.000000e-01 : f32
    %132 = vector.broadcast %cst_51 : f32 to vector<1x8xf32>
    %133 = arith.cmpf ogt, %13, %132 : vector<1x8xf32>
    %cst_52 = arith.constant -1.000000e+30 : f32
    %134 = vector.shape_cast %133 : vector<1x8xi1> to vector<1x8xi1>
    %135 = vector.broadcast %134 : vector<1x8xi1> to vector<8x8xi1>
    %136 = vector.broadcast %cst_52 : f32 to vector<8x8xf32>
    %137 = arith.select %135, %131, %136 : vector<8x8xi1>, vector<8x8xf32>
    %cst_53 = arith.constant dense<0xFF800000> : vector<8xf32>
    %138 = vector.multi_reduction <maximumf>, %137, %cst_53 [1] : vector<8x8xf32> to vector<8xf32>
    %139 = vector.shape_cast %138 : vector<8xf32> to vector<8x1xf32>
    %140 = vector.broadcast %139 : vector<8x1xf32> to vector<8x8xf32>
    %141 = arith.subf %137, %140 : vector<8x8xf32>
    %142 = math.exp %141 : vector<8x8xf32>
    %cst_54 = arith.constant dense<0.000000e+00> : vector<8xf32>
    %143 = vector.multi_reduction <add>, %142, %cst_54 [1] : vector<8x8xf32> to vector<8xf32>
    %144 = vector.shape_cast %143 : vector<8xf32> to vector<8x1xf32>
    %145 = tpu.reciprocal %144 {approx = true} : vector<8x1xf32> -> vector<8x1xf32>
    %146 = vector.broadcast %145 : vector<8x1xf32> to vector<8x8xf32>
    %147 = arith.mulf %142, %146 : vector<8x8xf32>
    %148 = arith.truncf %147 : vector<8x8xf32> to vector<8x8xbf16>
    %cst_55 = arith.constant dense<0.000000e+00> : vector<8x8xf32>
    %149 = tpu.matmul %148, %114, %cst_55 {dimension_numbers = #tpu.dot_dimension_numbers<[1], [0], [0], [1], [0, 0, 1, 1], [], []>} : vector<8x8xbf16>, vector<8x8xbf16>, vector<8x8xf32> -> vector<8x8xf32>
    %150 = vector.extract_strided_slice %15 {offsets = [16, 0], sizes = [8, 32], strides = [1, 1]} : vector<32x32xf32> to vector<8x32xf32>
    %151 = arith.truncf %150 : vector<8x32xf32> to vector<8x32xbf16>
    %152 = arith.truncf %149 : vector<8x8xf32> to vector<8x8xbf16>
    %cst_56 = arith.constant dense<0.000000e+00> : vector<8x32xf32>
    %153 = tpu.matmul %152, %151, %cst_56 {dimension_numbers = #tpu.dot_dimension_numbers<[1], [0], [0], [1], [0, 0, 1, 1], [], []>} : vector<8x8xbf16>, vector<8x32xbf16>, vector<8x32xf32> -> vector<8x32xf32>
    %154 = arith.addf %109, %153 : vector<8x32xf32>
    %155 = vector.extract_strided_slice %1 {offsets = [0, 24], sizes = [8, 8], strides = [1, 1]} : vector<8x32xf32> to vector<8x8xf32>
    %156 = vector.extract_strided_slice %3 {offsets = [0, 24], sizes = [8, 8], strides = [1, 1]} : vector<8x32xf32> to vector<8x8xf32>
    %157 = arith.truncf %156 : vector<8x8xf32> to vector<8x8xbf16>
    %158 = vector.extract_strided_slice %5 {offsets = [0, 24], sizes = [8, 8], strides = [1, 1]} : vector<8x32xf32> to vector<8x8xf32>
    %159 = arith.truncf %158 : vector<8x8xf32> to vector<8x8xbf16>
    %160 = vector.extract_strided_slice %7 {offsets = [0, 24], sizes = [128, 8], strides = [1, 1]} : vector<128x32xf32> to vector<128x8xf32>
    %161 = arith.truncf %160 : vector<128x8xf32> to vector<128x8xbf16>
    %162 = vector.extract_strided_slice %9 {offsets = [3, 0], sizes = [1, 8], strides = [1, 1]} : vector<4x8xf32> to vector<1x8xf32>
    %163 = vector.extract_strided_slice %11 {offsets = [3, 0], sizes = [1, 8], strides = [1, 1]} : vector<4x8xf32> to vector<1x8xf32>
    %164 = vector.broadcast %162 : vector<1x8xf32> to vector<8x8xf32>
    %165 = arith.addf %155, %164 : vector<8x8xf32>
    %166 = arith.truncf %165 : vector<8x8xf32> to vector<8x8xbf16>
    %167 = vector.broadcast %163 : vector<1x8xf32> to vector<8x8xf32>
    %168 = arith.addf %155, %167 : vector<8x8xf32>
    %169 = arith.truncf %168 : vector<8x8xf32> to vector<8x8xbf16>
    %cst_57 = arith.constant dense<0.000000e+00> : vector<8x8xf32>
    %170 = tpu.matmul %166, %157, %cst_57 {dimension_numbers = #tpu.dot_dimension_numbers<[1], [1], [0], [0], [0, 0, 1, 0], [], []>} : vector<8x8xbf16>, vector<8x8xbf16>, vector<8x8xf32> -> vector<8x8xf32>
    %cst_58 = arith.constant dense<0.000000e+00> : vector<8x128xf32>
    %171 = tpu.matmul %169, %161, %cst_58 {dimension_numbers = #tpu.dot_dimension_numbers<[1], [1], [0], [0], [0, 0, 1, 0], [], []>} : vector<8x8xbf16>, vector<128x8xbf16>, vector<8x128xf32> -> vector<8x128xf32>
    %c120_i32_59 = arith.constant 120 : i32
    %172 = tpu.dynamic_rotate %171 by %c120_i32_59 dim 1 {stride = 1 : si32, stride_dimension = 0 : si32} : vector<8x128xf32>, i32 -> vector<8x128xf32>
    %173 = vector.extract_strided_slice %172 {offsets = [0, 0], sizes = [8, 8], strides = [1, 1]} : vector<8x128xf32> to vector<8x8xf32>
    %174 = arith.addf %170, %173 : vector<8x8xf32>
    %cst_60 = arith.constant 0.353553385 : f32
    %175 = vector.broadcast %cst_60 : f32 to vector<8x8xf32>
    %176 = arith.mulf %174, %175 : vector<8x8xf32>
    %cst_61 = arith.constant 5.000000e-01 : f32
    %177 = vector.broadcast %cst_61 : f32 to vector<1x8xf32>
    %178 = arith.cmpf ogt, %13, %177 : vector<1x8xf32>
    %cst_62 = arith.constant -1.000000e+30 : f32
    %179 = vector.shape_cast %178 : vector<1x8xi1> to vector<1x8xi1>
    %180 = vector.broadcast %179 : vector<1x8xi1> to vector<8x8xi1>
    %181 = vector.broadcast %cst_62 : f32 to vector<8x8xf32>
    %182 = arith.select %180, %176, %181 : vector<8x8xi1>, vector<8x8xf32>
    %cst_63 = arith.constant dense<0xFF800000> : vector<8xf32>
    %183 = vector.multi_reduction <maximumf>, %182, %cst_63 [1] : vector<8x8xf32> to vector<8xf32>
    %184 = vector.shape_cast %183 : vector<8xf32> to vector<8x1xf32>
    %185 = vector.broadcast %184 : vector<8x1xf32> to vector<8x8xf32>
    %186 = arith.subf %182, %185 : vector<8x8xf32>
    %187 = math.exp %186 : vector<8x8xf32>
    %cst_64 = arith.constant dense<0.000000e+00> : vector<8xf32>
    %188 = vector.multi_reduction <add>, %187, %cst_64 [1] : vector<8x8xf32> to vector<8xf32>
    %189 = vector.shape_cast %188 : vector<8xf32> to vector<8x1xf32>
    %190 = tpu.reciprocal %189 {approx = true} : vector<8x1xf32> -> vector<8x1xf32>
    %191 = vector.broadcast %190 : vector<8x1xf32> to vector<8x8xf32>
    %192 = arith.mulf %187, %191 : vector<8x8xf32>
    %193 = arith.truncf %192 : vector<8x8xf32> to vector<8x8xbf16>
    %cst_65 = arith.constant dense<0.000000e+00> : vector<8x8xf32>
    %194 = tpu.matmul %193, %159, %cst_65 {dimension_numbers = #tpu.dot_dimension_numbers<[1], [0], [0], [1], [0, 0, 1, 1], [], []>} : vector<8x8xbf16>, vector<8x8xbf16>, vector<8x8xf32> -> vector<8x8xf32>
    %195 = vector.extract_strided_slice %15 {offsets = [24, 0], sizes = [8, 32], strides = [1, 1]} : vector<32x32xf32> to vector<8x32xf32>
    %196 = arith.truncf %195 : vector<8x32xf32> to vector<8x32xbf16>
    %197 = arith.truncf %194 : vector<8x8xf32> to vector<8x8xbf16>
    %cst_66 = arith.constant dense<0.000000e+00> : vector<8x32xf32>
    %198 = tpu.matmul %197, %196, %cst_66 {dimension_numbers = #tpu.dot_dimension_numbers<[1], [0], [0], [1], [0, 0, 1, 1], [], []>} : vector<8x8xbf16>, vector<8x32xbf16>, vector<8x32xf32> -> vector<8x32xf32>
    %199 = arith.addf %154, %198 : vector<8x32xf32>
    %c0_67 = arith.constant 0 : index
    %c0_68 = arith.constant 0 : index
    %c0_69 = arith.constant 0 : index
    %c0_70 = arith.constant 0 : index
    %200 = vector.load %arg11[%c0_67, %c0_68, %c0_69, %c0_70] : memref<1x1x8x32xf32, #tpu.memory_space<vmem>>, vector<1x1x8x32xf32>
    %201 = vector.shape_cast %200 : vector<1x1x8x32xf32> to vector<8x32xf32>
    %202 = vector.shape_cast %199 : vector<8x32xf32> to vector<1x1x8x32xf32>
    tpu.vector_store %arg11[%c0_67, %c0_68, %c0_69, %c0_70], %202 {strides = array<i32>} : memref<1x1x8x32xf32, #tpu.memory_space<vmem>>, vector<1x1x8x32xf32>,
    return
  }
  func.func @transform_0(%arg0: i32, %arg1: i32) -> (i32, i32, i32, i32) {
    %c0_i32 = arith.constant 0 : i32
    %c0_i32_0 = arith.constant 0 : i32
    %c0_i32_1 = arith.constant 0 : i32
    return %arg0, %arg1, %c0_i32, %c0_i32_0 : i32, i32, i32, i32
  }
  func.func @transform_1(%arg0: i32, %arg1: i32) -> (i32, i32, i32, i32) {
    %c0_i32 = arith.constant 0 : i32
    %c0_i32_0 = arith.constant 0 : i32
    %c0_i32_1 = arith.constant 0 : i32
    return %arg0, %arg1, %c0_i32, %c0_i32_0 : i32, i32, i32, i32
  }
  func.func @transform_2(%arg0: i32, %arg1: i32) -> (i32, i32, i32, i32) {
    %c0_i32 = arith.constant 0 : i32
    %c0_i32_0 = arith.constant 0 : i32
    %c0_i32_1 = arith.constant 0 : i32
    return %arg0, %arg1, %c0_i32, %c0_i32_0 : i32, i32, i32, i32
  }
  func.func @transform_3(%arg0: i32, %arg1: i32) -> (i32, i32, i32) {
    %c0_i32 = arith.constant 0 : i32
    %c0_i32_0 = arith.constant 0 : i32
    %c0_i32_1 = arith.constant 0 : i32
    return %arg0, %c0_i32, %c0_i32_0 : i32, i32, i32
  }
  func.func @transform_4(%arg0: i32, %arg1: i32) -> (i32, i32, i32) {
    %c0_i32 = arith.constant 0 : i32
    %c0_i32_0 = arith.constant 0 : i32
    %c0_i32_1 = arith.constant 0 : i32
    return %arg0, %c0_i32, %c0_i32_0 : i32, i32, i32
  }
  func.func @transform_5(%arg0: i32, %arg1: i32) -> (i32, i32, i32) {
    %c0_i32 = arith.constant 0 : i32
    %c0_i32_0 = arith.constant 0 : i32
    %c0_i32_1 = arith.constant 0 : i32
    return %arg0, %c0_i32, %c0_i32_0 : i32, i32, i32
  }
  func.func @transform_6(%arg0: i32, %arg1: i32) -> (i32, i32, i32) {
    %c0_i32 = arith.constant 0 : i32
    %c0_i32_0 = arith.constant 0 : i32
    %c0_i32_1 = arith.constant 0 : i32
    return %arg1, %c0_i32, %c0_i32_0 : i32, i32, i32
  }
  func.func @transform_7(%arg0: i32, %arg1: i32) -> (i32, i32, i32) {
    %c0_i32 = arith.constant 0 : i32
    %c0_i32_0 = arith.constant 0 : i32
    %c0_i32_1 = arith.constant 0 : i32
    return %arg0, %c0_i32, %c0_i32_0 : i32, i32, i32
  }
  func.func @transform_8(%arg0: i32, %arg1: i32) -> (i32, i32, i32) {
    %c0_i32 = arith.constant 0 : i32
    %c0_i32_0 = arith.constant 0 : i32
    %c0_i32_1 = arith.constant 0 : i32
    return %arg0, %c0_i32, %c0_i32_0 : i32, i32, i32
  }
  func.func @transform_9(%arg0: i32, %arg1: i32) -> (i32, i32, i32, i32) {
    %c0_i32 = arith.constant 0 : i32
    %c0_i32_0 = arith.constant 0 : i32
    %c0_i32_1 = arith.constant 0 : i32
    return %arg0, %arg1, %c0_i32, %c0_i32_0 : i32, i32, i32, i32
  }
}

module attributes {stable_mosaic.version = 11 : i64} {
  func.func @_add_ln_kernel(%arg0: i32, %arg1: memref<16x32xf32, #tpu.memory_space<vmem>>, %arg2: memref<16x32xf32, #tpu.memory_space<vmem>>, %arg3: memref<1x32xf32, #tpu.memory_space<vmem>>, %arg4: memref<1x32xf32, #tpu.memory_space<vmem>>, %arg5: memref<16x32xf32, #tpu.memory_space<vmem>>) attributes {dimension_semantics = [#tpu.dimension_semantics<parallel>], iteration_bounds = array<i64: 1>, scalar_prefetch = 0 : i64, scratch_operands = 0 : i64, tpu.core_type = #tpu.core_type<tc>, window_params = [{transform_indices = @transform_0, window_bounds = array<i64: 16, 32>}, {transform_indices = @transform_1, window_bounds = array<i64: 16, 32>}, {pipeline_mode = #tpu.pipeline_mode<synchronous>, transform_indices = @transform_2, window_bounds = array<i64: 1, 32>}, {pipeline_mode = #tpu.pipeline_mode<synchronous>, transform_indices = @transform_3, window_bounds = array<i64: 1, 32>}, {transform_indices = @transform_4, window_bounds = array<i64: 16, 32>}]} {
    %c0 = arith.constant 0 : index
    %c0_0 = arith.constant 0 : index
    %0 = vector.load %arg1[%c0, %c0_0] : memref<16x32xf32, #tpu.memory_space<vmem>>, vector<16x32xf32>
    %c0_1 = arith.constant 0 : index
    %c0_2 = arith.constant 0 : index
    %1 = vector.load %arg2[%c0_1, %c0_2] : memref<16x32xf32, #tpu.memory_space<vmem>>, vector<16x32xf32>
    %2 = arith.addf %0, %1 : vector<16x32xf32>
    %cst = arith.constant dense<0.000000e+00> : vector<16xf32>
    %3 = vector.multi_reduction <add>, %2, %cst [1] : vector<16x32xf32> to vector<16xf32>
    %4 = vector.shape_cast %3 : vector<16xf32> to vector<16x1xf32>
    %cst_3 = arith.constant 3.200000e+01 : f32
    %5 = vector.broadcast %cst_3 : f32 to vector<16x1xf32>
    %6 = arith.divf %4, %5 : vector<16x1xf32>
    %7 = vector.broadcast %6 : vector<16x1xf32> to vector<16x32xf32>
    %8 = arith.subf %2, %7 : vector<16x32xf32>
    %9 = arith.mulf %8, %8 : vector<16x32xf32>
    %cst_4 = arith.constant dense<0.000000e+00> : vector<16xf32>
    %10 = vector.multi_reduction <add>, %9, %cst_4 [1] : vector<16x32xf32> to vector<16xf32>
    %11 = vector.shape_cast %10 : vector<16xf32> to vector<16x1xf32>
    %cst_5 = arith.constant 3.200000e+01 : f32
    %12 = vector.broadcast %cst_5 : f32 to vector<16x1xf32>
    %13 = arith.divf %11, %12 : vector<16x1xf32>
    %cst_6 = arith.constant 9.99999996E-13 : f32
    %14 = vector.broadcast %cst_6 : f32 to vector<16x1xf32>
    %15 = arith.addf %13, %14 : vector<16x1xf32>
    %16 = math.rsqrt %15 : vector<16x1xf32>
    %17 = vector.broadcast %16 : vector<16x1xf32> to vector<16x32xf32>
    %18 = arith.mulf %8, %17 : vector<16x32xf32>
    %c0_7 = arith.constant 0 : index
    %c0_8 = arith.constant 0 : index
    %19 = vector.load %arg3[%c0_7, %c0_8] : memref<1x32xf32, #tpu.memory_space<vmem>>, vector<1x32xf32>
    %20 = vector.broadcast %19 : vector<1x32xf32> to vector<16x32xf32>
    %21 = arith.mulf %18, %20 : vector<16x32xf32>
    %c0_9 = arith.constant 0 : index
    %c0_10 = arith.constant 0 : index
    %22 = vector.load %arg4[%c0_9, %c0_10] : memref<1x32xf32, #tpu.memory_space<vmem>>, vector<1x32xf32>
    %23 = vector.broadcast %22 : vector<1x32xf32> to vector<16x32xf32>
    %24 = arith.addf %21, %23 : vector<16x32xf32>
    %c0_11 = arith.constant 0 : index
    %c0_12 = arith.constant 0 : index
    %25 = vector.load %arg5[%c0_11, %c0_12] : memref<16x32xf32, #tpu.memory_space<vmem>>, vector<16x32xf32>
    tpu.vector_store %arg5[%c0_11, %c0_12], %24 {strides = array<i32>} : memref<16x32xf32, #tpu.memory_space<vmem>>, vector<16x32xf32>,
    return
  }
  func.func @transform_0(%arg0: i32) -> (i32, i32) {
    %c0_i32 = arith.constant 0 : i32
    %c0_i32_0 = arith.constant 0 : i32
    return %arg0, %c0_i32 : i32, i32
  }
  func.func @transform_1(%arg0: i32) -> (i32, i32) {
    %c0_i32 = arith.constant 0 : i32
    %c0_i32_0 = arith.constant 0 : i32
    return %arg0, %c0_i32 : i32, i32
  }
  func.func @transform_2(%arg0: i32) -> (i32, i32) {
    %c0_i32 = arith.constant 0 : i32
    %c0_i32_0 = arith.constant 0 : i32
    %c0_i32_1 = arith.constant 0 : i32
    return %c0_i32, %c0_i32_0 : i32, i32
  }
  func.func @transform_3(%arg0: i32) -> (i32, i32) {
    %c0_i32 = arith.constant 0 : i32
    %c0_i32_0 = arith.constant 0 : i32
    %c0_i32_1 = arith.constant 0 : i32
    return %c0_i32, %c0_i32_0 : i32, i32
  }
  func.func @transform_4(%arg0: i32) -> (i32, i32) {
    %c0_i32 = arith.constant 0 : i32
    %c0_i32_0 = arith.constant 0 : i32
    return %arg0, %c0_i32 : i32, i32
  }
}

module attributes {stable_mosaic.version = 11 : i64} {
  func.func @_linear_kernel(%arg0: i32, %arg1: i32, %arg2: memref<16x64xf32, #tpu.memory_space<vmem>>, %arg3: memref<64x32xf32, #tpu.memory_space<vmem>>, %arg4: memref<1x32xf32, #tpu.memory_space<vmem>>, %arg5: memref<16x32xf32, #tpu.memory_space<vmem>>, %arg6: memref<16x32xf32, #tpu.memory_space<vmem>>) attributes {dimension_semantics = [#tpu.dimension_semantics<parallel>, #tpu.dimension_semantics<arbitrary>], iteration_bounds = array<i64: 1, 1>, scalar_prefetch = 0 : i64, scratch_operands = 1 : i64, tpu.core_type = #tpu.core_type<tc>, window_params = [{transform_indices = @transform_0, window_bounds = array<i64: 16, 64>}, {transform_indices = @transform_1, window_bounds = array<i64: 64, 32>}, {pipeline_mode = #tpu.pipeline_mode<synchronous>, transform_indices = @transform_2, window_bounds = array<i64: 1, 32>}, {transform_indices = @transform_3, window_bounds = array<i64: 16, 32>}]} {
    %c0_i32 = arith.constant 0 : i32
    %0 = arith.cmpi eq, %arg1, %c0_i32 : i32
    %1 = arith.extui %0 : i1 to i32
    %c0_i32_0 = arith.constant 0 : i32
    %2 = arith.cmpi ne, %1, %c0_i32_0 : i32
    scf.if %2 {
      %cst_10 = arith.constant 0.000000e+00 : f32
      %14 = vector.broadcast %cst_10 : f32 to vector<16x32xf32>
      %c0_11 = arith.constant 0 : index
      %c0_12 = arith.constant 0 : index
      %15 = vector.load %arg6[%c0_11, %c0_12] : memref<16x32xf32, #tpu.memory_space<vmem>>, vector<16x32xf32>
      tpu.vector_store %arg6[%c0_11, %c0_12], %14 {strides = array<i32>} : memref<16x32xf32, #tpu.memory_space<vmem>>, vector<16x32xf32>,
    } else {
    }
    %c0 = arith.constant 0 : index
    %c0_1 = arith.constant 0 : index
    %3 = vector.load %arg6[%c0, %c0_1] : memref<16x32xf32, #tpu.memory_space<vmem>>, vector<16x32xf32>
    %c0_2 = arith.constant 0 : index
    %c0_3 = arith.constant 0 : index
    %4 = vector.load %arg2[%c0_2, %c0_3] : memref<16x64xf32, #tpu.memory_space<vmem>>, vector<16x64xf32>
    %5 = arith.truncf %4 : vector<16x64xf32> to vector<16x64xbf16>
    %c0_4 = arith.constant 0 : index
    %c0_5 = arith.constant 0 : index
    %6 = vector.load %arg3[%c0_4, %c0_5] : memref<64x32xf32, #tpu.memory_space<vmem>>, vector<64x32xf32>
    %7 = arith.truncf %6 : vector<64x32xf32> to vector<64x32xbf16>
    %cst = arith.constant dense<0.000000e+00> : vector<16x32xf32>
    %8 = tpu.matmul %5, %7, %cst {dimension_numbers = #tpu.dot_dimension_numbers<[1], [0], [0], [1], [0, 0, 1, 1], [], []>} : vector<16x64xbf16>, vector<64x32xbf16>, vector<16x32xf32> -> vector<16x32xf32>
    %9 = arith.addf %3, %8 : vector<16x32xf32>
    %c0_6 = arith.constant 0 : index
    %c0_7 = arith.constant 0 : index
    %10 = vector.load %arg6[%c0_6, %c0_7] : memref<16x32xf32, #tpu.memory_space<vmem>>, vector<16x32xf32>
    tpu.vector_store %arg6[%c0_6, %c0_7], %9 {strides = array<i32>} : memref<16x32xf32, #tpu.memory_space<vmem>>, vector<16x32xf32>,
    %c0_i32_8 = arith.constant 0 : i32
    %11 = arith.cmpi eq, %arg1, %c0_i32_8 : i32
    %12 = arith.extui %11 : i1 to i32
    %c0_i32_9 = arith.constant 0 : i32
    %13 = arith.cmpi ne, %12, %c0_i32_9 : i32
    scf.if %13 {
      %c0_10 = arith.constant 0 : index
      %c0_11 = arith.constant 0 : index
      %14 = vector.load %arg6[%c0_10, %c0_11] : memref<16x32xf32, #tpu.memory_space<vmem>>, vector<16x32xf32>
      %c0_12 = arith.constant 0 : index
      %c0_13 = arith.constant 0 : index
      %15 = vector.load %arg4[%c0_12, %c0_13] : memref<1x32xf32, #tpu.memory_space<vmem>>, vector<1x32xf32>
      %16 = vector.broadcast %15 : vector<1x32xf32> to vector<16x32xf32>
      %17 = arith.addf %14, %16 : vector<16x32xf32>
      %c0_14 = arith.constant 0 : index
      %c0_15 = arith.constant 0 : index
      %18 = vector.load %arg5[%c0_14, %c0_15] : memref<16x32xf32, #tpu.memory_space<vmem>>, vector<16x32xf32>
      tpu.vector_store %arg5[%c0_14, %c0_15], %17 {strides = array<i32>} : memref<16x32xf32, #tpu.memory_space<vmem>>, vector<16x32xf32>,
    } else {
    }
    return
  }
  func.func @transform_0(%arg0: i32, %arg1: i32) -> (i32, i32) {
    %c0_i32 = arith.constant 0 : i32
    return %arg0, %arg1 : i32, i32
  }
  func.func @transform_1(%arg0: i32, %arg1: i32) -> (i32, i32) {
    %c0_i32 = arith.constant 0 : i32
    %c0_i32_0 = arith.constant 0 : i32
    return %arg1, %c0_i32 : i32, i32
  }
  func.func @transform_2(%arg0: i32, %arg1: i32) -> (i32, i32) {
    %c0_i32 = arith.constant 0 : i32
    %c0_i32_0 = arith.constant 0 : i32
    %c0_i32_1 = arith.constant 0 : i32
    return %c0_i32, %c0_i32_0 : i32, i32
  }
  func.func @transform_3(%arg0: i32, %arg1: i32) -> (i32, i32) {
    %c0_i32 = arith.constant 0 : i32
    %c0_i32_0 = arith.constant 0 : i32
    return %arg0, %c0_i32 : i32, i32
  }
}

module attributes {stable_mosaic.version = 11 : i64} {
  func.func @_linear_kernel(%arg0: i32, %arg1: i32, %arg2: memref<16x32xf32, #tpu.memory_space<vmem>>, %arg3: memref<32x64xf32, #tpu.memory_space<vmem>>, %arg4: memref<1x64xf32, #tpu.memory_space<vmem>>, %arg5: memref<16x64xf32, #tpu.memory_space<vmem>>, %arg6: memref<16x64xf32, #tpu.memory_space<vmem>>) attributes {dimension_semantics = [#tpu.dimension_semantics<parallel>, #tpu.dimension_semantics<arbitrary>], iteration_bounds = array<i64: 1, 1>, scalar_prefetch = 0 : i64, scratch_operands = 1 : i64, tpu.core_type = #tpu.core_type<tc>, window_params = [{transform_indices = @transform_0, window_bounds = array<i64: 16, 32>}, {transform_indices = @transform_1, window_bounds = array<i64: 32, 64>}, {pipeline_mode = #tpu.pipeline_mode<synchronous>, transform_indices = @transform_2, window_bounds = array<i64: 1, 64>}, {transform_indices = @transform_3, window_bounds = array<i64: 16, 64>}]} {
    %c0_i32 = arith.constant 0 : i32
    %0 = arith.cmpi eq, %arg1, %c0_i32 : i32
    %1 = arith.extui %0 : i1 to i32
    %c0_i32_0 = arith.constant 0 : i32
    %2 = arith.cmpi ne, %1, %c0_i32_0 : i32
    scf.if %2 {
      %cst_10 = arith.constant 0.000000e+00 : f32
      %14 = vector.broadcast %cst_10 : f32 to vector<16x64xf32>
      %c0_11 = arith.constant 0 : index
      %c0_12 = arith.constant 0 : index
      %15 = vector.load %arg6[%c0_11, %c0_12] : memref<16x64xf32, #tpu.memory_space<vmem>>, vector<16x64xf32>
      tpu.vector_store %arg6[%c0_11, %c0_12], %14 {strides = array<i32>} : memref<16x64xf32, #tpu.memory_space<vmem>>, vector<16x64xf32>,
    } else {
    }
    %c0 = arith.constant 0 : index
    %c0_1 = arith.constant 0 : index
    %3 = vector.load %arg6[%c0, %c0_1] : memref<16x64xf32, #tpu.memory_space<vmem>>, vector<16x64xf32>
    %c0_2 = arith.constant 0 : index
    %c0_3 = arith.constant 0 : index
    %4 = vector.load %arg2[%c0_2, %c0_3] : memref<16x32xf32, #tpu.memory_space<vmem>>, vector<16x32xf32>
    %5 = arith.truncf %4 : vector<16x32xf32> to vector<16x32xbf16>
    %c0_4 = arith.constant 0 : index
    %c0_5 = arith.constant 0 : index
    %6 = vector.load %arg3[%c0_4, %c0_5] : memref<32x64xf32, #tpu.memory_space<vmem>>, vector<32x64xf32>
    %7 = arith.truncf %6 : vector<32x64xf32> to vector<32x64xbf16>
    %cst = arith.constant dense<0.000000e+00> : vector<16x64xf32>
    %8 = tpu.matmul %5, %7, %cst {dimension_numbers = #tpu.dot_dimension_numbers<[1], [0], [0], [1], [0, 0, 1, 1], [], []>} : vector<16x32xbf16>, vector<32x64xbf16>, vector<16x64xf32> -> vector<16x64xf32>
    %9 = arith.addf %3, %8 : vector<16x64xf32>
    %c0_6 = arith.constant 0 : index
    %c0_7 = arith.constant 0 : index
    %10 = vector.load %arg6[%c0_6, %c0_7] : memref<16x64xf32, #tpu.memory_space<vmem>>, vector<16x64xf32>
    tpu.vector_store %arg6[%c0_6, %c0_7], %9 {strides = array<i32>} : memref<16x64xf32, #tpu.memory_space<vmem>>, vector<16x64xf32>,
    %c0_i32_8 = arith.constant 0 : i32
    %11 = arith.cmpi eq, %arg1, %c0_i32_8 : i32
    %12 = arith.extui %11 : i1 to i32
    %c0_i32_9 = arith.constant 0 : i32
    %13 = arith.cmpi ne, %12, %c0_i32_9 : i32
    scf.if %13 {
      %c0_10 = arith.constant 0 : index
      %c0_11 = arith.constant 0 : index
      %14 = vector.load %arg6[%c0_10, %c0_11] : memref<16x64xf32, #tpu.memory_space<vmem>>, vector<16x64xf32>
      %c0_12 = arith.constant 0 : index
      %c0_13 = arith.constant 0 : index
      %15 = vector.load %arg4[%c0_12, %c0_13] : memref<1x64xf32, #tpu.memory_space<vmem>>, vector<1x64xf32>
      %16 = vector.broadcast %15 : vector<1x64xf32> to vector<16x64xf32>
      %17 = arith.addf %14, %16 : vector<16x64xf32>
      %cst_14 = arith.constant 0.000000e+00 : f32
      %18 = vector.broadcast %cst_14 : f32 to vector<16x64xf32>
      %19 = arith.maximumf %17, %18 : vector<16x64xf32>
      %c0_15 = arith.constant 0 : index
      %c0_16 = arith.constant 0 : index
      %20 = vector.load %arg5[%c0_15, %c0_16] : memref<16x64xf32, #tpu.memory_space<vmem>>, vector<16x64xf32>
      tpu.vector_store %arg5[%c0_15, %c0_16], %19 {strides = array<i32>} : memref<16x64xf32, #tpu.memory_space<vmem>>, vector<16x64xf32>,
    } else {
    }
    return
  }
  func.func @transform_0(%arg0: i32, %arg1: i32) -> (i32, i32) {
    %c0_i32 = arith.constant 0 : i32
    return %arg0, %arg1 : i32, i32
  }
  func.func @transform_1(%arg0: i32, %arg1: i32) -> (i32, i32) {
    %c0_i32 = arith.constant 0 : i32
    %c0_i32_0 = arith.constant 0 : i32
    return %arg1, %c0_i32 : i32, i32
  }
  func.func @transform_2(%arg0: i32, %arg1: i32) -> (i32, i32) {
    %c0_i32 = arith.constant 0 : i32
    %c0_i32_0 = arith.constant 0 : i32
    %c0_i32_1 = arith.constant 0 : i32
    return %c0_i32, %c0_i32_0 : i32, i32
  }
  func.func @transform_3(%arg0: i32, %arg1: i32) -> (i32, i32) {
    %c0_i32 = arith.constant 0 : i32
    %c0_i32_0 = arith.constant 0 : i32
    return %arg0, %c0_i32 : i32, i32
  }
}

module attributes {stable_mosaic.version = 11 : i64} {
  func.func @_add_ln_kernel(%arg0: i32, %arg1: memref<16x32xf32, #tpu.memory_space<vmem>>, %arg2: memref<16x32xf32, #tpu.memory_space<vmem>>, %arg3: memref<1x32xf32, #tpu.memory_space<vmem>>, %arg4: memref<1x32xf32, #tpu.memory_space<vmem>>, %arg5: memref<16x32xf32, #tpu.memory_space<vmem>>) attributes {dimension_semantics = [#tpu.dimension_semantics<parallel>], iteration_bounds = array<i64: 1>, scalar_prefetch = 0 : i64, scratch_operands = 0 : i64, tpu.core_type = #tpu.core_type<tc>, window_params = [{transform_indices = @transform_0, window_bounds = array<i64: 16, 32>}, {transform_indices = @transform_1, window_bounds = array<i64: 16, 32>}, {pipeline_mode = #tpu.pipeline_mode<synchronous>, transform_indices = @transform_2, window_bounds = array<i64: 1, 32>}, {pipeline_mode = #tpu.pipeline_mode<synchronous>, transform_indices = @transform_3, window_bounds = array<i64: 1, 32>}, {transform_indices = @transform_4, window_bounds = array<i64: 16, 32>}]} {
    %c0 = arith.constant 0 : index
    %c0_0 = arith.constant 0 : index
    %0 = vector.load %arg1[%c0, %c0_0] : memref<16x32xf32, #tpu.memory_space<vmem>>, vector<16x32xf32>
    %c0_1 = arith.constant 0 : index
    %c0_2 = arith.constant 0 : index
    %1 = vector.load %arg2[%c0_1, %c0_2] : memref<16x32xf32, #tpu.memory_space<vmem>>, vector<16x32xf32>
    %2 = arith.addf %0, %1 : vector<16x32xf32>
    %cst = arith.constant dense<0.000000e+00> : vector<16xf32>
    %3 = vector.multi_reduction <add>, %2, %cst [1] : vector<16x32xf32> to vector<16xf32>
    %4 = vector.shape_cast %3 : vector<16xf32> to vector<16x1xf32>
    %cst_3 = arith.constant 3.200000e+01 : f32
    %5 = vector.broadcast %cst_3 : f32 to vector<16x1xf32>
    %6 = arith.divf %4, %5 : vector<16x1xf32>
    %7 = vector.broadcast %6 : vector<16x1xf32> to vector<16x32xf32>
    %8 = arith.subf %2, %7 : vector<16x32xf32>
    %9 = arith.mulf %8, %8 : vector<16x32xf32>
    %cst_4 = arith.constant dense<0.000000e+00> : vector<16xf32>
    %10 = vector.multi_reduction <add>, %9, %cst_4 [1] : vector<16x32xf32> to vector<16xf32>
    %11 = vector.shape_cast %10 : vector<16xf32> to vector<16x1xf32>
    %cst_5 = arith.constant 3.200000e+01 : f32
    %12 = vector.broadcast %cst_5 : f32 to vector<16x1xf32>
    %13 = arith.divf %11, %12 : vector<16x1xf32>
    %cst_6 = arith.constant 9.99999996E-13 : f32
    %14 = vector.broadcast %cst_6 : f32 to vector<16x1xf32>
    %15 = arith.addf %13, %14 : vector<16x1xf32>
    %16 = math.rsqrt %15 : vector<16x1xf32>
    %17 = vector.broadcast %16 : vector<16x1xf32> to vector<16x32xf32>
    %18 = arith.mulf %8, %17 : vector<16x32xf32>
    %c0_7 = arith.constant 0 : index
    %c0_8 = arith.constant 0 : index
    %19 = vector.load %arg3[%c0_7, %c0_8] : memref<1x32xf32, #tpu.memory_space<vmem>>, vector<1x32xf32>
    %20 = vector.broadcast %19 : vector<1x32xf32> to vector<16x32xf32>
    %21 = arith.mulf %18, %20 : vector<16x32xf32>
    %c0_9 = arith.constant 0 : index
    %c0_10 = arith.constant 0 : index
    %22 = vector.load %arg4[%c0_9, %c0_10] : memref<1x32xf32, #tpu.memory_space<vmem>>, vector<1x32xf32>
    %23 = vector.broadcast %22 : vector<1x32xf32> to vector<16x32xf32>
    %24 = arith.addf %21, %23 : vector<16x32xf32>
    %c0_11 = arith.constant 0 : index
    %c0_12 = arith.constant 0 : index
    %25 = vector.load %arg5[%c0_11, %c0_12] : memref<16x32xf32, #tpu.memory_space<vmem>>, vector<16x32xf32>
    tpu.vector_store %arg5[%c0_11, %c0_12], %24 {strides = array<i32>} : memref<16x32xf32, #tpu.memory_space<vmem>>, vector<16x32xf32>,
    return
  }
  func.func @transform_0(%arg0: i32) -> (i32, i32) {
    %c0_i32 = arith.constant 0 : i32
    %c0_i32_0 = arith.constant 0 : i32
    return %arg0, %c0_i32 : i32, i32
  }
  func.func @transform_1(%arg0: i32) -> (i32, i32) {
    %c0_i32 = arith.constant 0 : i32
    %c0_i32_0 = arith.constant 0 : i32
    return %arg0, %c0_i32 : i32, i32
  }
  func.func @transform_2(%arg0: i32) -> (i32, i32) {
    %c0_i32 = arith.constant 0 : i32
    %c0_i32_0 = arith.constant 0 : i32
    %c0_i32_1 = arith.constant 0 : i32
    return %c0_i32, %c0_i32_0 : i32, i32
  }
  func.func @transform_3(%arg0: i32) -> (i32, i32) {
    %c0_i32 = arith.constant 0 : i32
    %c0_i32_0 = arith.constant 0 : i32
    %c0_i32_1 = arith.constant 0 : i32
    return %c0_i32, %c0_i32_0 : i32, i32
  }
  func.func @transform_4(%arg0: i32) -> (i32, i32) {
    %c0_i32 = arith.constant 0 : i32
    %c0_i32_0 = arith.constant 0 : i32
    return %arg0, %c0_i32 : i32, i32
  }
}

</mosaic_0001>

<llo_original>
// kernel: two_stream_rel_transformer_layer.10
$region0: #{two_stream_rel_transformer_layer.10}
  #allocation0 [shape = 'u32[]', space=smem, size = 0x4, offset = 0x4, fixed_abs, tag = 'smem constant byte address 0x4 - core index']
  #allocation1 [shape = 'u32[144,128]{1,0:T(1,128)}', space=vmem, size = 0x12000, scoped, tag = 'internal scratch']
  #allocation2 [shape = 'f32[16,64]{1,0:T(8,128)}', space=vmem, size = 0x2000, scoped, tag = 'scratch operand']
  %s0 = inlined_call_operand.vmem [shape: f32[16,32], index: 0, kind: input, shape index: {}]
  %s1 = inlined_call_operand.vmem [shape: f32[32,64], index: 1, kind: input, shape index: {}]
  %s2 = inlined_call_operand.vmem [shape: f32[1,64], index: 2, kind: input, shape index: {}]
  %s3 = inlined_call_operand.vmem [shape: f32[16,64], index: 3, kind: output, shape index: {}]
  %s4 = sld [smem:[#allocation0]]
  $region30: #{two_stream_rel_transformer_layer.10} parent=0
    _
  %s6 = ssub.s32 1, %s4
  %s7 = scalar_select 0, %s6, %s4
  // Predicated region
  $region2: #{two_stream_rel_transformer_layer.10} parent=0 // pred_check
    _
  $region3: #{two_stream_rel_transformer_layer.10} parent=0 // pred_check_branch
    %9 = sbr.rel (0) target = $region5
  $region4: #{two_stream_rel_transformer_layer.10} parent=0 // pred_region
    _
  $region5: #{two_stream_rel_transformer_layer.10} parent=0 // pred_fallthru
    _
  // Predicated region
  $region6: #{two_stream_rel_transformer_layer.10} parent=0 // pred_check
    _
  $region7: #{two_stream_rel_transformer_layer.10} parent=0 // pred_check_branch
    %11 = sbr.rel (0) target = $region9
  $region8: #{two_stream_rel_transformer_layer.10} parent=0 // pred_region
    _
  $region9: #{two_stream_rel_transformer_layer.10} parent=0 // pred_fallthru
    _
  // Predicated region
  $region10: #{two_stream_rel_transformer_layer.10} parent=0 // pred_check
    _
  $region11: #{two_stream_rel_transformer_layer.10} parent=0 // pred_check_branch
    %13 = sbr.rel (0) target = $region13
  $region12: #{two_stream_rel_transformer_layer.10} parent=0 // pred_region
    _
  $region13: #{two_stream_rel_transformer_layer.10} parent=0 // pred_fallthru
    _
  %p15 = scmp.eq.s32.totalorder 0, 0
  // Predicated region
  $region14: #{two_stream_rel_transformer_layer.10} parent=0 // pred_check
    %p16 = pneg %p15
  $region15: #{two_stream_rel_transformer_layer.10} parent=0 // pred_check_branch
    %18 = sbr.rel (%p16) target = $region17
  $region16: #{two_stream_rel_transformer_layer.10} parent=0 // pred_region
    %vm19 = vcmask 523264
    %20 = vst.msk [vmem:[#allocation2] sm:$0xff] %vm19, 0.0
    %21 = vst.msk [vmem:[#allocation2 + $0x8] sm:$0xff] %vm19, 0.0
  $region17: #{two_stream_rel_transformer_layer.10} parent=0 // pred_fallthru
    _
  %v22 = vld [vmem:[#allocation2] sm:$0xff]
  %v23 = vld [vmem:[#allocation2 + $0x8] sm:$0xff]
  %v24 = vld [vmem:[%s0] sm:$0xff]
  %v25 = vld [vmem:[%s0 + $0x8] sm:$0xff]
  %v26 = vpack.c.bf16 %v25, %v24
  %v27 = vld [vmem:[%s1] sm:$0xff]
  %v28 = vld [vmem:[%s1 + $0x8] sm:$0xff]
  %v29 = vld [vmem:[%s1 + $0x10] sm:$0xff]
  %v30 = vld [vmem:[%s1 + $0x18] sm:$0xff]
  %v31 = vpack.c.bf16 %v28, %v27
  %v32 = vpack.c.bf16 %v30, %v29
  %vm33 = vcmask 261120
  %v35 = vsel %vm33, %v26, 0
  %37 = vmatprep.subr.bf16.mxu0 0
  %38 = vmatpush1.bf16.msra.mxu0 0
  %39 = vmatprep.subr.bf16.mxu0 0
  %40 = vmatpush1.bf16.msra.mxu0 0
  %41 = vmatprep.subr.bf16.mxu0 0
  %42 = vmatpush1.bf16.msra.mxu0 0
  %43 = vmatprep.subr.bf16.mxu0 0
  %44 = vmatpush1.bf16.msra.mxu0 0
  %45 = vmatprep.subr.bf16.mxu0 0
  %46 = vmatpush1.bf16.msra.mxu0 0
  %47 = vmatprep.subr.bf16.mxu0 0
  %48 = vmatpush1.bf16.msra.mxu0 0
  %49 = vmatprep.subr.bf16.mxu0 0
  %50 = vmatpush1.bf16.msra.mxu0 %v32
  %51 = vmatprep.subr.bf16.mxu0 0
  %52 = vmatpush1.bf16.msra.mxu0 %v31
  %53 = vmatprep.subr.bf16.mxu0 0
  %54 = vmatpush2.bf16.msra.mxu0 0
  %55 = vmatprep.subr.bf16.mxu0 0
  %56 = vmatpush2.bf16.msra.mxu0 0
  %57 = vmatprep.subr.bf16.mxu0 0
  %58 = vmatpush2.bf16.msra.mxu0 0
  %59 = vmatprep.subr.bf16.mxu0 0
  %60 = vmatpush2.bf16.msra.mxu0 0
  %61 = vmatprep.subr.bf16.mxu0 0
  %62 = vmatpush2.bf16.msra.mxu0 0
  %63 = vmatprep.subr.bf16.mxu0 0
  %64 = vmatpush2.bf16.msra.mxu0 0
  %65 = vmatprep.subr.bf16.mxu0 0
  %66 = vmatpush2.bf16.msra.mxu0 0
  %67 = vmatprep.subr.bf16.mxu0 0
  %68 = vmatpush2.bf16.msra.mxu0 0
  %69 = vmatprep.mubr.bf16.mxu0 0
  %70 = vmatmul.mubr.bf16.gmra.mxu0 %v35
  %v71 = vpop.f32.mrf.mxu0
  %v72 = vadd.f32 0.0, %v71
  %v73 = vpop.f32.mrf.mxu0
  %v74 = vpop.f32.mrf.mxu0
  %v75 = vadd.f32 0.0, %v74
  %v76 = vpop.f32.mrf.mxu0
  %77 = vdwg.mxu0
  %v78 = vadd.f32 %v22, %v72
  %v79 = vadd.f32 %v23, %v75
  %vm80 = vcmask 523264
  %81 = vst.msk [vmem:[#allocation2] sm:$0xff] %vm80, %v78
  %82 = vst.msk [vmem:[#allocation2 + $0x8] sm:$0xff] %vm80, %v79
  // Predicated region
  $region18: #{two_stream_rel_transformer_layer.10} parent=0 // pred_check
    %p83 = pneg %p15
  $region19: #{two_stream_rel_transformer_layer.10} parent=0 // pred_check_branch
    %85 = sbr.rel (%p83) target = $region21
  $region20: #{two_stream_rel_transformer_layer.10} parent=0 // pred_region
    %v86 = vld [vmem:[#allocation2] sm:$0xff]
    %v87 = vld [vmem:[#allocation2 + $0x8] sm:$0xff]
    %v88 = vld [vmem:[%s2] sm:$0x1]
    %v90 = vlaneseq
    %v91 = vshrl.u32 %v90, 7
    %v92 = vsub.s32 0, %v91
    %v93 = vrot.slane %v88, %v92
    %v95 = vadd.f32 %v86, %v93
    %v96 = vadd.f32 %v87, %v93
    %97 = vst.msk [vmem:[%s3] sm:$0xff] %vm80, %v95
    %98 = vst.msk [vmem:[%s3 + $0x8] sm:$0xff] %vm80, %v96
  $region21: #{two_stream_rel_transformer_layer.10} parent=0 // pred_fallthru
    _
  // Predicated region
  $region22: #{two_stream_rel_transformer_layer.10} parent=0 // pred_check
    _
  $region23: #{two_stream_rel_transformer_layer.10} parent=0 // pred_check_branch
    %100 = sbr.rel (0) target = $region25
  $region24: #{two_stream_rel_transformer_layer.10} parent=0 // pred_region
    _
  $region25: #{two_stream_rel_transformer_layer.10} parent=0 // pred_fallthru
    _
  // Predicated region
  $region26: #{two_stream_rel_transformer_layer.10} parent=0 // pred_check
    _
  $region27: #{two_stream_rel_transformer_layer.10} parent=0 // pred_check_branch
    %102 = sbr.rel (0) target = $region29
  $region28: #{two_stream_rel_transformer_layer.10} parent=0 // pred_region
    _
  $region29: #{two_stream_rel_transformer_layer.10} parent=0 // pred_fallthru
    _

// kernel: two_stream_rel_transformer_layer.12
$region0: #{two_stream_rel_transformer_layer.12}
  #allocation0 [shape = 'u32[]', space=smem, size = 0x4, offset = 0x4, fixed_abs, tag = 'smem constant byte address 0x4 - core index']
  #allocation1 [shape = 'u32[144,128]{1,0:T(1,128)}', space=vmem, size = 0x12000, scoped, tag = 'internal scratch']
  #allocation2 [shape = 'f32[15,64]{1,0:T(8,128)}', space=vmem, size = 0x2000, scoped, tag = 'scratch operand']
  %s0 = inlined_call_operand.vmem [shape: f32[15,32], index: 0, kind: input, shape index: {}]
  %s1 = inlined_call_operand.vmem [shape: f32[32,64], index: 1, kind: input, shape index: {}]
  %s2 = inlined_call_operand.vmem [shape: f32[1,64], index: 2, kind: input, shape index: {}]
  %s3 = inlined_call_operand.vmem [shape: f32[15,64], index: 3, kind: output, shape index: {}]
  %s4 = sld [smem:[#allocation0]]
  $region30: #{two_stream_rel_transformer_layer.12} parent=0
    _
  %s6 = ssub.s32 1, %s4
  %s7 = scalar_select 0, %s6, %s4
  // Predicated region
  $region2: #{two_stream_rel_transformer_layer.12} parent=0 // pred_check
    _
  $region3: #{two_stream_rel_transformer_layer.12} parent=0 // pred_check_branch
    %9 = sbr.rel (0) target = $region5
  $region4: #{two_stream_rel_transformer_layer.12} parent=0 // pred_region
    _
  $region5: #{two_stream_rel_transformer_layer.12} parent=0 // pred_fallthru
    _
  // Predicated region
  $region6: #{two_stream_rel_transformer_layer.12} parent=0 // pred_check
    _
  $region7: #{two_stream_rel_transformer_layer.12} parent=0 // pred_check_branch
    %11 = sbr.rel (0) target = $region9
  $region8: #{two_stream_rel_transformer_layer.12} parent=0 // pred_region
    _
  $region9: #{two_stream_rel_transformer_layer.12} parent=0 // pred_fallthru
    _
  // Predicated region
  $region10: #{two_stream_rel_transformer_layer.12} parent=0 // pred_check
    _
  $region11: #{two_stream_rel_transformer_layer.12} parent=0 // pred_check_branch
    %13 = sbr.rel (0) target = $region13
  $region12: #{two_stream_rel_transformer_layer.12} parent=0 // pred_region
    _
  $region13: #{two_stream_rel_transformer_layer.12} parent=0 // pred_fallthru
    _
  %p15 = scmp.eq.s32.totalorder 0, 0
  // Predicated region
  $region14: #{two_stream_rel_transformer_layer.12} parent=0 // pred_check
    %p16 = pneg %p15
  $region15: #{two_stream_rel_transformer_layer.12} parent=0 // pred_check_branch
    %18 = sbr.rel (%p16) target = $region17
  $region16: #{two_stream_rel_transformer_layer.12} parent=0 // pred_region
    %vm19 = vcmask 523264
    %20 = vst.msk [vmem:[#allocation2] sm:$0xff] %vm19, 0.0
    %vm21 = vcmask 522240
    %22 = vst.msk [vmem:[#allocation2 + $0x8] sm:$0x7f] %vm21, 0.0
  $region17: #{two_stream_rel_transformer_layer.12} parent=0 // pred_fallthru
    _
  %v23 = vld [vmem:[#allocation2] sm:$0xff]
  %v24 = vld [vmem:[#allocation2 + $0x8] sm:$0x7f]
  %v25 = vld [vmem:[%s0] sm:$0xff]
  %v26 = vld [vmem:[%s0 + $0x8] sm:$0x7f]
  %v27 = vpack.c.bf16 %v26, %v25
  %v28 = vld [vmem:[%s1] sm:$0xff]
  %v29 = vld [vmem:[%s1 + $0x8] sm:$0xff]
  %v30 = vld [vmem:[%s1 + $0x10] sm:$0xff]
  %v31 = vld [vmem:[%s1 + $0x18] sm:$0xff]
  %v32 = vpack.c.bf16 %v29, %v28
  %v33 = vpack.c.bf16 %v31, %v30
  %vm34 = vcmask 261120
  %v36 = vsel %vm34, %v27, 0
  %38 = vmatprep.subr.bf16.mxu0 0
  %39 = vmatpush1.bf16.msra.mxu0 0
  %40 = vmatprep.subr.bf16.mxu0 0
  %41 = vmatpush1.bf16.msra.mxu0 0
  %42 = vmatprep.subr.bf16.mxu0 0
  %43 = vmatpush1.bf16.msra.mxu0 0
  %44 = vmatprep.subr.bf16.mxu0 0
  %45 = vmatpush1.bf16.msra.mxu0 0
  %46 = vmatprep.subr.bf16.mxu0 0
  %47 = vmatpush1.bf16.msra.mxu0 0
  %48 = vmatprep.subr.bf16.mxu0 0
  %49 = vmatpush1.bf16.msra.mxu0 0
  %50 = vmatprep.subr.bf16.mxu0 0
  %51 = vmatpush1.bf16.msra.mxu0 %v33
  %52 = vmatprep.subr.bf16.mxu0 0
  %53 = vmatpush1.bf16.msra.mxu0 %v32
  %54 = vmatprep.subr.bf16.mxu0 0
  %55 = vmatpush2.bf16.msra.mxu0 0
  %56 = vmatprep.subr.bf16.mxu0 0
  %57 = vmatpush2.bf16.msra.mxu0 0
  %58 = vmatprep.subr.bf16.mxu0 0
  %59 = vmatpush2.bf16.msra.mxu0 0
  %60 = vmatprep.subr.bf16.mxu0 0
  %61 = vmatpush2.bf16.msra.mxu0 0
  %62 = vmatprep.subr.bf16.mxu0 0
  %63 = vmatpush2.bf16.msra.mxu0 0
  %64 = vmatprep.subr.bf16.mxu0 0
  %65 = vmatpush2.bf16.msra.mxu0 0
  %66 = vmatprep.subr.bf16.mxu0 0
  %67 = vmatpush2.bf16.msra.mxu0 0
  %68 = vmatprep.subr.bf16.mxu0 0
  %69 = vmatpush2.bf16.msra.mxu0 0
  %70 = vmatprep.mubr.bf16.mxu0 0
  %71 = vmatmul.mubr.bf16.gmra.mxu0 %v36
  %v72 = vpop.f32.mrf.mxu0
  %v73 = vadd.f32 0.0, %v72
  %v74 = vpop.f32.mrf.mxu0
  %v75 = vpop.f32.mrf.mxu0
  %v76 = vadd.f32 0.0, %v75
  %v77 = vpop.f32.mrf.mxu0
  %78 = vdwg.mxu0
  %v79 = vadd.f32 %v23, %v73
  %v80 = vadd.f32 %v24, %v76
  %vm81 = vcmask 523264
  %82 = vst.msk [vmem:[#allocation2] sm:$0xff] %vm81, %v79
  %vm83 = vcmask 522240
  %84 = vst.msk [vmem:[#allocation2 + $0x8] sm:$0x7f] %vm83, %v80
  // Predicated region
  $region18: #{two_stream_rel_transformer_layer.12} parent=0 // pred_check
    %p85 = pneg %p15
  $region19: #{two_stream_rel_transformer_layer.12} parent=0 // pred_check_branch
    %87 = sbr.rel (%p85) target = $region21
  $region20: #{two_stream_rel_transformer_layer.12} parent=0 // pred_region
    %v88 = vld [vmem:[#allocation2] sm:$0xff]
    %v89 = vld [vmem:[#allocation2 + $0x8] sm:$0x7f]
    %v90 = vld [vmem:[%s2] sm:$0x1]
    %v92 = vlaneseq
    %v93 = vshrl.u32 %v92, 7
    %v94 = vsub.s32 0, %v93
    %v95 = vrot.slane %v90, %v94
    %v97 = vadd.f32 %v88, %v95
    %v98 = vadd.f32 %v89, %v95
    %99 = vst.msk [vmem:[%s3] sm:$0xff] %vm81, %v97
    %100 = vst.msk [vmem:[%s3 + $0x8] sm:$0x7f] %vm83, %v98
  $region21: #{two_stream_rel_transformer_layer.12} parent=0 // pred_fallthru
    _
  // Predicated region
  $region22: #{two_stream_rel_transformer_layer.12} parent=0 // pred_check
    _
  $region23: #{two_stream_rel_transformer_layer.12} parent=0 // pred_check_branch
    %102 = sbr.rel (0) target = $region25
  $region24: #{two_stream_rel_transformer_layer.12} parent=0 // pred_region
    _
  $region25: #{two_stream_rel_transformer_layer.12} parent=0 // pred_fallthru
    _
  // Predicated region
  $region26: #{two_stream_rel_transformer_layer.12} parent=0 // pred_check
    _
  $region27: #{two_stream_rel_transformer_layer.12} parent=0 // pred_check_branch
    %104 = sbr.rel (0) target = $region29
  $region28: #{two_stream_rel_transformer_layer.12} parent=0 // pred_region
    _
  $region29: #{two_stream_rel_transformer_layer.12} parent=0 // pred_fallthru
    _

// kernel: two_stream_rel_transformer_layer.14
$region0: #{two_stream_rel_transformer_layer.14}
  #allocation0 [shape = 'u32[]', space=smem, size = 0x4, offset = 0x4, fixed_abs, tag = 'smem constant byte address 0x4 - core index']
  #allocation1 [shape = 'u32[144,128]{1,0:T(1,128)}', space=vmem, size = 0x12000, scoped, tag = 'internal scratch']
  %s0 = inlined_call_operand.vmem [shape: f32[16,32], index: 0, kind: input, shape index: {}]
  %s1 = inlined_call_operand.vmem [shape: f32[16,32], index: 1, kind: input, shape index: {}]
  %s2 = inlined_call_operand.vmem [shape: f32[1,32], index: 2, kind: input, shape index: {}]
  %s3 = inlined_call_operand.vmem [shape: f32[1,32], index: 3, kind: input, shape index: {}]
  %s4 = inlined_call_operand.vmem [shape: f32[16,32], index: 4, kind: output, shape index: {}]
  %s5 = sld [smem:[#allocation0]]
  $region26: #{two_stream_rel_transformer_layer.14} parent=0
    _
  %s7 = ssub.s32 1, %s5
  %s8 = scalar_select 0, %s7, %s5
  // Predicated region
  $region2: #{two_stream_rel_transformer_layer.14} parent=0 // pred_check
    _
  $region3: #{two_stream_rel_transformer_layer.14} parent=0 // pred_check_branch
    %10 = sbr.rel (0) target = $region5
  $region4: #{two_stream_rel_transformer_layer.14} parent=0 // pred_region
    _
  $region5: #{two_stream_rel_transformer_layer.14} parent=0 // pred_fallthru
    _
  // Predicated region
  $region6: #{two_stream_rel_transformer_layer.14} parent=0 // pred_check
    _
  $region7: #{two_stream_rel_transformer_layer.14} parent=0 // pred_check_branch
    %12 = sbr.rel (0) target = $region9
  $region8: #{two_stream_rel_transformer_layer.14} parent=0 // pred_region
    _
  $region9: #{two_stream_rel_transformer_layer.14} parent=0 // pred_fallthru
    _
  // Predicated region
  $region10: #{two_stream_rel_transformer_layer.14} parent=0 // pred_check
    _
  $region11: #{two_stream_rel_transformer_layer.14} parent=0 // pred_check_branch
    %14 = sbr.rel (0) target = $region13
  $region12: #{two_stream_rel_transformer_layer.14} parent=0 // pred_region
    _
  $region13: #{two_stream_rel_transformer_layer.14} parent=0 // pred_fallthru
    _
  // Predicated region
  $region14: #{two_stream_rel_transformer_layer.14} parent=0 // pred_check
    _
  $region15: #{two_stream_rel_transformer_layer.14} parent=0 // pred_check_branch
    %16 = sbr.rel (0) target = $region17
  $region16: #{two_stream_rel_transformer_layer.14} parent=0 // pred_region
    _
  $region17: #{two_stream_rel_transformer_layer.14} parent=0 // pred_fallthru
    _
  %v17 = vld [vmem:[%s0] sm:$0xff]
  %v18 = vld [vmem:[%s0 + $0x8] sm:$0xff]
  %v19 = vld [vmem:[%s1] sm:$0xff]
  %v20 = vld [vmem:[%s1 + $0x8] sm:$0xff]
  %v21 = vadd.f32 %v17, %v19
  %v22 = vadd.f32 %v18, %v20
  %vm23 = vcmask 261120
  %v24 = vsel %vm23, %v21, 0.0
  %25 = vadd.xlane.f32.xlu0 %v24
  %v26 = vpop.xlane.xlu0 %25
  %v27 = vsel %vm23, %v22, 0.0
  %28 = vadd.xlane.f32.xlu0 %v27
  %v29 = vpop.xlane.xlu0 %28
  %v30 = vrcp.pop 32.0
  %v31 = vmul.f32 %v26, %v30
  %v32 = vmul.f32 %v29, %v30
  %v33 = vsub.f32 %v21, %v31
  %v34 = vsub.f32 %v22, %v32
  %v35 = vmul.f32 %v33, %v33
  %v36 = vmul.f32 %v34, %v34
  %v37 = vsel %vm23, %v35, 0.0
  %38 = vadd.xlane.f32.xlu0 %v37
  %v39 = vpop.xlane.xlu0 %38
  %v40 = vsel %vm23, %v36, 0.0
  %41 = vadd.xlane.f32.xlu0 %v40
  %v42 = vpop.xlane.xlu0 %41
  %v43 = vmul.f32 %v39, %v30
  %v44 = vmul.f32 %v42, %v30
  %v45 = vadd.f32 %v43, 1e-12
  %v46 = vadd.f32 %v44, 1e-12
  %v47 = vrsqrt.pop %v45
  %v48 = vrsqrt.pop %v46
  %v49 = vmul.f32 %v33, %v47
  %v50 = vmul.f32 %v34, %v48
  %v51 = vld [vmem:[%s2] sm:$0x1]
  %v53 = vlaneseq
  %v54 = vshrl.u32 %v53, 7
  %v55 = vsub.s32 0, %v54
  %v56 = vrot.slane %v51, %v55
  %v58 = vmul.f32 %v49, %v56
  %v59 = vmul.f32 %v50, %v56
  %v60 = vld [vmem:[%s3] sm:$0x1]
  %v62 = vlaneseq
  %v63 = vshrl.u32 %v62, 7
  %v64 = vsub.s32 0, %v63
  %v65 = vrot.slane %v60, %v64
  %v67 = vadd.f32 %v58, %v65
  %v68 = vadd.f32 %v59, %v65
  %69 = vst.msk [vmem:[%s4] sm:$0xff] %vm23, %v67
  %70 = vst.msk [vmem:[%s4 + $0x8] sm:$0xff] %vm23, %v68
  // Predicated region
  $region18: #{two_stream_rel_transformer_layer.14} parent=0 // pred_check
    _
  $region19: #{two_stream_rel_transformer_layer.14} parent=0 // pred_check_branch
    %72 = sbr.rel (0) target = $region21
  $region20: #{two_stream_rel_transformer_layer.14} parent=0 // pred_region
    _
  $region21: #{two_stream_rel_transformer_layer.14} parent=0 // pred_fallthru
    _
  // Predicated region
  $region22: #{two_stream_rel_transformer_layer.14} parent=0 // pred_check
    _
  $region23: #{two_stream_rel_transformer_layer.14} parent=0 // pred_check_branch
    %74 = sbr.rel (0) target = $region25
  $region24: #{two_stream_rel_transformer_layer.14} parent=0 // pred_region
    _
  $region25: #{two_stream_rel_transformer_layer.14} parent=0 // pred_fallthru
    _

// kernel: two_stream_rel_transformer_layer.16
$region0: #{two_stream_rel_transformer_layer.16}
  #allocation0 [shape = 'u32[]', space=smem, size = 0x4, offset = 0x4, fixed_abs, tag = 'smem constant byte address 0x4 - core index']
  #allocation1 [shape = 'u32[144,128]{1,0:T(1,128)}', space=vmem, size = 0x12000, scoped, tag = 'internal scratch']
  #allocation2 [shape = 'f32[16,32]{1,0:T(8,128)}', space=vmem, size = 0x2000, scoped, tag = 'scratch operand']
  %s0 = inlined_call_operand.vmem [shape: f32[16,64], index: 0, kind: input, shape index: {}]
  %s1 = inlined_call_operand.vmem [shape: f32[64,32], index: 1, kind: input, shape index: {}]
  %s2 = inlined_call_operand.vmem [shape: f32[1,32], index: 2, kind: input, shape index: {}]
  %s3 = inlined_call_operand.vmem [shape: f32[16,32], index: 3, kind: output, shape index: {}]
  %s4 = sld [smem:[#allocation0]]
  $region30: #{two_stream_rel_transformer_layer.16} parent=0
    _
  %s6 = ssub.s32 1, %s4
  %s7 = scalar_select 0, %s6, %s4
  // Predicated region
  $region2: #{two_stream_rel_transformer_layer.16} parent=0 // pred_check
    _
  $region3: #{two_stream_rel_transformer_layer.16} parent=0 // pred_check_branch
    %9 = sbr.rel (0) target = $region5
  $region4: #{two_stream_rel_transformer_layer.16} parent=0 // pred_region
    _
  $region5: #{two_stream_rel_transformer_layer.16} parent=0 // pred_fallthru
    _
  // Predicated region
  $region6: #{two_stream_rel_transformer_layer.16} parent=0 // pred_check
    _
  $region7: #{two_stream_rel_transformer_layer.16} parent=0 // pred_check_branch
    %11 = sbr.rel (0) target = $region9
  $region8: #{two_stream_rel_transformer_layer.16} parent=0 // pred_region
    _
  $region9: #{two_stream_rel_transformer_layer.16} parent=0 // pred_fallthru
    _
  // Predicated region
  $region10: #{two_stream_rel_transformer_layer.16} parent=0 // pred_check
    _
  $region11: #{two_stream_rel_transformer_layer.16} parent=0 // pred_check_branch
    %13 = sbr.rel (0) target = $region13
  $region12: #{two_stream_rel_transformer_layer.16} parent=0 // pred_region
    _
  $region13: #{two_stream_rel_transformer_layer.16} parent=0 // pred_fallthru
    _
  %p15 = scmp.eq.s32.totalorder 0, 0
  // Predicated region
  $region14: #{two_stream_rel_transformer_layer.16} parent=0 // pred_check
    %p16 = pneg %p15
  $region15: #{two_stream_rel_transformer_layer.16} parent=0 // pred_check_branch
    %18 = sbr.rel (%p16) target = $region17
  $region16: #{two_stream_rel_transformer_layer.16} parent=0 // pred_region
    %vm19 = vcmask 261120
    %20 = vst.msk [vmem:[#allocation2] sm:$0xff] %vm19, 0.0
    %21 = vst.msk [vmem:[#allocation2 + $0x8] sm:$0xff] %vm19, 0.0
  $region17: #{two_stream_rel_transformer_layer.16} parent=0 // pred_fallthru
    _
  %v22 = vld [vmem:[#allocation2] sm:$0xff]
  %v23 = vld [vmem:[#allocation2 + $0x8] sm:$0xff]
  %v24 = vld [vmem:[%s0] sm:$0xff]
  %v25 = vld [vmem:[%s0 + $0x8] sm:$0xff]
  %v26 = vpack.c.bf16 %v25, %v24
  %v27 = vld [vmem:[%s1] sm:$0xff]
  %v28 = vld [vmem:[%s1 + $0x8] sm:$0xff]
  %v29 = vld [vmem:[%s1 + $0x10] sm:$0xff]
  %v30 = vld [vmem:[%s1 + $0x18] sm:$0xff]
  %v31 = vld [vmem:[%s1 + $0x20] sm:$0xff]
  %v32 = vld [vmem:[%s1 + $0x28] sm:$0xff]
  %v33 = vld [vmem:[%s1 + $0x30] sm:$0xff]
  %v34 = vld [vmem:[%s1 + $0x38] sm:$0xff]
  %v35 = vpack.c.bf16 %v28, %v27
  %v36 = vpack.c.bf16 %v30, %v29
  %v37 = vpack.c.bf16 %v32, %v31
  %v38 = vpack.c.bf16 %v34, %v33
  %vm39 = vcmask 523264
  %v41 = vsel %vm39, %v26, 0
  %43 = vmatprep.subr.bf16.mxu0 0
  %44 = vmatpush1.bf16.msra.mxu0 0
  %45 = vmatprep.subr.bf16.mxu0 0
  %46 = vmatpush1.bf16.msra.mxu0 0
  %47 = vmatprep.subr.bf16.mxu0 0
  %48 = vmatpush1.bf16.msra.mxu0 0
  %49 = vmatprep.subr.bf16.mxu0 0
  %50 = vmatpush1.bf16.msra.mxu0 0
  %51 = vmatprep.subr.bf16.mxu0 0
  %52 = vmatpush1.bf16.msra.mxu0 %v38
  %53 = vmatprep.subr.bf16.mxu0 0
  %54 = vmatpush1.bf16.msra.mxu0 %v37
  %55 = vmatprep.subr.bf16.mxu0 0
  %56 = vmatpush1.bf16.msra.mxu0 %v36
  %57 = vmatprep.subr.bf16.mxu0 0
  %58 = vmatpush1.bf16.msra.mxu0 %v35
  %59 = vmatprep.subr.bf16.mxu0 0
  %60 = vmatpush2.bf16.msra.mxu0 0
  %61 = vmatprep.subr.bf16.mxu0 0
  %62 = vmatpush2.bf16.msra.mxu0 0
  %63 = vmatprep.subr.bf16.mxu0 0
  %64 = vmatpush2.bf16.msra.mxu0 0
  %65 = vmatprep.subr.bf16.mxu0 0
  %66 = vmatpush2.bf16.msra.mxu0 0
  %67 = vmatprep.subr.bf16.mxu0 0
  %68 = vmatpush2.bf16.msra.mxu0 0
  %69 = vmatprep.subr.bf16.mxu0 0
  %70 = vmatpush2.bf16.msra.mxu0 0
  %71 = vmatprep.subr.bf16.mxu0 0
  %72 = vmatpush2.bf16.msra.mxu0 0
  %73 = vmatprep.subr.bf16.mxu0 0
  %74 = vmatpush2.bf16.msra.mxu0 0
  %75 = vmatprep.mubr.bf16.mxu0 0
  %76 = vmatmul.mubr.bf16.gmra.mxu0 %v41
  %v77 = vpop.f32.mrf.mxu0
  %v78 = vadd.f32 0.0, %v77
  %v79 = vpop.f32.mrf.mxu0
  %v80 = vpop.f32.mrf.mxu0
  %v81 = vadd.f32 0.0, %v80
  %v82 = vpop.f32.mrf.mxu0
  %83 = vdwg.mxu0
  %v84 = vadd.f32 %v22, %v78
  %v85 = vadd.f32 %v23, %v81
  %vm86 = vcmask 261120
  %87 = vst.msk [vmem:[#allocation2] sm:$0xff] %vm86, %v84
  %88 = vst.msk [vmem:[#allocation2 + $0x8] sm:$0xff] %vm86, %v85
  // Predicated region
  $region18: #{two_stream_rel_transformer_layer.16} parent=0 // pred_check
    %p89 = pneg %p15
  $region19: #{two_stream_rel_transformer_layer.16} parent=0 // pred_check_branch
    %91 = sbr.rel (%p89) target = $region21
  $region20: #{two_stream_rel_transformer_layer.16} parent=0 // pred_region
    %v92 = vld [vmem:[#allocation2] sm:$0xff]
    %v93 = vld [vmem:[#allocation2 + $0x8] sm:$0xff]
    %v94 = vld [vmem:[%s2] sm:$0x1]
    %v96 = vlaneseq
    %v97 = vshrl.u32 %v96, 7
    %v98 = vsub.s32 0, %v97
    %v99 = vrot.slane %v94, %v98
    %v101 = vadd.f32 %v92, %v99
    %v102 = vadd.f32 %v93, %v99
    %103 = vst.msk [vmem:[%s3] sm:$0xff] %vm86, %v101
    %104 = vst.msk [vmem:[%s3 + $0x8] sm:$0xff] %vm86, %v102
  $region21: #{two_stream_rel_transformer_layer.16} parent=0 // pred_fallthru
    _
  // Predicated region
  $region22: #{two_stream_rel_transformer_layer.16} parent=0 // pred_check
    _
  $region23: #{two_stream_rel_transformer_layer.16} parent=0 // pred_check_branch
    %106 = sbr.rel (0) target = $region25
  $region24: #{two_stream_rel_transformer_layer.16} parent=0 // pred_region
    _
  $region25: #{two_stream_rel_transformer_layer.16} parent=0 // pred_fallthru
    _
  // Predicated region
  $region26: #{two_stream_rel_transformer_layer.16} parent=0 // pred_check
    _
  $region27: #{two_stream_rel_transformer_layer.16} parent=0 // pred_check_branch
    %108 = sbr.rel (0) target = $region29
  $region28: #{two_stream_rel_transformer_layer.16} parent=0 // pred_region
    _
  $region29: #{two_stream_rel_transformer_layer.16} parent=0 // pred_fallthru
    _

// kernel: two_stream_rel_transformer_layer.15
$region0: #{two_stream_rel_transformer_layer.15}
  #allocation0 [shape = 'u32[]', space=smem, size = 0x4, offset = 0x4, fixed_abs, tag = 'smem constant byte address 0x4 - core index']
  #allocation1 [shape = 'u32[144,128]{1,0:T(1,128)}', space=vmem, size = 0x12000, scoped, tag = 'internal scratch']
  #allocation2 [shape = 'f32[16,64]{1,0:T(8,128)}', space=vmem, size = 0x2000, scoped, tag = 'scratch operand']
  %s0 = inlined_call_operand.vmem [shape: f32[16,32], index: 0, kind: input, shape index: {}]
  %s1 = inlined_call_operand.vmem [shape: f32[32,64], index: 1, kind: input, shape index: {}]
  %s2 = inlined_call_operand.vmem [shape: f32[1,64], index: 2, kind: input, shape index: {}]
  %s3 = inlined_call_operand.vmem [shape: f32[16,64], index: 3, kind: output, shape index: {}]
  %s4 = sld [smem:[#allocation0]]
  $region30: #{two_stream_rel_transformer_layer.15} parent=0
    _
  %s6 = ssub.s32 1, %s4
  %s7 = scalar_select 0, %s6, %s4
  // Predicated region
  $region2: #{two_stream_rel_transformer_layer.15} parent=0 // pred_check
    _
  $region3: #{two_stream_rel_transformer_layer.15} parent=0 // pred_check_branch
    %9 = sbr.rel (0) target = $region5
  $region4: #{two_stream_rel_transformer_layer.15} parent=0 // pred_region
    _
  $region5: #{two_stream_rel_transformer_layer.15} parent=0 // pred_fallthru
    _
  // Predicated region
  $region6: #{two_stream_rel_transformer_layer.15} parent=0 // pred_check
    _
  $region7: #{two_stream_rel_transformer_layer.15} parent=0 // pred_check_branch
    %11 = sbr.rel (0) target = $region9
  $region8: #{two_stream_rel_transformer_layer.15} parent=0 // pred_region
    _
  $region9: #{two_stream_rel_transformer_layer.15} parent=0 // pred_fallthru
    _
  // Predicated region
  $region10: #{two_stream_rel_transformer_layer.15} parent=0 // pred_check
    _
  $region11: #{two_stream_rel_transformer_layer.15} parent=0 // pred_check_branch
    %13 = sbr.rel (0) target = $region13
  $region12: #{two_stream_rel_transformer_layer.15} parent=0 // pred_region
    _
  $region13: #{two_stream_rel_transformer_layer.15} parent=0 // pred_fallthru
    _
  %p15 = scmp.eq.s32.totalorder 0, 0
  // Predicated region
  $region14: #{two_stream_rel_transformer_layer.15} parent=0 // pred_check
    %p16 = pneg %p15
  $region15: #{two_stream_rel_transformer_layer.15} parent=0 // pred_check_branch
    %18 = sbr.rel (%p16) target = $region17
  $region16: #{two_stream_rel_transformer_layer.15} parent=0 // pred_region
    %vm19 = vcmask 523264
    %20 = vst.msk [vmem:[#allocation2] sm:$0xff] %vm19, 0.0
    %21 = vst.msk [vmem:[#allocation2 + $0x8] sm:$0xff] %vm19, 0.0
  $region17: #{two_stream_rel_transformer_layer.15} parent=0 // pred_fallthru
    _
  %v22 = vld [vmem:[#allocation2] sm:$0xff]
  %v23 = vld [vmem:[#allocation2 + $0x8] sm:$0xff]
  %v24 = vld [vmem:[%s0] sm:$0xff]
  %v25 = vld [vmem:[%s0 + $0x8] sm:$0xff]
  %v26 = vpack.c.bf16 %v25, %v24
  %v27 = vld [vmem:[%s1] sm:$0xff]
  %v28 = vld [vmem:[%s1 + $0x8] sm:$0xff]
  %v29 = vld [vmem:[%s1 + $0x10] sm:$0xff]
  %v30 = vld [vmem:[%s1 + $0x18] sm:$0xff]
  %v31 = vpack.c.bf16 %v28, %v27
  %v32 = vpack.c.bf16 %v30, %v29
  %vm33 = vcmask 261120
  %v35 = vsel %vm33, %v26, 0
  %37 = vmatprep.subr.bf16.mxu0 0
  %38 = vmatpush1.bf16.msra.mxu0 0
  %39 = vmatprep.subr.bf16.mxu0 0
  %40 = vmatpush1.bf16.msra.mxu0 0
  %41 = vmatprep.subr.bf16.mxu0 0
  %42 = vmatpush1.bf16.msra.mxu0 0
  %43 = vmatprep.subr.bf16.mxu0 0
  %44 = vmatpush1.bf16.msra.mxu0 0
  %45 = vmatprep.subr.bf16.mxu0 0
  %46 = vmatpush1.bf16.msra.mxu0 0
  %47 = vmatprep.subr.bf16.mxu0 0
  %48 = vmatpush1.bf16.msra.mxu0 0
  %49 = vmatprep.subr.bf16.mxu0 0
  %50 = vmatpush1.bf16.msra.mxu0 %v32
  %51 = vmatprep.subr.bf16.mxu0 0
  %52 = vmatpush1.bf16.msra.mxu0 %v31
  %53 = vmatprep.subr.bf16.mxu0 0
  %54 = vmatpush2.bf16.msra.mxu0 0
  %55 = vmatprep.subr.bf16.mxu0 0
  %56 = vmatpush2.bf16.msra.mxu0 0
  %57 = vmatprep.subr.bf16.mxu0 0
  %58 = vmatpush2.bf16.msra.mxu0 0
  %59 = vmatprep.subr.bf16.mxu0 0
  %60 = vmatpush2.bf16.msra.mxu0 0
  %61 = vmatprep.subr.bf16.mxu0 0
  %62 = vmatpush2.bf16.msra.mxu0 0
  %63 = vmatprep.subr.bf16.mxu0 0
  %64 = vmatpush2.bf16.msra.mxu0 0
  %65 = vmatprep.subr.bf16.mxu0 0
  %66 = vmatpush2.bf16.msra.mxu0 0
  %67 = vmatprep.subr.bf16.mxu0 0
  %68 = vmatpush2.bf16.msra.mxu0 0
  %69 = vmatprep.mubr.bf16.mxu0 0
  %70 = vmatmul.mubr.bf16.gmra.mxu0 %v35
  %v71 = vpop.f32.mrf.mxu0
  %v72 = vadd.f32 0.0, %v71
  %v73 = vpop.f32.mrf.mxu0
  %v74 = vpop.f32.mrf.mxu0
  %v75 = vadd.f32 0.0, %v74
  %v76 = vpop.f32.mrf.mxu0
  %77 = vdwg.mxu0
  %v78 = vadd.f32 %v22, %v72
  %v79 = vadd.f32 %v23, %v75
  %vm80 = vcmask 523264
  %81 = vst.msk [vmem:[#allocation2] sm:$0xff] %vm80, %v78
  %82 = vst.msk [vmem:[#allocation2 + $0x8] sm:$0xff] %vm80, %v79
  // Predicated region
  $region18: #{two_stream_rel_transformer_layer.15} parent=0 // pred_check
    %p83 = pneg %p15
  $region19: #{two_stream_rel_transformer_layer.15} parent=0 // pred_check_branch
    %85 = sbr.rel (%p83) target = $region21
  $region20: #{two_stream_rel_transformer_layer.15} parent=0 // pred_region
    %v86 = vld [vmem:[#allocation2] sm:$0xff]
    %v87 = vld [vmem:[#allocation2 + $0x8] sm:$0xff]
    %v88 = vld [vmem:[%s2] sm:$0x1]
    %v90 = vlaneseq
    %v91 = vshrl.u32 %v90, 7
    %v92 = vsub.s32 0, %v91
    %v93 = vrot.slane %v88, %v92
    %v95 = vadd.f32 %v86, %v93
    %v96 = vadd.f32 %v87, %v93
    %v97 = vmax.f32 %v95, 0.0
    %v98 = vmax.f32 %v96, 0.0
    %99 = vst.msk [vmem:[%s3] sm:$0xff] %vm80, %v97
    %100 = vst.msk [vmem:[%s3 + $0x8] sm:$0xff] %vm80, %v98
  $region21: #{two_stream_rel_transformer_layer.15} parent=0 // pred_fallthru
    _
  // Predicated region
  $region22: #{two_stream_rel_transformer_layer.15} parent=0 // pred_check
    _
  $region23: #{two_stream_rel_transformer_layer.15} parent=0 // pred_check_branch
    %102 = sbr.rel (0) target = $region25
  $region24: #{two_stream_rel_transformer_layer.15} parent=0 // pred_region
    _
  $region25: #{two_stream_rel_transformer_layer.15} parent=0 // pred_fallthru
    _
  // Predicated region
  $region26: #{two_stream_rel_transformer_layer.15} parent=0 // pred_check
    _
  $region27: #{two_stream_rel_transformer_layer.15} parent=0 // pred_check_branch
    %104 = sbr.rel (0) target = $region29
  $region28: #{two_stream_rel_transformer_layer.15} parent=0 // pred_region
    _
  $region29: #{two_stream_rel_transformer_layer.15} parent=0 // pred_fallthru
    _

// kernel: two_stream_rel_transformer_layer.13
$region0: #{two_stream_rel_transformer_layer.13}
  #allocation0 [shape = 'u32[]', space=smem, size = 0x4, offset = 0x4, fixed_abs, tag = 'smem constant byte address 0x4 - core index']
  #allocation1 [shape = 'u32[144,128]{1,0:T(1,128)}', space=vmem, size = 0x12000, scoped, tag = 'internal scratch']
  %s0 = inlined_call_operand.vmem [shape: f32[2,2,8,32], index: 0, kind: input, shape index: {}]
  %s1 = inlined_call_operand.vmem [shape: f32[2,2,8,32], index: 1, kind: input, shape index: {}]
  %s2 = inlined_call_operand.vmem [shape: f32[2,2,8,32], index: 2, kind: input, shape index: {}]
  %s3 = inlined_call_operand.vmem [shape: f32[2,128,32], index: 3, kind: input, shape index: {}]
  %s4 = inlined_call_operand.vmem [shape: f32[2,4,8], index: 4, kind: input, shape index: {}]
  %s5 = inlined_call_operand.vmem [shape: f32[2,4,8], index: 5, kind: input, shape index: {}]
  %s6 = inlined_call_operand.vmem [shape: f32[2,1,8], index: 6, kind: input, shape index: {}]
  %s7 = inlined_call_operand.vmem [shape: f32[2,32,32], index: 7, kind: input, shape index: {}]
  %s8 = inlined_call_operand.vmem [shape: f32[2,1,32], index: 8, kind: input, shape index: {}]
  %s9 = inlined_call_operand.vmem [shape: f32[2,2,8,32], index: 9, kind: output, shape index: {}]
  %s10 = sld [smem:[#allocation0]]
  $region69: #{two_stream_rel_transformer_layer.13} parent=0
    _
  %s12 = ssub.s32 1, %s10
  %s13 = scalar_select 0, %s12, %s10
  loop: start=0, step=1, limit=6
  $region2: #{two_stream_rel_transformer_layer.13} parent=0 // loop_pre_header
    _
  $region3: #{two_stream_rel_transformer_layer.13} parent=0 // loop_header
    %s15 = sphi 0, %s19
    %p16 = scmp.ge.s32.totalorder %s15, 6
    %s22 = sphi 0, %s34
    %s23 = sphi 0, %s30
    %s24 = sphi 0, %s22
    %s25 = sphi 0, %s23
    %s26 = sphi 0, %s24
    %s27 = sphi 0, %s25
    %s39 = sphi 0, %s41
    %s42 = sphi 0, %s39
    %s43 = sphi 0, %s42
    %s59 = sphi 0, %s43
    %s67 = sphi 0, %s69
    %s70 = sphi 0, %s67
    %s71 = sphi 0, %s70
    %s87 = sphi 0, %s71
    %s95 = sphi 0, %s97
    %s98 = sphi 0, %s95
    %s99 = sphi 0, %s98
    %s115 = sphi 0, %s99
    %s121 = sphi 0, %s123
    %s124 = sphi 0, %s121
    %s125 = sphi 0, %s124
    %s141 = sphi 0, %s125
    %s147 = sphi 0, %s149
    %s150 = sphi 0, %s147
    %s151 = sphi 0, %s150
    %s167 = sphi 0, %s151
    %s173 = sphi 0, %s175
    %s176 = sphi 0, %s173
    %s177 = sphi 0, %s176
    %s193 = sphi 0, %s177
    %s199 = sphi 0, %s201
    %s202 = sphi 0, %s199
    %s203 = sphi 0, %s202
    %s219 = sphi 0, %s203
    %s225 = sphi 0, %s227
    %s228 = sphi 0, %s225
    %s229 = sphi 0, %s228
    %s245 = sphi 0, %s229
    %s251 = sphi 0, %s253
    %s254 = sphi 0, %s251
    %s255 = sphi 0, %s254
    %s271 = sphi 0, %s255
    %s279 = sphi 0, %s281
    %s282 = sphi 0, %s279
    %s283 = sphi 0, %s282
    %s299 = sphi 0, %s283
  $region4: #{two_stream_rel_transformer_layer.13} parent=0 // loop_header_branch
    %18 = sbr.rel (%p16) target = $region8
  $region5: #{two_stream_rel_transformer_layer.13} parent=0 // loop_body
    %s20 = ssub.s32 %s15, 1
    %s21 = ssub.s32 %s15, 2
    %s28 = sadd.s32 1, %s23
    %p29 = scmp.ge.s32.totalorder %s28, 2
    %s30 = scalar_select %p29, 0, %s28
    %s31 = sadd.s32 1, %s22
    %s32 = scalar_select %p29, %s31, %s22
    %p33 = scmp.ge.s32.totalorder %s32, 2
    %s34 = scalar_select %p33, 0, %s32
    %s35 = ssub.s32 %s22, %s34
    %s36 = ssub.s32 %s23, %s30
    %s37 = sor.u32 %s35, %s36
    %p38 = scmp.eq.s32.totalorder %s37, 0
    %s40 = sadd.s32 %s39, 1
    %s41 = scalar_select %p38, %s39, %s40
    %p44 = pneg %p38
    %p45 = scmp.eq.s32.totalorder %s15, 3
    %p46 = por %p44, %p45
    %p47 = scmp.ne.s32.totalorder %s39, %s42
    %p48 = scmp.eq.s32.totalorder %s15, 0
    %p49 = por %p47, %p48
    %p50 = scmp.ne.s32.totalorder %s39, %s42
    %p51 = scmp.eq.s32.totalorder %s20, 3
    %p52 = por %p50, %p51
    %p53 = scmp.ne.s32.totalorder %s42, %s43
    %p54 = scmp.eq.s32.totalorder %s20, 0
    %p55 = por %p53, %p54
    %p56 = scmp.ne.s32.totalorder %s42, %s43
    %p57 = scmp.eq.s32.totalorder %s21, 3
    %p58 = por %p56, %p57
    %p60 = scmp.ne.s32.totalorder %s43, %s59
    %p61 = scmp.eq.s32.totalorder %s21, 0
    %p62 = por %p60, %p61
    %s63 = ssub.s32 %s22, %s34
    %s64 = ssub.s32 %s23, %s30
    %s65 = sor.u32 %s63, %s64
    %p66 = scmp.eq.s32.totalorder %s65, 0
    %s68 = sadd.s32 %s67, 1
    %s69 = scalar_select %p66, %s67, %s68
    %p72 = pneg %p66
    %p73 = scmp.eq.s32.totalorder %s15, 3
    %p74 = por %p72, %p73
    %p75 = scmp.ne.s32.totalorder %s67, %s70
    %p76 = scmp.eq.s32.totalorder %s15, 0
    %p77 = por %p75, %p76
    %p78 = scmp.ne.s32.totalorder %s67, %s70
    %p79 = scmp.eq.s32.totalorder %s20, 3
    %p80 = por %p78, %p79
    %p81 = scmp.ne.s32.totalorder %s70, %s71
    %p82 = scmp.eq.s32.totalorder %s20, 0
    %p83 = por %p81, %p82
    %p84 = scmp.ne.s32.totalorder %s70, %s71
    %p85 = scmp.eq.s32.totalorder %s21, 3
    %p86 = por %p84, %p85
    %p88 = scmp.ne.s32.totalorder %s71, %s87
    %p89 = scmp.eq.s32.totalorder %s21, 0
    %p90 = por %p88, %p89
    %s91 = ssub.s32 %s22, %s34
    %s92 = ssub.s32 %s23, %s30
    %s93 = sor.u32 %s91, %s92
    %p94 = scmp.eq.s32.totalorder %s93, 0
    %s96 = sadd.s32 %s95, 1
    %s97 = scalar_select %p94, %s95, %s96
    %p100 = pneg %p94
    %p101 = scmp.eq.s32.totalorder %s15, 3
    %p102 = por %p100, %p101
    %p103 = scmp.ne.s32.totalorder %s95, %s98
    %p104 = scmp.eq.s32.totalorder %s15, 0
    %p105 = por %p103, %p104
    %p106 = scmp.ne.s32.totalorder %s95, %s98
    %p107 = scmp.eq.s32.totalorder %s20, 3
    %p108 = por %p106, %p107
    %p109 = scmp.ne.s32.totalorder %s98, %s99
    %p110 = scmp.eq.s32.totalorder %s20, 0
    %p111 = por %p109, %p110
    %p112 = scmp.ne.s32.totalorder %s98, %s99
    %p113 = scmp.eq.s32.totalorder %s21, 3
    %p114 = por %p112, %p113
    %p116 = scmp.ne.s32.totalorder %s99, %s115
    %p117 = scmp.eq.s32.totalorder %s21, 0
    %p118 = por %p116, %p117
    %s119 = ssub.s32 %s22, %s34
    %p120 = scmp.eq.s32.totalorder %s119, 0
    %s122 = sadd.s32 %s121, 1
    %s123 = scalar_select %p120, %s121, %s122
    %p126 = pneg %p120
    %p127 = scmp.eq.s32.totalorder %s15, 3
    %p128 = por %p126, %p127
    %p129 = scmp.ne.s32.totalorder %s121, %s124
    %p130 = scmp.eq.s32.totalorder %s15, 0
    %p131 = por %p129, %p130
    %p132 = scmp.ne.s32.totalorder %s121, %s124
    %p133 = scmp.eq.s32.totalorder %s20, 3
    %p134 = por %p132, %p133
    %p135 = scmp.ne.s32.totalorder %s124, %s125
    %p136 = scmp.eq.s32.totalorder %s20, 0
    %p137 = por %p135, %p136
    %p138 = scmp.ne.s32.totalorder %s124, %s125
    %p139 = scmp.eq.s32.totalorder %s21, 3
    %p140 = por %p138, %p139
    %p142 = scmp.ne.s32.totalorder %s125, %s141
    %p143 = scmp.eq.s32.totalorder %s21, 0
    %p144 = por %p142, %p143
    %s145 = ssub.s32 %s22, %s34
    %p146 = scmp.eq.s32.totalorder %s145, 0
    %s148 = sadd.s32 %s147, 1
    %s149 = scalar_select %p146, %s147, %s148
    %p152 = pneg %p146
    %p153 = scmp.eq.s32.totalorder %s15, 3
    %p154 = por %p152, %p153
    %p155 = scmp.ne.s32.totalorder %s147, %s150
    %p156 = scmp.eq.s32.totalorder %s15, 0
    %p157 = por %p155, %p156
    %p158 = scmp.ne.s32.totalorder %s147, %s150
    %p159 = scmp.eq.s32.totalorder %s20, 3
    %p160 = por %p158, %p159
    %p161 = scmp.ne.s32.totalorder %s150, %s151
    %p162 = scmp.eq.s32.totalorder %s20, 0
    %p163 = por %p161, %p162
    %p164 = scmp.ne.s32.totalorder %s150, %s151
    %p165 = scmp.eq.s32.totalorder %s21, 3
    %p166 = por %p164, %p165
    %p168 = scmp.ne.s32.totalorder %s151, %s167
    %p169 = scmp.eq.s32.totalorder %s21, 0
    %p170 = por %p168, %p169
    %s171 = ssub.s32 %s22, %s34
    %p172 = scmp.eq.s32.totalorder %s171, 0
    %s174 = sadd.s32 %s173, 1
    %s175 = scalar_select %p172, %s173, %s174
    %p178 = pneg %p172
    %p179 = scmp.eq.s32.totalorder %s15, 3
    %p180 = por %p178, %p179
    %p181 = scmp.ne.s32.totalorder %s173, %s176
    %p182 = scmp.eq.s32.totalorder %s15, 0
    %p183 = por %p181, %p182
    %p184 = scmp.ne.s32.totalorder %s173, %s176
    %p185 = scmp.eq.s32.totalorder %s20, 3
    %p186 = por %p184, %p185
    %p187 = scmp.ne.s32.totalorder %s176, %s177
    %p188 = scmp.eq.s32.totalorder %s20, 0
    %p189 = por %p187, %p188
    %p190 = scmp.ne.s32.totalorder %s176, %s177
    %p191 = scmp.eq.s32.totalorder %s21, 3
    %p192 = por %p190, %p191
    %p194 = scmp.ne.s32.totalorder %s177, %s193
    %p195 = scmp.eq.s32.totalorder %s21, 0
    %p196 = por %p194, %p195
    %s197 = ssub.s32 %s23, %s30
    %p198 = scmp.eq.s32.totalorder %s197, 0
    %s200 = sadd.s32 %s199, 1
    %s201 = scalar_select %p198, %s199, %s200
    %p204 = pneg %p198
    %p205 = scmp.eq.s32.totalorder %s15, 3
    %p206 = por %p204, %p205
    %p207 = scmp.ne.s32.totalorder %s199, %s202
    %p208 = scmp.eq.s32.totalorder %s15, 0
    %p209 = por %p207, %p208
    %p210 = scmp.ne.s32.totalorder %s199, %s202
    %p211 = scmp.eq.s32.totalorder %s20, 3
    %p212 = por %p210, %p211
    %p213 = scmp.ne.s32.totalorder %s202, %s203
    %p214 = scmp.eq.s32.totalorder %s20, 0
    %p215 = por %p213, %p214
    %p216 = scmp.ne.s32.totalorder %s202, %s203
    %p217 = scmp.eq.s32.totalorder %s21, 3
    %p218 = por %p216, %p217
    %p220 = scmp.ne.s32.totalorder %s203, %s219
    %p221 = scmp.eq.s32.totalorder %s21, 0
    %p222 = por %p220, %p221
    %s223 = ssub.s32 %s22, %s34
    %p224 = scmp.eq.s32.totalorder %s223, 0
    %s226 = sadd.s32 %s225, 1
    %s227 = scalar_select %p224, %s225, %s226
    %p230 = pneg %p224
    %p231 = scmp.eq.s32.totalorder %s15, 3
    %p232 = por %p230, %p231
    %p233 = scmp.ne.s32.totalorder %s225, %s228
    %p234 = scmp.eq.s32.totalorder %s15, 0
    %p235 = por %p233, %p234
    %p236 = scmp.ne.s32.totalorder %s225, %s228
    %p237 = scmp.eq.s32.totalorder %s20, 3
    %p238 = por %p236, %p237
    %p239 = scmp.ne.s32.totalorder %s228, %s229
    %p240 = scmp.eq.s32.totalorder %s20, 0
    %p241 = por %p239, %p240
    %p242 = scmp.ne.s32.totalorder %s228, %s229
    %p243 = scmp.eq.s32.totalorder %s21, 3
    %p244 = por %p242, %p243
    %p246 = scmp.ne.s32.totalorder %s229, %s245
    %p247 = scmp.eq.s32.totalorder %s21, 0
    %p248 = por %p246, %p247
    %s249 = ssub.s32 %s22, %s34
    %p250 = scmp.eq.s32.totalorder %s249, 0
    %s252 = sadd.s32 %s251, 1
    %s253 = scalar_select %p250, %s251, %s252
    %p256 = pneg %p250
    %p257 = scmp.eq.s32.totalorder %s15, 3
    %p258 = por %p256, %p257
    %p259 = scmp.ne.s32.totalorder %s251, %s254
    %p260 = scmp.eq.s32.totalorder %s15, 0
    %p261 = por %p259, %p260
    %p262 = scmp.ne.s32.totalorder %s251, %s254
    %p263 = scmp.eq.s32.totalorder %s20, 3
    %p264 = por %p262, %p263
    %p265 = scmp.ne.s32.totalorder %s254, %s255
    %p266 = scmp.eq.s32.totalorder %s20, 0
    %p267 = por %p265, %p266
    %p268 = scmp.ne.s32.totalorder %s254, %s255
    %p269 = scmp.eq.s32.totalorder %s21, 3
    %p270 = por %p268, %p269
    %p272 = scmp.ne.s32.totalorder %s255, %s271
    %p273 = scmp.eq.s32.totalorder %s21, 0
    %p274 = por %p272, %p273
    %s275 = ssub.s32 %s22, %s34
    %s276 = ssub.s32 %s23, %s30
    %s277 = sor.u32 %s275, %s276
    %p278 = scmp.eq.s32.totalorder %s277, 0
    %s280 = sadd.s32 %s279, 1
    %s281 = scalar_select %p278, %s279, %s280
    %p284 = pneg %p278
    %p285 = scmp.eq.s32.totalorder %s15, 3
    %p286 = por %p284, %p285
    %p287 = scmp.ne.s32.totalorder %s279, %s282
    %p288 = scmp.eq.s32.totalorder %s15, 0
    %p289 = por %p287, %p288
    %p290 = scmp.ne.s32.totalorder %s279, %s282
    %p291 = scmp.eq.s32.totalorder %s20, 3
    %p292 = por %p290, %p291
    %p293 = scmp.ne.s32.totalorder %s282, %s283
    %p294 = scmp.eq.s32.totalorder %s20, 0
    %p295 = por %p293, %p294
    %p296 = scmp.ne.s32.totalorder %s282, %s283
    %p297 = scmp.eq.s32.totalorder %s21, 3
    %p298 = por %p296, %p297
    %p300 = scmp.ne.s32.totalorder %s283, %s299
    %p301 = scmp.eq.s32.totalorder %s21, 0
    %p302 = por %p300, %p301
    %p303 = scmp.le.s32.totalorder 1, %s15
    %p304 = scmp.lt.s32.totalorder %s15, 5
    %p305 = pnand %p303, %p304
    %p306 = pneg %p305
    // Predicated region
    $region9: #{two_stream_rel_transformer_layer.13} parent=5 // pred_check
      _
    $region10: #{two_stream_rel_transformer_layer.13} parent=5 // pred_check_branch
      %308 = sbr.rel (%p305) target = $region12
    $region11: #{two_stream_rel_transformer_layer.13} parent=5 // pred_region
      %s309 = ssub.s32 %s15, 1
    $region12: #{two_stream_rel_transformer_layer.13} parent=5 // pred_fallthru
      _
    %p310 = scmp.lt.s32.totalorder %s15, 4
    // Predicated region
    $region13: #{two_stream_rel_transformer_layer.13} parent=5 // pred_check
      %p311 = pneg %p310
    $region14: #{two_stream_rel_transformer_layer.13} parent=5 // pred_check_branch
      %313 = sbr.rel (%p311) target = $region16
    $region15: #{two_stream_rel_transformer_layer.13} parent=5 // pred_region
      // Predicated region
      $region17: #{two_stream_rel_transformer_layer.13} parent=15 // pred_check
        %p314 = pneg %p49
      $region18: #{two_stream_rel_transformer_layer.13} parent=15 // pred_check_branch
        %316 = sbr.rel (%p314) target = $region20
      $region19: #{two_stream_rel_transformer_layer.13} parent=15 // pred_region
        %p317 = scmp.lt.s32.totalorder %s22, 1
        %s318 = scalar_select %p317, %s22, 1
        %p319 = scmp.lt.s32.totalorder %s23, 1
        %s320 = scalar_select %p319, %s23, 1
        %s321 = smul.addr %s318, 2
        %s322 = sadd.s32 %s320, %s321
        %s323 = smul.addr %s322, 8
        %s324 = scalar_lea.vmem %s0, %s323
      $region20: #{two_stream_rel_transformer_layer.13} parent=15 // pred_fallthru
        _
      // Predicated region
      $region21: #{two_stream_rel_transformer_layer.13} parent=15 // pred_check
        %p325 = pneg %p77
      $region22: #{two_stream_rel_transformer_layer.13} parent=15 // pred_check_branch
        %327 = sbr.rel (%p325) target = $region24
      $region23: #{two_stream_rel_transformer_layer.13} parent=15 // pred_region
        %p328 = scmp.lt.s32.totalorder %s22, 1
        %s329 = scalar_select %p328, %s22, 1
        %p330 = scmp.lt.s32.totalorder %s23, 1
        %s331 = scalar_select %p330, %s23, 1
        %s332 = smul.addr %s329, 2
        %s333 = sadd.s32 %s331, %s332
        %s334 = smul.addr %s333, 8
        %s335 = scalar_lea.vmem %s1, %s334
      $region24: #{two_stream_rel_transformer_layer.13} parent=15 // pred_fallthru
        _
      // Predicated region
      $region25: #{two_stream_rel_transformer_layer.13} parent=15 // pred_check
        %p336 = pneg %p105
      $region26: #{two_stream_rel_transformer_layer.13} parent=15 // pred_check_branch
        %338 = sbr.rel (%p336) target = $region28
      $region27: #{two_stream_rel_transformer_layer.13} parent=15 // pred_region
        %p339 = scmp.lt.s32.totalorder %s22, 1
        %s340 = scalar_select %p339, %s22, 1
        %p341 = scmp.lt.s32.totalorder %s23, 1
        %s342 = scalar_select %p341, %s23, 1
        %s343 = smul.addr %s340, 2
        %s344 = sadd.s32 %s342, %s343
        %s345 = smul.addr %s344, 8
        %s346 = scalar_lea.vmem %s2, %s345
      $region28: #{two_stream_rel_transformer_layer.13} parent=15 // pred_fallthru
        _
      // Predicated region
      $region29: #{two_stream_rel_transformer_layer.13} parent=15 // pred_check
        %p347 = pneg %p131
      $region30: #{two_stream_rel_transformer_layer.13} parent=15 // pred_check_branch
        %349 = sbr.rel (%p347) target = $region32
      $region31: #{two_stream_rel_transformer_layer.13} parent=15 // pred_region
        %p350 = scmp.lt.s32.totalorder %s22, 1
        %s351 = scalar_select %p350, %s22, 1
        %s352 = smul.addr %s351, 16
        %s353 = smul.addr %s352, 8
        %s354 = scalar_lea.vmem %s3, %s353
      $region32: #{two_stream_rel_transformer_layer.13} parent=15 // pred_fallthru
        _
      // Predicated region
      $region33: #{two_stream_rel_transformer_layer.13} parent=15 // pred_check
        %p355 = pneg %p157
      $region34: #{two_stream_rel_transformer_layer.13} parent=15 // pred_check_branch
        %357 = sbr.rel (%p355) target = $region36
      $region35: #{two_stream_rel_transformer_layer.13} parent=15 // pred_region
        %p358 = scmp.lt.s32.totalorder %s22, 1
        %s359 = scalar_select %p358, %s22, 1
        %s360 = smul.addr %s359, 4
        %s361 = scalar_lea.vmem %s4, %s360
      $region36: #{two_stream_rel_transformer_layer.13} parent=15 // pred_fallthru
        _
      // Predicated region
      $region37: #{two_stream_rel_transformer_layer.13} parent=15 // pred_check
        %p362 = pneg %p183
      $region38: #{two_stream_rel_transformer_layer.13} parent=15 // pred_check_branch
        %364 = sbr.rel (%p362) target = $region40
      $region39: #{two_stream_rel_transformer_layer.13} parent=15 // pred_region
        %p365 = scmp.lt.s32.totalorder %s22, 1
        %s366 = scalar_select %p365, %s22, 1
        %s367 = smul.addr %s366, 4
        %s368 = scalar_lea.vmem %s5, %s367
      $region40: #{two_stream_rel_transformer_layer.13} parent=15 // pred_fallthru
        _
      // Predicated region
      $region41: #{two_stream_rel_transformer_layer.13} parent=15 // pred_check
        %p369 = pneg %p209
      $region42: #{two_stream_rel_transformer_layer.13} parent=15 // pred_check_branch
        %371 = sbr.rel (%p369) target = $region44
      $region43: #{two_stream_rel_transformer_layer.13} parent=15 // pred_region
        %p372 = scmp.lt.s32.totalorder %s23, 1
        %s373 = scalar_select %p372, %s23, 1
        %s374 = scalar_lea.vmem %s6, %s373
      $region44: #{two_stream_rel_transformer_layer.13} parent=15 // pred_fallthru
        _
      // Predicated region
      $region45: #{two_stream_rel_transformer_layer.13} parent=15 // pred_check
        %p375 = pneg %p235
      $region46: #{two_stream_rel_transformer_layer.13} parent=15 // pred_check_branch
        %377 = sbr.rel (%p375) target = $region48
      $region47: #{two_stream_rel_transformer_layer.13} parent=15 // pred_region
        %p378 = scmp.lt.s32.totalorder %s22, 1
        %s379 = scalar_select %p378, %s22, 1
        %s380 = smul.addr %s379, 4
        %s381 = smul.addr %s380, 8
        %s382 = scalar_lea.vmem %s7, %s381
      $region48: #{two_stream_rel_transformer_layer.13} parent=15 // pred_fallthru
        _
      // Predicated region
      $region49: #{two_stream_rel_transformer_layer.13} parent=15 // pred_check
        %p383 = pneg %p261
      $region50: #{two_stream_rel_transformer_layer.13} parent=15 // pred_check_branch
        %385 = sbr.rel (%p383) target = $region52
      $region51: #{two_stream_rel_transformer_layer.13} parent=15 // pred_region
        %p386 = scmp.lt.s32.totalorder %s22, 1
        %s387 = scalar_select %p386, %s22, 1
        %s388 = scalar_lea.vmem %s8, %s387
      $region52: #{two_stream_rel_transformer_layer.13} parent=15 // pred_fallthru
        _
    $region16: #{two_stream_rel_transformer_layer.13} parent=5 // pred_fallthru
      _
    %p389 = scmp.le.s32.totalorder 1, %s15
    %p390 = scmp.lt.s32.totalorder %s15, 5
    %p391 = pnand %p389, %p390
    %p392 = pneg %p391
    // Predicated region
    $region53: #{two_stream_rel_transformer_layer.13} parent=5 // pred_check
      _
    $region54: #{two_stream_rel_transformer_layer.13} parent=5 // pred_check_branch
      %394 = sbr.rel (%p391) target = $region56
    $region55: #{two_stream_rel_transformer_layer.13} parent=5 // pred_region
      %s395 = ssub.s32 %s15, 1
      %p396 = scmp.lt.s32.totalorder %s24, 1
      %s397 = scalar_select %p396, %s24, 1
      %p398 = scmp.lt.s32.totalorder %s25, 1
      %s399 = scalar_select %p398, %s25, 1
      %s400 = smul.addr %s397, 2
      %s401 = sadd.s32 %s399, %s400
      %s402 = smul.addr %s401, 8
      %s403 = scalar_lea.vmem %s0, %s402
      %p404 = pneg %p55
      %p405 = pneg %p52
      %p406 = scmp.lt.s32.totalorder %s24, 1
      %s407 = scalar_select %p406, %s24, 1
      %p408 = scmp.lt.s32.totalorder %s25, 1
      %s409 = scalar_select %p408, %s25, 1
      %s410 = smul.addr %s407, 2
      %s411 = sadd.s32 %s409, %s410
      %s412 = smul.addr %s411, 8
      %s413 = scalar_lea.vmem %s1, %s412
      %p414 = pneg %p83
      %p415 = pneg %p80
      %p416 = scmp.lt.s32.totalorder %s24, 1
      %s417 = scalar_select %p416, %s24, 1
      %p418 = scmp.lt.s32.totalorder %s25, 1
      %s419 = scalar_select %p418, %s25, 1
      %s420 = smul.addr %s417, 2
      %s421 = sadd.s32 %s419, %s420
      %s422 = smul.addr %s421, 8
      %s423 = scalar_lea.vmem %s2, %s422
      %p424 = pneg %p111
      %p425 = pneg %p108
      %p426 = scmp.lt.s32.totalorder %s24, 1
      %s427 = scalar_select %p426, %s24, 1
      %s428 = smul.addr %s427, 16
      %s429 = smul.addr %s428, 8
      %s430 = scalar_lea.vmem %s3, %s429
      %p431 = pneg %p137
      %p432 = pneg %p134
      %p433 = scmp.lt.s32.totalorder %s24, 1
      %s434 = scalar_select %p433, %s24, 1
      %s435 = smul.addr %s434, 4
      %s436 = scalar_lea.vmem %s4, %s435
      %p437 = pneg %p163
      %p438 = pneg %p160
      %p439 = scmp.lt.s32.totalorder %s24, 1
      %s440 = scalar_select %p439, %s24, 1
      %s441 = smul.addr %s440, 4
      %s442 = scalar_lea.vmem %s5, %s441
      %p443 = pneg %p189
      %p444 = pneg %p186
      %p445 = scmp.lt.s32.totalorder %s25, 1
      %s446 = scalar_select %p445, %s25, 1
      %s447 = scalar_lea.vmem %s6, %s446
      %p448 = pneg %p215
      %p449 = pneg %p212
      %p450 = scmp.lt.s32.totalorder %s24, 1
      %s451 = scalar_select %p450, %s24, 1
      %s452 = smul.addr %s451, 4
      %s453 = smul.addr %s452, 8
      %s454 = scalar_lea.vmem %s7, %s453
      %p455 = pneg %p241
      %p456 = pneg %p238
      %p457 = scmp.lt.s32.totalorder %s24, 1
      %s458 = scalar_select %p457, %s24, 1
      %s459 = scalar_lea.vmem %s8, %s458
      %p460 = pneg %p267
      %p461 = pneg %p264
      %p462 = pneg %p295
      %p463 = pneg %p292
      %p464 = scmp.lt.s32.totalorder %s24, 1
      %s465 = scalar_select %p464, %s24, 1
      %p466 = scmp.lt.s32.totalorder %s25, 1
      %s467 = scalar_select %p466, %s25, 1
      %s468 = smul.addr %s465, 2
      %s469 = sadd.s32 %s467, %s468
      %s470 = smul.addr %s469, 8
      %s471 = scalar_lea.vmem %s9, %s470
      %p472 = scmp.lt.s32.totalorder %s24, 1
      %s473 = scalar_select %p472, %s24, 1
      %p474 = scmp.lt.s32.totalorder %s25, 1
      %s475 = scalar_select %p474, %s25, 1
      %s476 = smul.addr %s473, 2
      %s477 = sadd.s32 %s475, %s476
      %s478 = smul.addr %s477, 8
      %s479 = scalar_lea.vmem %s0, %s478
      %p480 = scmp.lt.s32.totalorder %s24, 1
      %s481 = scalar_select %p480, %s24, 1
      %p482 = scmp.lt.s32.totalorder %s25, 1
      %s483 = scalar_select %p482, %s25, 1
      %s484 = smul.addr %s481, 2
      %s485 = sadd.s32 %s483, %s484
      %s486 = smul.addr %s485, 8
      %s487 = scalar_lea.vmem %s1, %s486
      %p488 = scmp.lt.s32.totalorder %s24, 1
      %s489 = scalar_select %p488, %s24, 1
      %p490 = scmp.lt.s32.totalorder %s25, 1
      %s491 = scalar_select %p490, %s25, 1
      %s492 = smul.addr %s489, 2
      %s493 = sadd.s32 %s491, %s492
      %s494 = smul.addr %s493, 8
      %s495 = scalar_lea.vmem %s2, %s494
      %p496 = scmp.lt.s32.totalorder %s24, 1
      %s497 = scalar_select %p496, %s24, 1
      %s498 = smul.addr %s497, 16
      %s499 = smul.addr %s498, 8
      %s500 = scalar_lea.vmem %s3, %s499
      %p501 = scmp.lt.s32.totalorder %s24, 1
      %s502 = scalar_select %p501, %s24, 1
      %s503 = smul.addr %s502, 4
      %s504 = scalar_lea.vmem %s4, %s503
      %p505 = scmp.lt.s32.totalorder %s24, 1
      %s506 = scalar_select %p505, %s24, 1
      %s507 = smul.addr %s506, 4
      %s508 = scalar_lea.vmem %s5, %s507
      %p509 = scmp.lt.s32.totalorder %s25, 1
      %s510 = scalar_select %p509, %s25, 1
      %s511 = scalar_lea.vmem %s6, %s510
      %p512 = scmp.lt.s32.totalorder %s24, 1
      %s513 = scalar_select %p512, %s24, 1
      %s514 = smul.addr %s513, 4
      %s515 = smul.addr %s514, 8
      %s516 = scalar_lea.vmem %s7, %s515
      %p517 = scmp.lt.s32.totalorder %s24, 1
      %s518 = scalar_select %p517, %s24, 1
      %s519 = scalar_lea.vmem %s8, %s518
      %p520 = scmp.lt.s32.totalorder %s24, 1
      %s521 = scalar_select %p520, %s24, 1
      %p522 = scmp.lt.s32.totalorder %s25, 1
      %s523 = scalar_select %p522, %s25, 1
      %s524 = smul.addr %s521, 2
      %s525 = sadd.s32 %s523, %s524
      %s526 = smul.addr %s525, 8
      %s527 = scalar_lea.vmem %s9, %s526
      %v529 = vld [vmem:[%s479] sm:$0xff]
      %v530 = vld [vmem:[%s487] sm:$0xff]
      %v531 = vld [vmem:[%s495] sm:$0xff]
      %v532 = vld [vmem:[%s500] sm:$0xff]
      %v533 = vld [vmem:[%s500 + $0x8] sm:$0xff]
      %v534 = vld [vmem:[%s500 + $0x10] sm:$0xff]
      %v535 = vld [vmem:[%s500 + $0x18] sm:$0xff]
      %v536 = vld [vmem:[%s500 + $0x20] sm:$0xff]
      %v537 = vld [vmem:[%s500 + $0x28] sm:$0xff]
      %v538 = vld [vmem:[%s500 + $0x30] sm:$0xff]
      %v539 = vld [vmem:[%s500 + $0x38] sm:$0xff]
      %v540 = vld [vmem:[%s500 + $0x40] sm:$0xff]
      %v541 = vld [vmem:[%s500 + $0x48] sm:$0xff]
      %v542 = vld [vmem:[%s500 + $0x50] sm:$0xff]
      %v543 = vld [vmem:[%s500 + $0x58] sm:$0xff]
      %v544 = vld [vmem:[%s500 + $0x60] sm:$0xff]
      %v545 = vld [vmem:[%s500 + $0x68] sm:$0xff]
      %v546 = vld [vmem:[%s500 + $0x70] sm:$0xff]
      %v547 = vld [vmem:[%s500 + $0x78] sm:$0xff]
      %v548 = vld [vmem:[%s504] sm:$0xf]
      %v549 = vld [vmem:[%s508] sm:$0xf]
      %v550 = vld [vmem:[%s511] sm:$0x1]
      %v551 = vld [vmem:[%s516] sm:$0xff]
      %v552 = vld [vmem:[%s516 + $0x8] sm:$0xff]
      %v553 = vld [vmem:[%s516 + $0x10] sm:$0xff]
      %v554 = vld [vmem:[%s516 + $0x18] sm:$0xff]
      %v555 = vld [vmem:[%s519] sm:$0x1]
      %v557 = vlaneseq
      %v558 = vshrl.u32 %v557, 7
      %v559 = vsub.s32 0, %v558
      %v560 = vrot.slane %v555, %v559
      %v562 = vpack.c.bf16 %v530, %v530
      %v563 = vpack.c.bf16 %v531, %v531
      %v564 = vpack.c.bf16 %v533, %v532
      %v565 = vpack.c.bf16 %v535, %v534
      %v566 = vpack.c.bf16 %v537, %v536
      %v567 = vpack.c.bf16 %v539, %v538
      %v568 = vpack.c.bf16 %v541, %v540
      %v569 = vpack.c.bf16 %v543, %v542
      %v570 = vpack.c.bf16 %v545, %v544
      %v571 = vpack.c.bf16 %v547, %v546
      %v572 = vlaneseq
      %v573 = vshrl.u32 %v572, 7
      %v574 = vsub.s32 0, %v573
      %v575 = vrot.slane %v548, %v574
      %v576 = vadd.f32 %v529, %v575
      %v577 = vpack.c.bf16 %v576, %v576
      %v578 = vlaneseq
      %v579 = vshrl.u32 %v578, 7
      %v580 = vsub.s32 0, %v579
      %v581 = vrot.slane %v549, %v580
      %v582 = vadd.f32 %v529, %v581
      %v583 = vpack.c.bf16 %v582, %v582
      %vm584 = vcmask 64512
      %v586 = vsel %vm584, %v583, 0
      %v589 = vsel %vm584, %v564, 0
      %v592 = vsel %vm584, %v565, 0
      %v595 = vsel %vm584, %v566, 0
      %v598 = vsel %vm584, %v567, 0
      %v601 = vsel %vm584, %v568, 0
      %v604 = vsel %vm584, %v569, 0
      %v607 = vsel %vm584, %v570, 0
      %v610 = vsel %vm584, %v571, 0
      %612 = vmatprep.subr.bf16.mxu0 0
      %613 = vmatpush1.bf16.xpose.msra.mxu0 %v610
      %614 = vmatprep.subr.bf16.mxu0 0
      %615 = vmatpush1.bf16.xpose.msra.mxu0 %v607
      %616 = vmatprep.subr.bf16.mxu0 0
      %617 = vmatpush1.bf16.xpose.msra.mxu0 %v604
      %618 = vmatprep.subr.bf16.mxu0 0
      %619 = vmatpush1.bf16.xpose.msra.mxu0 %v601
      %620 = vmatprep.subr.bf16.mxu0 0
      %621 = vmatpush1.bf16.xpose.msra.mxu0 %v598
      %622 = vmatprep.subr.bf16.mxu0 0
      %623 = vmatpush1.bf16.xpose.msra.mxu0 %v595
      %624 = vmatprep.subr.bf16.mxu0 0
      %625 = vmatpush1.bf16.xpose.msra.mxu0 %v592
      %626 = vmatprep.subr.bf16.mxu0 0
      %627 = vmatpush1.bf16.xpose.msra.mxu0 %v589
      %628 = vmatprep.subr.bf16.mxu0 0
      %629 = vmatpush2.bf16.xpose.msra.mxu0 0
      %630 = vmatprep.subr.bf16.mxu0 0
      %631 = vmatpush2.bf16.xpose.msra.mxu0 0
      %632 = vmatprep.subr.bf16.mxu0 0
      %633 = vmatpush2.bf16.xpose.msra.mxu0 0
      %634 = vmatprep.subr.bf16.mxu0 0
      %635 = vmatpush2.bf16.xpose.msra.mxu0 0
      %636 = vmatprep.subr.bf16.mxu0 0
      %637 = vmatpush2.bf16.xpose.msra.mxu0 0
      %638 = vmatprep.subr.bf16.mxu0 0
      %639 = vmatpush2.bf16.xpose.msra.mxu0 0
      %640 = vmatprep.subr.bf16.mxu0 0
      %641 = vmatpush2.bf16.xpose.msra.mxu0 0
      %642 = vmatprep.subr.bf16.mxu0 0
      %643 = vmatpush2.bf16.xpose.msra.mxu0 0
      %644 = vmatprep.mubr.bf16.mxu0 0
      %645 = vmatmul.mubr.bf16.gmra.mxu0 %v586
      %v646 = vpop.f32.mrf.mxu0
      %v647 = vadd.f32 0.0, %v646
      %v648 = vpop.f32.mrf.mxu0
      %v649 = vpop.f32.mrf.mxu0
      %v650 = vpop.f32.mrf.mxu0
      %651 = vdwg.mxu0
      %s653 = sor.u32 256, 120
      %654 = vrot.lane.b32.xlu0 %v647, %s653
      %v655 = vpop.permute.xlu0 %654
      %v657 = vsel %vm584, %v577, 0
      %v660 = vsel %vm584, %v562, 0
      %662 = vmatprep.subr.bf16.mxu0 0
      %663 = vmatpush1.bf16.xpose.msra.mxu0 0
      %664 = vmatprep.subr.bf16.mxu0 0
      %665 = vmatpush1.bf16.xpose.msra.mxu0 0
      %666 = vmatprep.subr.bf16.mxu0 0
      %667 = vmatpush1.bf16.xpose.msra.mxu0 0
      %668 = vmatprep.subr.bf16.mxu0 0
      %669 = vmatpush1.bf16.xpose.msra.mxu0 0
      %670 = vmatprep.subr.bf16.mxu0 0
      %671 = vmatpush1.bf16.xpose.msra.mxu0 0
      %672 = vmatprep.subr.bf16.mxu0 0
      %673 = vmatpush1.bf16.xpose.msra.mxu0 0
      %674 = vmatprep.subr.bf16.mxu0 0
      %675 = vmatpush1.bf16.xpose.msra.mxu0 0
      %676 = vmatprep.subr.bf16.mxu0 0
      %677 = vmatpush1.bf16.xpose.msra.mxu0 %v660
      %678 = vmatprep.subr.bf16.mxu0 0
      %679 = vmatpush2.bf16.xpose.msra.mxu0 0
      %680 = vmatprep.subr.bf16.mxu0 0
      %681 = vmatpush2.bf16.xpose.msra.mxu0 0
      %682 = vmatprep.subr.bf16.mxu0 0
      %683 = vmatpush2.bf16.xpose.msra.mxu0 0
      %684 = vmatprep.subr.bf16.mxu0 0
      %685 = vmatpush2.bf16.xpose.msra.mxu0 0
      %686 = vmatprep.subr.bf16.mxu0 0
      %687 = vmatpush2.bf16.xpose.msra.mxu0 0
      %688 = vmatprep.subr.bf16.mxu0 0
      %689 = vmatpush2.bf16.xpose.msra.mxu0 0
      %690 = vmatprep.subr.bf16.mxu0 0
      %691 = vmatpush2.bf16.xpose.msra.mxu0 0
      %692 = vmatprep.subr.bf16.mxu0 0
      %693 = vmatpush2.bf16.xpose.msra.mxu0 0
      %694 = vmatprep.mubr.bf16.mxu0 0
      %695 = vmatmul.mubr.bf16.gmra.mxu0 %v657
      %v696 = vpop.f32.mrf.mxu0
      %v697 = vadd.f32 %v655, %v696
      %v698 = vpop.f32.mrf.mxu0
      %v699 = vpop.f32.mrf.mxu0
      %v700 = vpop.f32.mrf.mxu0
      %701 = vdwg.mxu0
      %v702 = vmul.f32 %v697, 0.35355338
      %vm703 = vcmp.gt.f32.partialorder %v550, 0.5
      %v704 = vsel %vm703, 1, 0
      %v705 = vlaneseq
      %v706 = vshrl.u32 %v705, 7
      %v707 = vsub.s32 0, %v706
      %v708 = vrot.slane %v704, %v707
      %vm709 = vcmp.eq.s32.totalorder %v708, 1
      %v710 = vsel %vm709, %v702, -1e+30
      %v711 = vsel %vm584, %v710, -inf
      %712 = vmax.xlane.f32.xlu0 %v711
      %v713 = vpop.xlane.xlu0 %712
      %v714 = vsub.f32 %v710, %v713
      %v715 = vmul.f32 %v714, 1.442695
      %v716 = vpow.pop %v715
      %v717 = vsel %vm584, %v716, 0.0
      %718 = vadd.xlane.f32.xlu0 %v717
      %v719 = vpop.xlane.xlu0 %718
      %v720 = vrcp.pop %v719
      %v721 = vmul.f32 %v716, %v720
      %v722 = vpack.c.bf16 %v721, %v721
      %v724 = vsel %vm584, %v722, 0
      %vm726 = vcmask 1043456
      %v728 = vsel %vm726, %v563, 0
      %730 = vmatprep.subr.bf16.mxu0 0
      %731 = vmatpush1.bf16.msra.mxu0 0
      %732 = vmatprep.subr.bf16.mxu0 0
      %733 = vmatpush1.bf16.msra.mxu0 0
      %734 = vmatprep.subr.bf16.mxu0 0
      %735 = vmatpush1.bf16.msra.mxu0 0
      %736 = vmatprep.subr.bf16.mxu0 0
      %737 = vmatpush1.bf16.msra.mxu0 0
      %738 = vmatprep.subr.bf16.mxu0 0
      %739 = vmatpush1.bf16.msra.mxu0 0
      %740 = vmatprep.subr.bf16.mxu0 0
      %741 = vmatpush1.bf16.msra.mxu0 0
      %742 = vmatprep.subr.bf16.mxu0 0
      %743 = vmatpush1.bf16.msra.mxu0 0
      %744 = vmatprep.subr.bf16.mxu0 0
      %745 = vmatpush1.bf16.msra.mxu0 %v728
      %746 = vmatprep.subr.bf16.mxu0 0
      %747 = vmatpush2.bf16.msra.mxu0 0
      %748 = vmatprep.subr.bf16.mxu0 0
      %749 = vmatpush2.bf16.msra.mxu0 0
      %750 = vmatprep.subr.bf16.mxu0 0
      %751 = vmatpush2.bf16.msra.mxu0 0
      %752 = vmatprep.subr.bf16.mxu0 0
      %753 = vmatpush2.bf16.msra.mxu0 0
      %754 = vmatprep.subr.bf16.mxu0 0
      %755 = vmatpush2.bf16.msra.mxu0 0
      %756 = vmatprep.subr.bf16.mxu0 0
      %757 = vmatpush2.bf16.msra.mxu0 0
      %758 = vmatprep.subr.bf16.mxu0 0
      %759 = vmatpush2.bf16.msra.mxu0 0
      %760 = vmatprep.subr.bf16.mxu0 0
      %761 = vmatpush2.bf16.msra.mxu0 0
      %762 = vmatprep.mubr.bf16.mxu0 0
      %763 = vmatmul.mubr.bf16.gmra.mxu0 %v724
      %v764 = vpop.f32.mrf.mxu0
      %v765 = vadd.f32 0.0, %v764
      %v766 = vpop.f32.mrf.mxu0
      %v767 = vpop.f32.mrf.mxu0
      %v768 = vpop.f32.mrf.mxu0
      %769 = vdwg.mxu0
      %v770 = vpack.c.bf16 %v551, %v551
      %v771 = vpack.c.bf16 %v765, %v765
      %v773 = vsel %vm584, %v771, 0
      %v776 = vsel %vm726, %v770, 0
      %778 = vmatprep.subr.bf16.mxu0 0
      %779 = vmatpush1.bf16.msra.mxu0 0
      %780 = vmatprep.subr.bf16.mxu0 0
      %781 = vmatpush1.bf16.msra.mxu0 0
      %782 = vmatprep.subr.bf16.mxu0 0
      %783 = vmatpush1.bf16.msra.mxu0 0
      %784 = vmatprep.subr.bf16.mxu0 0
      %785 = vmatpush1.bf16.msra.mxu0 0
      %786 = vmatprep.subr.bf16.mxu0 0
      %787 = vmatpush1.bf16.msra.mxu0 0
      %788 = vmatprep.subr.bf16.mxu0 0
      %789 = vmatpush1.bf16.msra.mxu0 0
      %790 = vmatprep.subr.bf16.mxu0 0
      %791 = vmatpush1.bf16.msra.mxu0 0
      %792 = vmatprep.subr.bf16.mxu0 0
      %793 = vmatpush1.bf16.msra.mxu0 %v776
      %794 = vmatprep.subr.bf16.mxu0 0
      %795 = vmatpush2.bf16.msra.mxu0 0
      %796 = vmatprep.subr.bf16.mxu0 0
      %797 = vmatpush2.bf16.msra.mxu0 0
      %798 = vmatprep.subr.bf16.mxu0 0
      %799 = vmatpush2.bf16.msra.mxu0 0
      %800 = vmatprep.subr.bf16.mxu0 0
      %801 = vmatpush2.bf16.msra.mxu0 0
      %802 = vmatprep.subr.bf16.mxu0 0
      %803 = vmatpush2.bf16.msra.mxu0 0
      %804 = vmatprep.subr.bf16.mxu0 0
      %805 = vmatpush2.bf16.msra.mxu0 0
      %806 = vmatprep.subr.bf16.mxu0 0
      %807 = vmatpush2.bf16.msra.mxu0 0
      %808 = vmatprep.subr.bf16.mxu0 0
      %809 = vmatpush2.bf16.msra.mxu0 0
      %810 = vmatprep.mubr.bf16.mxu0 0
      %811 = vmatmul.mubr.bf16.gmra.mxu0 %v773
      %v812 = vpop.f32.mrf.mxu0
      %v813 = vadd.f32 0.0, %v812
      %v814 = vpop.f32.mrf.mxu0
      %v815 = vpop.f32.mrf.mxu0
      %v816 = vpop.f32.mrf.mxu0
      %817 = vdwg.mxu0
      %v818 = vadd.f32 %v560, %v813
      %v819 = vlaneseq
      %v820 = vshrl.u32 %v819, 7
      %v821 = vsub.s32 1, %v820
      %v822 = vrot.slane %v548, %v821
      %824 = vrot.lane.b32.xlu0 %v822, 8
      %v825 = vpop.permute.xlu0 %824
      %v827 = vadd.f32 %v529, %v825
      %v828 = vpack.c.bf16 %v827, %v827
      %v829 = vlaneseq
      %v830 = vshrl.u32 %v829, 7
      %v831 = vsub.s32 1, %v830
      %v832 = vrot.slane %v549, %v831
      %834 = vrot.lane.b32.xlu0 %v832, 8
      %v835 = vpop.permute.xlu0 %834
      %v837 = vadd.f32 %v529, %v835
      %v838 = vpack.c.bf16 %v837, %v837
      %840 = vrot.lane.b32.xlu0 %v838, 120
      %v841 = vpop.permute.xlu0 %840
      %850 = vrot.lane.b32.xlu0 %v564, 120
      %v851 = vpop.permute.xlu0 %850
      %852 = vrot.lane.b32.xlu0 %v565, 120
      %v853 = vpop.permute.xlu0 %852
      %854 = vrot.lane.b32.xlu0 %v566, 120
      %v855 = vpop.permute.xlu0 %854
      %856 = vrot.lane.b32.xlu0 %v567, 120
      %v857 = vpop.permute.xlu0 %856
      %858 = vrot.lane.b32.xlu0 %v568, 120
      %v859 = vpop.permute.xlu0 %858
      %860 = vrot.lane.b32.xlu0 %v569, 120
      %v861 = vpop.permute.xlu0 %860
      %862 = vrot.lane.b32.xlu0 %v570, 120
      %v863 = vpop.permute.xlu0 %862
      %864 = vrot.lane.b32.xlu0 %v571, 120
      %v865 = vpop.permute.xlu0 %864
      %v867 = vsel %vm584, %v841, 0
      %v870 = vsel %vm584, %v851, 0
      %v873 = vsel %vm584, %v853, 0
      %v876 = vsel %vm584, %v855, 0
      %v879 = vsel %vm584, %v857, 0
      %v882 = vsel %vm584, %v859, 0
      %v885 = vsel %vm584, %v861, 0
      %v888 = vsel %vm584, %v863, 0
      %v891 = vsel %vm584, %v865, 0
      %893 = vmatprep.subr.bf16.mxu0 0
      %894 = vmatpush1.bf16.xpose.msra.mxu0 %v891
      %895 = vmatprep.subr.bf16.mxu0 0
      %896 = vmatpush1.bf16.xpose.msra.mxu0 %v888
      %897 = vmatprep.subr.bf16.mxu0 0
      %898 = vmatpush1.bf16.xpose.msra.mxu0 %v885
      %899 = vmatprep.subr.bf16.mxu0 0
      %900 = vmatpush1.bf16.xpose.msra.mxu0 %v882
      %901 = vmatprep.subr.bf16.mxu0 0
      %902 = vmatpush1.bf16.xpose.msra.mxu0 %v879
      %903 = vmatprep.subr.bf16.mxu0 0
      %904 = vmatpush1.bf16.xpose.msra.mxu0 %v876
      %905 = vmatprep.subr.bf16.mxu0 0
      %906 = vmatpush1.bf16.xpose.msra.mxu0 %v873
      %907 = vmatprep.subr.bf16.mxu0 0
      %908 = vmatpush1.bf16.xpose.msra.mxu0 %v870
      %909 = vmatprep.subr.bf16.mxu0 0
      %910 = vmatpush2.bf16.xpose.msra.mxu0 0
      %911 = vmatprep.subr.bf16.mxu0 0
      %912 = vmatpush2.bf16.xpose.msra.mxu0 0
      %913 = vmatprep.subr.bf16.mxu0 0
      %914 = vmatpush2.bf16.xpose.msra.mxu0 0
      %915 = vmatprep.subr.bf16.mxu0 0
      %916 = vmatpush2.bf16.xpose.msra.mxu0 0
      %917 = vmatprep.subr.bf16.mxu0 0
      %918 = vmatpush2.bf16.xpose.msra.mxu0 0
      %919 = vmatprep.subr.bf16.mxu0 0
      %920 = vmatpush2.bf16.xpose.msra.mxu0 0
      %921 = vmatprep.subr.bf16.mxu0 0
      %922 = vmatpush2.bf16.xpose.msra.mxu0 0
      %923 = vmatprep.subr.bf16.mxu0 0
      %924 = vmatpush2.bf16.xpose.msra.mxu0 0
      %925 = vmatprep.mubr.bf16.mxu0 0
      %926 = vmatmul.mubr.bf16.gmra.mxu0 %v867
      %v927 = vpop.f32.mrf.mxu0
      %v928 = vadd.f32 0.0, %v927
      %v929 = vpop.f32.mrf.mxu0
      %v930 = vpop.f32.mrf.mxu0
      %v931 = vpop.f32.mrf.mxu0
      %932 = vdwg.mxu0
      %s934 = sor.u32 256, 120
      %935 = vrot.lane.b32.xlu0 %v928, %s934
      %v936 = vpop.permute.xlu0 %935
      %938 = vrot.lane.b32.xlu0 %v828, 120
      %v939 = vpop.permute.xlu0 %938
      %941 = vrot.lane.b32.xlu0 %v562, 120
      %v942 = vpop.permute.xlu0 %941
      %v944 = vsel %vm584, %v939, 0
      %v947 = vsel %vm584, %v942, 0
      %949 = vmatprep.subr.bf16.mxu0 0
      %950 = vmatpush1.bf16.xpose.msra.mxu0 0
      %951 = vmatprep.subr.bf16.mxu0 0
      %952 = vmatpush1.bf16.xpose.msra.mxu0 0
      %953 = vmatprep.subr.bf16.mxu0 0
      %954 = vmatpush1.bf16.xpose.msra.mxu0 0
      %955 = vmatprep.subr.bf16.mxu0 0
      %956 = vmatpush1.bf16.xpose.msra.mxu0 0
      %957 = vmatprep.subr.bf16.mxu0 0
      %958 = vmatpush1.bf16.xpose.msra.mxu0 0
      %959 = vmatprep.subr.bf16.mxu0 0
      %960 = vmatpush1.bf16.xpose.msra.mxu0 0
      %961 = vmatprep.subr.bf16.mxu0 0
      %962 = vmatpush1.bf16.xpose.msra.mxu0 0
      %963 = vmatprep.subr.bf16.mxu0 0
      %964 = vmatpush1.bf16.xpose.msra.mxu0 %v947
      %965 = vmatprep.subr.bf16.mxu0 0
      %966 = vmatpush2.bf16.xpose.msra.mxu0 0
      %967 = vmatprep.subr.bf16.mxu0 0
      %968 = vmatpush2.bf16.xpose.msra.mxu0 0
      %969 = vmatprep.subr.bf16.mxu0 0
      %970 = vmatpush2.bf16.xpose.msra.mxu0 0
      %971 = vmatprep.subr.bf16.mxu0 0
      %972 = vmatpush2.bf16.xpose.msra.mxu0 0
      %973 = vmatprep.subr.bf16.mxu0 0
      %974 = vmatpush2.bf16.xpose.msra.mxu0 0
      %975 = vmatprep.subr.bf16.mxu0 0
      %976 = vmatpush2.bf16.xpose.msra.mxu0 0
      %977 = vmatprep.subr.bf16.mxu0 0
      %978 = vmatpush2.bf16.xpose.msra.mxu0 0
      %979 = vmatprep.subr.bf16.mxu0 0
      %980 = vmatpush2.bf16.xpose.msra.mxu0 0
      %981 = vmatprep.mubr.bf16.mxu0 0
      %982 = vmatmul.mubr.bf16.gmra.mxu0 %v944
      %v983 = vpop.f32.mrf.mxu0
      %v984 = vadd.f32 %v936, %v983
      %v985 = vpop.f32.mrf.mxu0
      %v986 = vpop.f32.mrf.mxu0
      %v987 = vpop.f32.mrf.mxu0
      %988 = vdwg.mxu0
      %v989 = vmul.f32 %v984, 0.35355338
      %v990 = vsel %vm709, %v989, -1e+30
      %v991 = vsel %vm584, %v990, -inf
      %992 = vmax.xlane.f32.xlu0 %v991
      %v993 = vpop.xlane.xlu0 %992
      %v994 = vsub.f32 %v990, %v993
      %v995 = vmul.f32 %v994, 1.442695
      %v996 = vpow.pop %v995
      %v997 = vsel %vm584, %v996, 0.0
      %998 = vadd.xlane.f32.xlu0 %v997
      %v999 = vpop.xlane.xlu0 %998
      %v1000 = vrcp.pop %v999
      %v1001 = vmul.f32 %v996, %v1000
      %v1002 = vpack.c.bf16 %v1001, %v1001
      %1004 = vrot.lane.b32.xlu0 %v563, 120
      %v1005 = vpop.permute.xlu0 %1004
      %v1007 = vsel %vm584, %v1002, 0
      %v1010 = vsel %vm726, %v1005, 0
      %1012 = vmatprep.subr.bf16.mxu0 0
      %1013 = vmatpush1.bf16.msra.mxu0 0
      %1014 = vmatprep.subr.bf16.mxu0 0
      %1015 = vmatpush1.bf16.msra.mxu0 0
      %1016 = vmatprep.subr.bf16.mxu0 0
      %1017 = vmatpush1.bf16.msra.mxu0 0
      %1018 = vmatprep.subr.bf16.mxu0 0
      %1019 = vmatpush1.bf16.msra.mxu0 0
      %1020 = vmatprep.subr.bf16.mxu0 0
      %1021 = vmatpush1.bf16.msra.mxu0 0
      %1022 = vmatprep.subr.bf16.mxu0 0
      %1023 = vmatpush1.bf16.msra.mxu0 0
      %1024 = vmatprep.subr.bf16.mxu0 0
      %1025 = vmatpush1.bf16.msra.mxu0 0
      %1026 = vmatprep.subr.bf16.mxu0 0
      %1027 = vmatpush1.bf16.msra.mxu0 %v1010
      %1028 = vmatprep.subr.bf16.mxu0 0
      %1029 = vmatpush2.bf16.msra.mxu0 0
      %1030 = vmatprep.subr.bf16.mxu0 0
      %1031 = vmatpush2.bf16.msra.mxu0 0
      %1032 = vmatprep.subr.bf16.mxu0 0
      %1033 = vmatpush2.bf16.msra.mxu0 0
      %1034 = vmatprep.subr.bf16.mxu0 0
      %1035 = vmatpush2.bf16.msra.mxu0 0
      %1036 = vmatprep.subr.bf16.mxu0 0
      %1037 = vmatpush2.bf16.msra.mxu0 0
      %1038 = vmatprep.subr.bf16.mxu0 0
      %1039 = vmatpush2.bf16.msra.mxu0 0
      %1040 = vmatprep.subr.bf16.mxu0 0
      %1041 = vmatpush2.bf16.msra.mxu0 0
      %1042 = vmatprep.subr.bf16.mxu0 0
      %1043 = vmatpush2.bf16.msra.mxu0 0
      %1044 = vmatprep.mubr.bf16.mxu0 0
      %1045 = vmatmul.mubr.bf16.gmra.mxu0 %v1007
      %v1046 = vpop.f32.mrf.mxu0
      %v1047 = vadd.f32 0.0, %v1046
      %v1048 = vpop.f32.mrf.mxu0
      %v1049 = vpop.f32.mrf.mxu0
      %v1050 = vpop.f32.mrf.mxu0
      %1051 = vdwg.mxu0
      %v1052 = vpack.c.bf16 %v552, %v552
      %v1053 = vpack.c.bf16 %v1047, %v1047
      %v1055 = vsel %vm584, %v1053, 0
      %v1058 = vsel %vm726, %v1052, 0
      %1060 = vmatprep.subr.bf16.mxu0 0
      %1061 = vmatpush1.bf16.msra.mxu0 0
      %1062 = vmatprep.subr.bf16.mxu0 0
      %1063 = vmatpush1.bf16.msra.mxu0 0
      %1064 = vmatprep.subr.bf16.mxu0 0
      %1065 = vmatpush1.bf16.msra.mxu0 0
      %1066 = vmatprep.subr.bf16.mxu0 0
      %1067 = vmatpush1.bf16.msra.mxu0 0
      %1068 = vmatprep.subr.bf16.mxu0 0
      %1069 = vmatpush1.bf16.msra.mxu0 0
      %1070 = vmatprep.subr.bf16.mxu0 0
      %1071 = vmatpush1.bf16.msra.mxu0 0
      %1072 = vmatprep.subr.bf16.mxu0 0
      %1073 = vmatpush1.bf16.msra.mxu0 0
      %1074 = vmatprep.subr.bf16.mxu0 0
      %1075 = vmatpush1.bf16.msra.mxu0 %v1058
      %1076 = vmatprep.subr.bf16.mxu0 0
      %1077 = vmatpush2.bf16.msra.mxu0 0
      %1078 = vmatprep.subr.bf16.mxu0 0
      %1079 = vmatpush2.bf16.msra.mxu0 0
      %1080 = vmatprep.subr.bf16.mxu0 0
      %1081 = vmatpush2.bf16.msra.mxu0 0
      %1082 = vmatprep.subr.bf16.mxu0 0
      %1083 = vmatpush2.bf16.msra.mxu0 0
      %1084 = vmatprep.subr.bf16.mxu0 0
      %1085 = vmatpush2.bf16.msra.mxu0 0
      %1086 = vmatprep.subr.bf16.mxu0 0
      %1087 = vmatpush2.bf16.msra.mxu0 0
      %1088 = vmatprep.subr.bf16.mxu0 0
      %1089 = vmatpush2.bf16.msra.mxu0 0
      %1090 = vmatprep.subr.bf16.mxu0 0
      %1091 = vmatpush2.bf16.msra.mxu0 0
      %1092 = vmatprep.mubr.bf16.mxu0 0
      %1093 = vmatmul.mubr.bf16.gmra.mxu0 %v1055
      %v1094 = vpop.f32.mrf.mxu0
      %v1095 = vadd.f32 0.0, %v1094
      %v1096 = vpop.f32.mrf.mxu0
      %v1097 = vpop.f32.mrf.mxu0
      %v1098 = vpop.f32.mrf.mxu0
      %1099 = vdwg.mxu0
      %v1100 = vadd.f32 %v818, %v1095
      %v1101 = vlaneseq
      %v1102 = vshrl.u32 %v1101, 7
      %v1103 = vsub.s32 2, %v1102
      %v1104 = vrot.slane %v548, %v1103
      %1106 = vrot.lane.b32.xlu0 %v1104, 16
      %v1107 = vpop.permute.xlu0 %1106
      %v1109 = vadd.f32 %v529, %v1107
      %v1110 = vpack.c.bf16 %v1109, %v1109
      %v1111 = vlaneseq
      %v1112 = vshrl.u32 %v1111, 7
      %v1113 = vsub.s32 2, %v1112
      %v1114 = vrot.slane %v549, %v1113
      %1116 = vrot.lane.b32.xlu0 %v1114, 16
      %v1117 = vpop.permute.xlu0 %1116
      %v1119 = vadd.f32 %v529, %v1117
      %v1120 = vpack.c.bf16 %v1119, %v1119
      %1122 = vrot.lane.b32.xlu0 %v1120, 112
      %v1123 = vpop.permute.xlu0 %1122
      %1124 = vrot.lane.b32.xlu0 %v564, 112
      %v1125 = vpop.permute.xlu0 %1124
      %1126 = vrot.lane.b32.xlu0 %v565, 112
      %v1127 = vpop.permute.xlu0 %1126
      %1128 = vrot.lane.b32.xlu0 %v566, 112
      %v1129 = vpop.permute.xlu0 %1128
      %1130 = vrot.lane.b32.xlu0 %v567, 112
      %v1131 = vpop.permute.xlu0 %1130
      %1132 = vrot.lane.b32.xlu0 %v568, 112
      %v1133 = vpop.permute.xlu0 %1132
      %1134 = vrot.lane.b32.xlu0 %v569, 112
      %v1135 = vpop.permute.xlu0 %1134
      %1136 = vrot.lane.b32.xlu0 %v570, 112
      %v1137 = vpop.permute.xlu0 %1136
      %1138 = vrot.lane.b32.xlu0 %v571, 112
      %v1139 = vpop.permute.xlu0 %1138
      %v1141 = vsel %vm584, %v1123, 0
      %v1144 = vsel %vm584, %v1125, 0
      %v1147 = vsel %vm584, %v1127, 0
      %v1150 = vsel %vm584, %v1129, 0
      %v1153 = vsel %vm584, %v1131, 0
      %v1156 = vsel %vm584, %v1133, 0
      %v1159 = vsel %vm584, %v1135, 0
      %v1162 = vsel %vm584, %v1137, 0
      %v1165 = vsel %vm584, %v1139, 0
      %1167 = vmatprep.subr.bf16.mxu0 0
      %1168 = vmatpush1.bf16.xpose.msra.mxu0 %v1165
      %1169 = vmatprep.subr.bf16.mxu0 0
      %1170 = vmatpush1.bf16.xpose.msra.mxu0 %v1162
      %1171 = vmatprep.subr.bf16.mxu0 0
      %1172 = vmatpush1.bf16.xpose.msra.mxu0 %v1159
      %1173 = vmatprep.subr.bf16.mxu0 0
      %1174 = vmatpush1.bf16.xpose.msra.mxu0 %v1156
      %1175 = vmatprep.subr.bf16.mxu0 0
      %1176 = vmatpush1.bf16.xpose.msra.mxu0 %v1153
      %1177 = vmatprep.subr.bf16.mxu0 0
      %1178 = vmatpush1.bf16.xpose.msra.mxu0 %v1150
      %1179 = vmatprep.subr.bf16.mxu0 0
      %1180 = vmatpush1.bf16.xpose.msra.mxu0 %v1147
      %1181 = vmatprep.subr.bf16.mxu0 0
      %1182 = vmatpush1.bf16.xpose.msra.mxu0 %v1144
      %1183 = vmatprep.subr.bf16.mxu0 0
      %1184 = vmatpush2.bf16.xpose.msra.mxu0 0
      %1185 = vmatprep.subr.bf16.mxu0 0
      %1186 = vmatpush2.bf16.xpose.msra.mxu0 0
      %1187 = vmatprep.subr.bf16.mxu0 0
      %1188 = vmatpush2.bf16.xpose.msra.mxu0 0
      %1189 = vmatprep.subr.bf16.mxu0 0
      %1190 = vmatpush2.bf16.xpose.msra.mxu0 0
      %1191 = vmatprep.subr.bf16.mxu0 0
      %1192 = vmatpush2.bf16.xpose.msra.mxu0 0
      %1193 = vmatprep.subr.bf16.mxu0 0
      %1194 = vmatpush2.bf16.xpose.msra.mxu0 0
      %1195 = vmatprep.subr.bf16.mxu0 0
      %1196 = vmatpush2.bf16.xpose.msra.mxu0 0
      %1197 = vmatprep.subr.bf16.mxu0 0
      %1198 = vmatpush2.bf16.xpose.msra.mxu0 0
      %1199 = vmatprep.mubr.bf16.mxu0 0
      %1200 = vmatmul.mubr.bf16.gmra.mxu0 %v1141
      %v1201 = vpop.f32.mrf.mxu0
      %v1202 = vadd.f32 0.0, %v1201
      %v1203 = vpop.f32.mrf.mxu0
      %v1204 = vpop.f32.mrf.mxu0
      %v1205 = vpop.f32.mrf.mxu0
      %1206 = vdwg.mxu0
      %s1208 = sor.u32 256, 120
      %1209 = vrot.lane.b32.xlu0 %v1202, %s1208
      %v1210 = vpop.permute.xlu0 %1209
      %1212 = vrot.lane.b32.xlu0 %v1110, 112
      %v1213 = vpop.permute.xlu0 %1212
      %1214 = vrot.lane.b32.xlu0 %v562, 112
      %v1215 = vpop.permute.xlu0 %1214
      %v1217 = vsel %vm584, %v1213, 0
      %v1220 = vsel %vm584, %v1215, 0
      %1222 = vmatprep.subr.bf16.mxu0 0
      %1223 = vmatpush1.bf16.xpose.msra.mxu0 0
      %1224 = vmatprep.subr.bf16.mxu0 0
      %1225 = vmatpush1.bf16.xpose.msra.mxu0 0
      %1226 = vmatprep.subr.bf16.mxu0 0
      %1227 = vmatpush1.bf16.xpose.msra.mxu0 0
      %1228 = vmatprep.subr.bf16.mxu0 0
      %1229 = vmatpush1.bf16.xpose.msra.mxu0 0
      %1230 = vmatprep.subr.bf16.mxu0 0
      %1231 = vmatpush1.bf16.xpose.msra.mxu0 0
      %1232 = vmatprep.subr.bf16.mxu0 0
      %1233 = vmatpush1.bf16.xpose.msra.mxu0 0
      %1234 = vmatprep.subr.bf16.mxu0 0
      %1235 = vmatpush1.bf16.xpose.msra.mxu0 0
      %1236 = vmatprep.subr.bf16.mxu0 0
      %1237 = vmatpush1.bf16.xpose.msra.mxu0 %v1220
      %1238 = vmatprep.subr.bf16.mxu0 0
      %1239 = vmatpush2.bf16.xpose.msra.mxu0 0
      %1240 = vmatprep.subr.bf16.mxu0 0
      %1241 = vmatpush2.bf16.xpose.msra.mxu0 0
      %1242 = vmatprep.subr.bf16.mxu0 0
      %1243 = vmatpush2.bf16.xpose.msra.mxu0 0
      %1244 = vmatprep.subr.bf16.mxu0 0
      %1245 = vmatpush2.bf16.xpose.msra.mxu0 0
      %1246 = vmatprep.subr.bf16.mxu0 0
      %1247 = vmatpush2.bf16.xpose.msra.mxu0 0
      %1248 = vmatprep.subr.bf16.mxu0 0
      %1249 = vmatpush2.bf16.xpose.msra.mxu0 0
      %1250 = vmatprep.subr.bf16.mxu0 0
      %1251 = vmatpush2.bf16.xpose.msra.mxu0 0
      %1252 = vmatprep.subr.bf16.mxu0 0
      %1253 = vmatpush2.bf16.xpose.msra.mxu0 0
      %1254 = vmatprep.mubr.bf16.mxu0 0
      %1255 = vmatmul.mubr.bf16.gmra.mxu0 %v1217
      %v1256 = vpop.f32.mrf.mxu0
      %v1257 = vadd.f32 %v1210, %v1256
      %v1258 = vpop.f32.mrf.mxu0
      %v1259 = vpop.f32.mrf.mxu0
      %v1260 = vpop.f32.mrf.mxu0
      %1261 = vdwg.mxu0
      %v1262 = vmul.f32 %v1257, 0.35355338
      %v1263 = vsel %vm709, %v1262, -1e+30
      %v1264 = vsel %vm584, %v1263, -inf
      %1265 = vmax.xlane.f32.xlu0 %v1264
      %v1266 = vpop.xlane.xlu0 %1265
      %v1267 = vsub.f32 %v1263, %v1266
      %v1268 = vmul.f32 %v1267, 1.442695
      %v1269 = vpow.pop %v1268
      %v1270 = vsel %vm584, %v1269, 0.0
      %1271 = vadd.xlane.f32.xlu0 %v1270
      %v1272 = vpop.xlane.xlu0 %1271
      %v1273 = vrcp.pop %v1272
      %v1274 = vmul.f32 %v1269, %v1273
      %v1275 = vpack.c.bf16 %v1274, %v1274
      %1276 = vrot.lane.b32.xlu0 %v563, 112
      %v1277 = vpop.permute.xlu0 %1276
      %v1279 = vsel %vm584, %v1275, 0
      %v1282 = vsel %vm726, %v1277, 0
      %1284 = vmatprep.subr.bf16.mxu0 0
      %1285 = vmatpush1.bf16.msra.mxu0 0
      %1286 = vmatprep.subr.bf16.mxu0 0
      %1287 = vmatpush1.bf16.msra.mxu0 0
      %1288 = vmatprep.subr.bf16.mxu0 0
      %1289 = vmatpush1.bf16.msra.mxu0 0
      %1290 = vmatprep.subr.bf16.mxu0 0
      %1291 = vmatpush1.bf16.msra.mxu0 0
      %1292 = vmatprep.subr.bf16.mxu0 0
      %1293 = vmatpush1.bf16.msra.mxu0 0
      %1294 = vmatprep.subr.bf16.mxu0 0
      %1295 = vmatpush1.bf16.msra.mxu0 0
      %1296 = vmatprep.subr.bf16.mxu0 0
      %1297 = vmatpush1.bf16.msra.mxu0 0
      %1298 = vmatprep.subr.bf16.mxu0 0
      %1299 = vmatpush1.bf16.msra.mxu0 %v1282
      %1300 = vmatprep.subr.bf16.mxu0 0
      %1301 = vmatpush2.bf16.msra.mxu0 0
      %1302 = vmatprep.subr.bf16.mxu0 0
      %1303 = vmatpush2.bf16.msra.mxu0 0
      %1304 = vmatprep.subr.bf16.mxu0 0
      %1305 = vmatpush2.bf16.msra.mxu0 0
      %1306 = vmatprep.subr.bf16.mxu0 0
      %1307 = vmatpush2.bf16.msra.mxu0 0
      %1308 = vmatprep.subr.bf16.mxu0 0
      %1309 = vmatpush2.bf16.msra.mxu0 0
      %1310 = vmatprep.subr.bf16.mxu0 0
      %1311 = vmatpush2.bf16.msra.mxu0 0
      %1312 = vmatprep.subr.bf16.mxu0 0
      %1313 = vmatpush2.bf16.msra.mxu0 0
      %1314 = vmatprep.subr.bf16.mxu0 0
      %1315 = vmatpush2.bf16.msra.mxu0 0
      %1316 = vmatprep.mubr.bf16.mxu0 0
      %1317 = vmatmul.mubr.bf16.gmra.mxu0 %v1279
      %v1318 = vpop.f32.mrf.mxu0
      %v1319 = vadd.f32 0.0, %v1318
      %v1320 = vpop.f32.mrf.mxu0
      %v1321 = vpop.f32.mrf.mxu0
      %v1322 = vpop.f32.mrf.mxu0
      %1323 = vdwg.mxu0
      %v1324 = vpack.c.bf16 %v553, %v553
      %v1325 = vpack.c.bf16 %v1319, %v1319
      %v1327 = vsel %vm584, %v1325, 0
      %v1330 = vsel %vm726, %v1324, 0
      %1332 = vmatprep.subr.bf16.mxu0 0
      %1333 = vmatpush1.bf16.msra.mxu0 0
      %1334 = vmatprep.subr.bf16.mxu0 0
      %1335 = vmatpush1.bf16.msra.mxu0 0
      %1336 = vmatprep.subr.bf16.mxu0 0
      %1337 = vmatpush1.bf16.msra.mxu0 0
      %1338 = vmatprep.subr.bf16.mxu0 0
      %1339 = vmatpush1.bf16.msra.mxu0 0
      %1340 = vmatprep.subr.bf16.mxu0 0
      %1341 = vmatpush1.bf16.msra.mxu0 0
      %1342 = vmatprep.subr.bf16.mxu0 0
      %1343 = vmatpush1.bf16.msra.mxu0 0
      %1344 = vmatprep.subr.bf16.mxu0 0
      %1345 = vmatpush1.bf16.msra.mxu0 0
      %1346 = vmatprep.subr.bf16.mxu0 0
      %1347 = vmatpush1.bf16.msra.mxu0 %v1330
      %1348 = vmatprep.subr.bf16.mxu0 0
      %1349 = vmatpush2.bf16.msra.mxu0 0
      %1350 = vmatprep.subr.bf16.mxu0 0
      %1351 = vmatpush2.bf16.msra.mxu0 0
      %1352 = vmatprep.subr.bf16.mxu0 0
      %1353 = vmatpush2.bf16.msra.mxu0 0
      %1354 = vmatprep.subr.bf16.mxu0 0
      %1355 = vmatpush2.bf16.msra.mxu0 0
      %1356 = vmatprep.subr.bf16.mxu0 0
      %1357 = vmatpush2.bf16.msra.mxu0 0
      %1358 = vmatprep.subr.bf16.mxu0 0
      %1359 = vmatpush2.bf16.msra.mxu0 0
      %1360 = vmatprep.subr.bf16.mxu0 0
      %1361 = vmatpush2.bf16.msra.mxu0 0
      %1362 = vmatprep.subr.bf16.mxu0 0
      %1363 = vmatpush2.bf16.msra.mxu0 0
      %1364 = vmatprep.mubr.bf16.mxu0 0
      %1365 = vmatmul.mubr.bf16.gmra.mxu0 %v1327
      %v1366 = vpop.f32.mrf.mxu0
      %v1367 = vadd.f32 0.0, %v1366
      %v1368 = vpop.f32.mrf.mxu0
      %v1369 = vpop.f32.mrf.mxu0
      %v1370 = vpop.f32.mrf.mxu0
      %1371 = vdwg.mxu0
      %v1372 = vadd.f32 %v1100, %v1367
      %v1373 = vlaneseq
      %v1374 = vshrl.u32 %v1373, 7
      %v1375 = vsub.s32 3, %v1374
      %v1376 = vrot.slane %v548, %v1375
      %1378 = vrot.lane.b32.xlu0 %v1376, 24
      %v1379 = vpop.permute.xlu0 %1378
      %v1381 = vadd.f32 %v529, %v1379
      %v1382 = vpack.c.bf16 %v1381, %v1381
      %v1383 = vlaneseq
      %v1384 = vshrl.u32 %v1383, 7
      %v1385 = vsub.s32 3, %v1384
      %v1386 = vrot.slane %v549, %v1385
      %1388 = vrot.lane.b32.xlu0 %v1386, 24
      %v1389 = vpop.permute.xlu0 %1388
      %v1391 = vadd.f32 %v529, %v1389
      %v1392 = vpack.c.bf16 %v1391, %v1391
      %1394 = vrot.lane.b32.xlu0 %v1392, 104
      %v1395 = vpop.permute.xlu0 %1394
      %1396 = vrot.lane.b32.xlu0 %v564, 104
      %v1397 = vpop.permute.xlu0 %1396
      %1398 = vrot.lane.b32.xlu0 %v565, 104
      %v1399 = vpop.permute.xlu0 %1398
      %1400 = vrot.lane.b32.xlu0 %v566, 104
      %v1401 = vpop.permute.xlu0 %1400
      %1402 = vrot.lane.b32.xlu0 %v567, 104
      %v1403 = vpop.permute.xlu0 %1402
      %1404 = vrot.lane.b32.xlu0 %v568, 104
      %v1405 = vpop.permute.xlu0 %1404
      %1406 = vrot.lane.b32.xlu0 %v569, 104
      %v1407 = vpop.permute.xlu0 %1406
      %1408 = vrot.lane.b32.xlu0 %v570, 104
      %v1409 = vpop.permute.xlu0 %1408
      %1410 = vrot.lane.b32.xlu0 %v571, 104
      %v1411 = vpop.permute.xlu0 %1410
      %v1413 = vsel %vm584, %v1395, 0
      %v1416 = vsel %vm584, %v1397, 0
      %v1419 = vsel %vm584, %v1399, 0
      %v1422 = vsel %vm584, %v1401, 0
      %v1425 = vsel %vm584, %v1403, 0
      %v1428 = vsel %vm584, %v1405, 0
      %v1431 = vsel %vm584, %v1407, 0
      %v1434 = vsel %vm584, %v1409, 0
      %v1437 = vsel %vm584, %v1411, 0
      %1439 = vmatprep.subr.bf16.mxu0 0
      %1440 = vmatpush1.bf16.xpose.msra.mxu0 %v1437
      %1441 = vmatprep.subr.bf16.mxu0 0
      %1442 = vmatpush1.bf16.xpose.msra.mxu0 %v1434
      %1443 = vmatprep.subr.bf16.mxu0 0
      %1444 = vmatpush1.bf16.xpose.msra.mxu0 %v1431
      %1445 = vmatprep.subr.bf16.mxu0 0
      %1446 = vmatpush1.bf16.xpose.msra.mxu0 %v1428
      %1447 = vmatprep.subr.bf16.mxu0 0
      %1448 = vmatpush1.bf16.xpose.msra.mxu0 %v1425
      %1449 = vmatprep.subr.bf16.mxu0 0
      %1450 = vmatpush1.bf16.xpose.msra.mxu0 %v1422
      %1451 = vmatprep.subr.bf16.mxu0 0
      %1452 = vmatpush1.bf16.xpose.msra.mxu0 %v1419
      %1453 = vmatprep.subr.bf16.mxu0 0
      %1454 = vmatpush1.bf16.xpose.msra.mxu0 %v1416
      %1455 = vmatprep.subr.bf16.mxu0 0
      %1456 = vmatpush2.bf16.xpose.msra.mxu0 0
      %1457 = vmatprep.subr.bf16.mxu0 0
      %1458 = vmatpush2.bf16.xpose.msra.mxu0 0
      %1459 = vmatprep.subr.bf16.mxu0 0
      %1460 = vmatpush2.bf16.xpose.msra.mxu0 0
      %1461 = vmatprep.subr.bf16.mxu0 0
      %1462 = vmatpush2.bf16.xpose.msra.mxu0 0
      %1463 = vmatprep.subr.bf16.mxu0 0
      %1464 = vmatpush2.bf16.xpose.msra.mxu0 0
      %1465 = vmatprep.subr.bf16.mxu0 0
      %1466 = vmatpush2.bf16.xpose.msra.mxu0 0
      %1467 = vmatprep.subr.bf16.mxu0 0
      %1468 = vmatpush2.bf16.xpose.msra.mxu0 0
      %1469 = vmatprep.subr.bf16.mxu0 0
      %1470 = vmatpush2.bf16.xpose.msra.mxu0 0
      %1471 = vmatprep.mubr.bf16.mxu0 0
      %1472 = vmatmul.mubr.bf16.gmra.mxu0 %v1413
      %v1473 = vpop.f32.mrf.mxu0
      %v1474 = vadd.f32 0.0, %v1473
      %v1475 = vpop.f32.mrf.mxu0
      %v1476 = vpop.f32.mrf.mxu0
      %v1477 = vpop.f32.mrf.mxu0
      %1478 = vdwg.mxu0
      %s1480 = sor.u32 256, 120
      %1481 = vrot.lane.b32.xlu0 %v1474, %s1480
      %v1482 = vpop.permute.xlu0 %1481
      %1484 = vrot.lane.b32.xlu0 %v1382, 104
      %v1485 = vpop.permute.xlu0 %1484
      %1486 = vrot.lane.b32.xlu0 %v562, 104
      %v1487 = vpop.permute.xlu0 %1486
      %v1489 = vsel %vm584, %v1485, 0
      %v1492 = vsel %vm584, %v1487, 0
      %1494 = vmatprep.subr.bf16.mxu0 0
      %1495 = vmatpush1.bf16.xpose.msra.mxu0 0
      %1496 = vmatprep.subr.bf16.mxu0 0
      %1497 = vmatpush1.bf16.xpose.msra.mxu0 0
      %1498 = vmatprep.subr.bf16.mxu0 0
      %1499 = vmatpush1.bf16.xpose.msra.mxu0 0
      %1500 = vmatprep.subr.bf16.mxu0 0
      %1501 = vmatpush1.bf16.xpose.msra.mxu0 0
      %1502 = vmatprep.subr.bf16.mxu0 0
      %1503 = vmatpush1.bf16.xpose.msra.mxu0 0
      %1504 = vmatprep.subr.bf16.mxu0 0
      %1505 = vmatpush1.bf16.xpose.msra.mxu0 0
      %1506 = vmatprep.subr.bf16.mxu0 0
      %1507 = vmatpush1.bf16.xpose.msra.mxu0 0
      %1508 = vmatprep.subr.bf16.mxu0 0
      %1509 = vmatpush1.bf16.xpose.msra.mxu0 %v1492
      %1510 = vmatprep.subr.bf16.mxu0 0
      %1511 = vmatpush2.bf16.xpose.msra.mxu0 0
      %1512 = vmatprep.subr.bf16.mxu0 0
      %1513 = vmatpush2.bf16.xpose.msra.mxu0 0
      %1514 = vmatprep.subr.bf16.mxu0 0
      %1515 = vmatpush2.bf16.xpose.msra.mxu0 0
      %1516 = vmatprep.subr.bf16.mxu0 0
      %1517 = vmatpush2.bf16.xpose.msra.mxu0 0
      %1518 = vmatprep.subr.bf16.mxu0 0
      %1519 = vmatpush2.bf16.xpose.msra.mxu0 0
      %1520 = vmatprep.subr.bf16.mxu0 0
      %1521 = vmatpush2.bf16.xpose.msra.mxu0 0
      %1522 = vmatprep.subr.bf16.mxu0 0
      %1523 = vmatpush2.bf16.xpose.msra.mxu0 0
      %1524 = vmatprep.subr.bf16.mxu0 0
      %1525 = vmatpush2.bf16.xpose.msra.mxu0 0
      %1526 = vmatprep.mubr.bf16.mxu0 0
      %1527 = vmatmul.mubr.bf16.gmra.mxu0 %v1489
      %v1528 = vpop.f32.mrf.mxu0
      %v1529 = vadd.f32 %v1482, %v1528
      %v1530 = vpop.f32.mrf.mxu0
      %v1531 = vpop.f32.mrf.mxu0
      %v1532 = vpop.f32.mrf.mxu0
      %1533 = vdwg.mxu0
      %v1534 = vmul.f32 %v1529, 0.35355338
      %v1535 = vsel %vm709, %v1534, -1e+30
      %v1536 = vsel %vm584, %v1535, -inf
      %1537 = vmax.xlane.f32.xlu0 %v1536
      %v1538 = vpop.xlane.xlu0 %1537
      %v1539 = vsub.f32 %v1535, %v1538
      %v1540 = vmul.f32 %v1539, 1.442695
      %v1541 = vpow.pop %v1540
      %v1542 = vsel %vm584, %v1541, 0.0
      %1543 = vadd.xlane.f32.xlu0 %v1542
      %v1544 = vpop.xlane.xlu0 %1543
      %v1545 = vrcp.pop %v1544
      %v1546 = vmul.f32 %v1541, %v1545
      %v1547 = vpack.c.bf16 %v1546, %v1546
      %1548 = vrot.lane.b32.xlu0 %v563, 104
      %v1549 = vpop.permute.xlu0 %1548
      %v1551 = vsel %vm584, %v1547, 0
      %v1554 = vsel %vm726, %v1549, 0
      %1556 = vmatprep.subr.bf16.mxu0 0
      %1557 = vmatpush1.bf16.msra.mxu0 0
      %1558 = vmatprep.subr.bf16.mxu0 0
      %1559 = vmatpush1.bf16.msra.mxu0 0
      %1560 = vmatprep.subr.bf16.mxu0 0
      %1561 = vmatpush1.bf16.msra.mxu0 0
      %1562 = vmatprep.subr.bf16.mxu0 0
      %1563 = vmatpush1.bf16.msra.mxu0 0
      %1564 = vmatprep.subr.bf16.mxu0 0
      %1565 = vmatpush1.bf16.msra.mxu0 0
      %1566 = vmatprep.subr.bf16.mxu0 0
      %1567 = vmatpush1.bf16.msra.mxu0 0
      %1568 = vmatprep.subr.bf16.mxu0 0
      %1569 = vmatpush1.bf16.msra.mxu0 0
      %1570 = vmatprep.subr.bf16.mxu0 0
      %1571 = vmatpush1.bf16.msra.mxu0 %v1554
      %1572 = vmatprep.subr.bf16.mxu0 0
      %1573 = vmatpush2.bf16.msra.mxu0 0
      %1574 = vmatprep.subr.bf16.mxu0 0
      %1575 = vmatpush2.bf16.msra.mxu0 0
      %1576 = vmatprep.subr.bf16.mxu0 0
      %1577 = vmatpush2.bf16.msra.mxu0 0
      %1578 = vmatprep.subr.bf16.mxu0 0
      %1579 = vmatpush2.bf16.msra.mxu0 0
      %1580 = vmatprep.subr.bf16.mxu0 0
      %1581 = vmatpush2.bf16.msra.mxu0 0
      %1582 = vmatprep.subr.bf16.mxu0 0
      %1583 = vmatpush2.bf16.msra.mxu0 0
      %1584 = vmatprep.subr.bf16.mxu0 0
      %1585 = vmatpush2.bf16.msra.mxu0 0
      %1586 = vmatprep.subr.bf16.mxu0 0
      %1587 = vmatpush2.bf16.msra.mxu0 0
      %1588 = vmatprep.mubr.bf16.mxu0 0
      %1589 = vmatmul.mubr.bf16.gmra.mxu0 %v1551
      %v1590 = vpop.f32.mrf.mxu0
      %v1591 = vadd.f32 0.0, %v1590
      %v1592 = vpop.f32.mrf.mxu0
      %v1593 = vpop.f32.mrf.mxu0
      %v1594 = vpop.f32.mrf.mxu0
      %1595 = vdwg.mxu0
      %v1596 = vpack.c.bf16 %v554, %v554
      %v1597 = vpack.c.bf16 %v1591, %v1591
      %v1599 = vsel %vm584, %v1597, 0
      %v1602 = vsel %vm726, %v1596, 0
      %1604 = vmatprep.subr.bf16.mxu0 0
      %1605 = vmatpush1.bf16.msra.mxu0 0
      %1606 = vmatprep.subr.bf16.mxu0 0
      %1607 = vmatpush1.bf16.msra.mxu0 0
      %1608 = vmatprep.subr.bf16.mxu0 0
      %1609 = vmatpush1.bf16.msra.mxu0 0
      %1610 = vmatprep.subr.bf16.mxu0 0
      %1611 = vmatpush1.bf16.msra.mxu0 0
      %1612 = vmatprep.subr.bf16.mxu0 0
      %1613 = vmatpush1.bf16.msra.mxu0 0
      %1614 = vmatprep.subr.bf16.mxu0 0
      %1615 = vmatpush1.bf16.msra.mxu0 0
      %1616 = vmatprep.subr.bf16.mxu0 0
      %1617 = vmatpush1.bf16.msra.mxu0 0
      %1618 = vmatprep.subr.bf16.mxu0 0
      %1619 = vmatpush1.bf16.msra.mxu0 %v1602
      %1620 = vmatprep.subr.bf16.mxu0 0
      %1621 = vmatpush2.bf16.msra.mxu0 0
      %1622 = vmatprep.subr.bf16.mxu0 0
      %1623 = vmatpush2.bf16.msra.mxu0 0
      %1624 = vmatprep.subr.bf16.mxu0 0
      %1625 = vmatpush2.bf16.msra.mxu0 0
      %1626 = vmatprep.subr.bf16.mxu0 0
      %1627 = vmatpush2.bf16.msra.mxu0 0
      %1628 = vmatprep.subr.bf16.mxu0 0
      %1629 = vmatpush2.bf16.msra.mxu0 0
      %1630 = vmatprep.subr.bf16.mxu0 0
      %1631 = vmatpush2.bf16.msra.mxu0 0
      %1632 = vmatprep.subr.bf16.mxu0 0
      %1633 = vmatpush2.bf16.msra.mxu0 0
      %1634 = vmatprep.subr.bf16.mxu0 0
      %1635 = vmatpush2.bf16.msra.mxu0 0
      %1636 = vmatprep.mubr.bf16.mxu0 0
      %1637 = vmatmul.mubr.bf16.gmra.mxu0 %v1599
      %v1638 = vpop.f32.mrf.mxu0
      %v1639 = vadd.f32 0.0, %v1638
      %v1640 = vpop.f32.mrf.mxu0
      %v1641 = vpop.f32.mrf.mxu0
      %v1642 = vpop.f32.mrf.mxu0
      %1643 = vdwg.mxu0
      %v1644 = vadd.f32 %v1372, %v1639
      %vm1645 = vcmask 261120
      %1646 = vst.msk [vmem:[%s527] sm:$0xff] %vm1645, %v1644
      %p1647 = scmp.lt.s32.totalorder %s24, 1
      %s1648 = scalar_select %p1647, %s24, 1
      %p1649 = scmp.lt.s32.totalorder %s25, 1
      %s1650 = scalar_select %p1649, %s25, 1
      %s1651 = smul.addr %s1648, 2
      %s1652 = sadd.s32 %s1650, %s1651
      %s1653 = smul.addr %s1652, 8
      %s1654 = scalar_lea.vmem %s9, %s1653
      // Predicated region
      $region57: #{two_stream_rel_transformer_layer.13} parent=55 // pred_check
        %p1655 = pneg %p292
      $region58: #{two_stream_rel_transformer_layer.13} parent=55 // pred_check_branch
        %1657 = sbr.rel (%p1655) target = $region60
      $region59: #{two_stream_rel_transformer_layer.13} parent=55 // pred_region
        _
      $region60: #{two_stream_rel_transformer_layer.13} parent=55 // pred_fallthru
        _
    $region56: #{two_stream_rel_transformer_layer.13} parent=5 // pred_fallthru
      _
    %p1658 = scmp.le.s32.totalorder 2, %s15
    // Predicated region
    $region61: #{two_stream_rel_transformer_layer.13} parent=5 // pred_check
      %p1659 = pneg %p1658
    $region62: #{two_stream_rel_transformer_layer.13} parent=5 // pred_check_branch
      %1661 = sbr.rel (%p1659) target = $region64
    $region63: #{two_stream_rel_transformer_layer.13} parent=5 // pred_region
      %s1662 = ssub.s32 %s15, 2
      // Predicated region
      $region65: #{two_stream_rel_transformer_layer.13} parent=63 // pred_check
        %p1663 = pneg %p298
      $region66: #{two_stream_rel_transformer_layer.13} parent=63 // pred_check_branch
        %1665 = sbr.rel (%p1663) target = $region68
      $region67: #{two_stream_rel_transformer_layer.13} parent=63 // pred_region
        %p1666 = scmp.lt.s32.totalorder %s26, 1
        %s1667 = scalar_select %p1666, %s26, 1
        %p1668 = scmp.lt.s32.totalorder %s27, 1
        %s1669 = scalar_select %p1668, %s27, 1
        %s1670 = smul.addr %s1667, 2
        %s1671 = sadd.s32 %s1669, %s1670
        %s1672 = smul.addr %s1671, 8
        %s1673 = scalar_lea.vmem %s9, %s1672
      $region68: #{two_stream_rel_transformer_layer.13} parent=63 // pred_fallthru
        _
    $region64: #{two_stream_rel_transformer_layer.13} parent=5 // pred_fallthru
      _
  $region6: #{two_stream_rel_transformer_layer.13} parent=0 // loop_footer
    %s19 = sadd.s32 1, %s15
  $region7: #{two_stream_rel_transformer_layer.13} parent=0 // loop_footer_branch
    %14 = sbr.rel target = $region3
  $region8: #{two_stream_rel_transformer_layer.13} parent=0 // loop_exit
    _

// kernel: two_stream_rel_transformer_layer.17
$region0: #{two_stream_rel_transformer_layer.17}
  #allocation0 [shape = 'u32[]', space=smem, size = 0x4, offset = 0x4, fixed_abs, tag = 'smem constant byte address 0x4 - core index']
  #allocation1 [shape = 'u32[144,128]{1,0:T(1,128)}', space=vmem, size = 0x12000, scoped, tag = 'internal scratch']
  %s0 = inlined_call_operand.vmem [shape: f32[16,32], index: 0, kind: input, shape index: {}]
  %s1 = inlined_call_operand.vmem [shape: f32[16,32], index: 1, kind: input, shape index: {}]
  %s2 = inlined_call_operand.vmem [shape: f32[1,32], index: 2, kind: input, shape index: {}]
  %s3 = inlined_call_operand.vmem [shape: f32[1,32], index: 3, kind: input, shape index: {}]
  %s4 = inlined_call_operand.hbm [shape: f32[16,32], index: 4, kind: output, shape index: {}]
  %s5 = sld [smem:[#allocation0]]
  $region26: #{two_stream_rel_transformer_layer.17} parent=0
    _
  %s7 = ssub.s32 1, %s5
  %s8 = scalar_select 0, %s7, %s5
  $region1: #{two_stream_rel_transformer_layer.17} parent=0
    #allocation2 [shape = 'u8[8192]{0}', space=vmem, size = 0x2000, scoped, tag = 'output window, operand 0, single buffered']
    #allocation3 [shape = 's32[1]{0}', space=sflag, size = 0x4, scoped, tag = 'scoped memory for two_stream_rel_transformer_layer.17']
    %9 = vsyncpa [#allocation3], 0
    // Predicated region
    $region2: #{two_stream_rel_transformer_layer.17} parent=1 // pred_check
      _
    $region3: #{two_stream_rel_transformer_layer.17} parent=1 // pred_check_branch
      %11 = sbr.rel (0) target = $region5
    $region4: #{two_stream_rel_transformer_layer.17} parent=1 // pred_region
      _
    $region5: #{two_stream_rel_transformer_layer.17} parent=1 // pred_fallthru
      _
    // Predicated region
    $region6: #{two_stream_rel_transformer_layer.17} parent=1 // pred_check
      _
    $region7: #{two_stream_rel_transformer_layer.17} parent=1 // pred_check_branch
      %13 = sbr.rel (0) target = $region9
    $region8: #{two_stream_rel_transformer_layer.17} parent=1 // pred_region
      _
    $region9: #{two_stream_rel_transformer_layer.17} parent=1 // pred_fallthru
      _
    // Predicated region
    $region10: #{two_stream_rel_transformer_layer.17} parent=1 // pred_check
      _
    $region11: #{two_stream_rel_transformer_layer.17} parent=1 // pred_check_branch
      %15 = sbr.rel (0) target = $region13
    $region12: #{two_stream_rel_transformer_layer.17} parent=1 // pred_region
      _
    $region13: #{two_stream_rel_transformer_layer.17} parent=1 // pred_fallthru
      _
    // Predicated region
    $region14: #{two_stream_rel_transformer_layer.17} parent=1 // pred_check
      _
    $region15: #{two_stream_rel_transformer_layer.17} parent=1 // pred_check_branch
      %17 = sbr.rel (0) target = $region17
    $region16: #{two_stream_rel_transformer_layer.17} parent=1 // pred_region
      _
    $region17: #{two_stream_rel_transformer_layer.17} parent=1 // pred_fallthru
      _
    %v18 = vld [vmem:[%s0] sm:$0xff]
    %v19 = vld [vmem:[%s0 + $0x8] sm:$0xff]
    %v20 = vld [vmem:[%s1] sm:$0xff]
    %v21 = vld [vmem:[%s1 + $0x8] sm:$0xff]
    %v22 = vadd.f32 %v18, %v20
    %v23 = vadd.f32 %v19, %v21
    %vm24 = vcmask 261120
    %v25 = vsel %vm24, %v22, 0.0
    %26 = vadd.xlane.f32.xlu0 %v25
    %v27 = vpop.xlane.xlu0 %26
    %v28 = vsel %vm24, %v23, 0.0
    %29 = vadd.xlane.f32.xlu0 %v28
    %v30 = vpop.xlane.xlu0 %29
    %v31 = vrcp.pop 32.0
    %v32 = vmul.f32 %v27, %v31
    %v33 = vmul.f32 %v30, %v31
    %v34 = vsub.f32 %v22, %v32
    %v35 = vsub.f32 %v23, %v33
    %v36 = vmul.f32 %v34, %v34
    %v37 = vmul.f32 %v35, %v35
    %v38 = vsel %vm24, %v36, 0.0
    %39 = vadd.xlane.f32.xlu0 %v38
    %v40 = vpop.xlane.xlu0 %39
    %v41 = vsel %vm24, %v37, 0.0
    %42 = vadd.xlane.f32.xlu0 %v41
    %v43 = vpop.xlane.xlu0 %42
    %v44 = vmul.f32 %v40, %v31
    %v45 = vmul.f32 %v43, %v31
    %v46 = vadd.f32 %v44, 1e-12
    %v47 = vadd.f32 %v45, 1e-12
    %v48 = vrsqrt.pop %v46
    %v49 = vrsqrt.pop %v47
    %v50 = vmul.f32 %v34, %v48
    %v51 = vmul.f32 %v35, %v49
    %v52 = vld [vmem:[%s2] sm:$0x1]
    %v54 = vlaneseq
    %v55 = vshrl.u32 %v54, 7
    %v56 = vsub.s32 0, %v55
    %v57 = vrot.slane %v52, %v56
    %v59 = vmul.f32 %v50, %v57
    %v60 = vmul.f32 %v51, %v57
    %v61 = vld [vmem:[%s3] sm:$0x1]
    %v63 = vlaneseq
    %v64 = vshrl.u32 %v63, 7
    %v65 = vsub.s32 0, %v64
    %v66 = vrot.slane %v61, %v65
    %v68 = vadd.f32 %v59, %v66
    %v69 = vadd.f32 %v60, %v66
    %70 = vst.msk [vmem:[#allocation2] sm:$0xff] %vm24, %v68
    %71 = vst.msk [vmem:[#allocation2 + $0x8] sm:$0xff] %vm24, %v69
    // Predicated region
    $region18: #{two_stream_rel_transformer_layer.17} parent=1 // pred_check
      _
    $region19: #{two_stream_rel_transformer_layer.17} parent=1 // pred_check_branch
      %73 = sbr.rel (0) target = $region21
    $region20: #{two_stream_rel_transformer_layer.17} parent=1 // pred_region
      %s75 = ssub.s32 256, 256
      %76 = vsyncadd [#allocation3], %s75
      %s77 = sshll.u32 [#allocation2], 4
      %s78 = int_to_ptr.vmem [resolvable:$true] %s77
      %83 = dma.vmem_to_hbm [thread:$0]  %s78, 256, %s4, [#allocation3], 128, 128, 8
    $region21: #{two_stream_rel_transformer_layer.17} parent=1 // pred_fallthru
      _
    // Predicated region
    $region22: #{two_stream_rel_transformer_layer.17} parent=1 // pred_check
      _
    $region23: #{two_stream_rel_transformer_layer.17} parent=1 // pred_check_branch
      %85 = sbr.rel (0) target = $region25
    $region24: #{two_stream_rel_transformer_layer.17} parent=1 // pred_region
      %86 = dma.done [#allocation3], 256
    $region25: #{two_stream_rel_transformer_layer.17} parent=1 // pred_fallthru
      _
    %87 = vsyncpa [#allocation3], 1

</llo_original>
